<compile_context>
chip_gen: v5e
topology: v5e:2x2
jax: 0.10.0
libtpu: 0.0.40
codegen_flags: <defaults>
</compile_context>

<pallas_src>
import math
import functools

import jax
import jax.numpy as jnp
from jax.experimental import pallas as pl
from jax.experimental.pallas import tpu as pltpu


# ----------------------------- shared helpers ------------------------------

def _layernorm(x, gamma, beta, eps=1e-5):
    mu = jnp.mean(x, axis=-1, keepdims=True)
    var = jnp.mean((x - mu) ** 2, axis=-1, keepdims=True)
    return (x - mu) * jax.lax.rsqrt(var + eps) * gamma + beta


# ------------------------------- Pallas kernel ------------------------------

def fused_forward_kernel(x_ref, pad_ref, pe_ref, wi_ref, bi_ref, *rest,
                         n_heads, scale):
    # rest = 12 refs per layer, then (wout_ref, bout_ref, o_ref)
    wout_ref, bout_ref, o_ref = rest[-3], rest[-2], rest[-1]
    layer_refs = rest[:-3]
    n_layers = len(layer_refs) // 12

    S = x_ref.shape[1]                  # tokens of this batch element
    D = wi_ref.shape[1]
    Dh = D // n_heads
    inv_sqrt_dh = 1.0 / math.sqrt(Dh)

    # bf16 operands (weights arrive bf16 -> astype is a no-op), f32 MXU accumulation
    def mm(a, b):                       # a @ b
        return jax.lax.dot_general(
            a.astype(jnp.bfloat16), b.astype(jnp.bfloat16),
            (((1,), (0,)), ((), ())), preferred_element_type=jnp.float32)

    def mm_tb(a, b):                    # a @ b.T without materializing a transpose
        return jax.lax.dot_general(
            a.astype(jnp.bfloat16), b.astype(jnp.bfloat16),
            (((1,), (1,)), ((), ())), preferred_element_type=jnp.float32)

    # ---- input projection * sqrt(d_model) + positional encoding ----
    x = mm(x_ref[0], wi_ref[...]) + bi_ref[...]
    x = x * scale + pe_ref[...]                                   # (S, D) f32

    # ---- per-batch additive mask: causal tril + key-padding row (built once) ----
    rows = jax.lax.broadcasted_iota(jnp.int32, (S, S), 0)
    cols = jax.lax.broadcasted_iota(jnp.int32, (S, S), 1)
    mask = jnp.where(cols <= rows, 0.0, -1e9).astype(jnp.float32) + pad_ref[0]

    for l in range(n_layers):
        (wqkv, bqkv, wo, bo, g1, be1,
         w1, bf1, w2, bf2, g2, be2) = layer_refs[12 * l:12 * (l + 1)]

        # ---- multi-head self attention (heads unrolled; 2-D tiles only) ----
        qkv = mm(x, wqkv[...]) + bqkv[...]                        # (S, 3D)
        ctx = []
        for h in range(n_heads):
            qh = qkv[:, h * Dh:(h + 1) * Dh]
            kh = qkv[:, D + h * Dh:D + (h + 1) * Dh]
            vh = qkv[:, 2 * D + h * Dh:2 * D + (h + 1) * Dh]
            s = mm_tb(qh, kh) * inv_sqrt_dh + mask                # (S, S)
            m = jnp.max(s, axis=-1, keepdims=True)
            p = jnp.exp(s - m)
            p = p * pl.reciprocal(jnp.sum(p, axis=-1, keepdims=True), approx=True)
            ctx.append(mm(p, vh))                                 # (S, Dh)
        ctx = jnp.concatenate(ctx, axis=-1)                       # (S, D): head fusion
        attn = mm(ctx, wo[...]) + bo[...]                         # single K=D matmul
        x = _layernorm(x + attn, g1[...], be1[...])

        # ---- feed forward (ReLU) ----
        hdn = jnp.maximum(mm(x, w1[...]) + bf1[...], 0.0)
        x = _layernorm(x + mm(hdn, w2[...]) + bf2[...], g2[...], be2[...])

    # ---- output projection (lane-padded to 128 cols) + sigmoid ----
    # padded cols carry sigmoid(0)=0.5 and are sliced off in the wrapper.
    y = mm(x, wout_ref[...]) + bout_ref[...]                      # (S, 128)
    o_ref[0] = pl.reciprocal(1.0 + jnp.exp(-y), approx=True)


# --------------------------------- wrapper ----------------------------------

def transformer_forward(src, padding_mask, params, n_heads, d_model):
    """src: (S, B, n_features); padding_mask: (B, S) bool (True = padded key).
    The causal (generate_square_subsequent_mask) structure is built in-kernel."""
    S, B, F = src.shape
    D = d_model
    F_PAD = 128                                   # lane-dense output stores
    bf16 = jnp.bfloat16

    x = jnp.transpose(src, (1, 0, 2)).astype(jnp.float32)          # (B, S, F)
    pad_add = jnp.where(padding_mask, -1e7, 0.0).astype(jnp.float32).reshape(B, 1, S)

    # Parameters cast to bf16 once here (halves DMA bytes + VMEM residency).
    pe = params['pe'][:S].astype(bf16)                             # (S, D), not tiled
    wi = params['wi'].astype(bf16)
    bi = params['bi'].astype(bf16)
    wout = jnp.zeros((D, F_PAD), bf16).at[:, :F].set(params['wo_final'].astype(bf16))
    bout = jnp.zeros((1, F_PAD), bf16).at[:, :F].set(params['bo_final'].astype(bf16))

    layer_keys = ('wqkv', 'bqkv', 'wo', 'bo', 'g1', 'be1',
                  'w1', 'bf1', 'w2', 'bf2', 'g2', 'be2')
    layer_args = []
    for lp in params['layers']:
        layer_args += [lp[k].astype(bf16) for k in layer_keys]

    args = [x, pad_add, pe, wi, bi, *layer_args, wout, bout]

    def const_spec(a):                          # full-array block, same for every b
        nd = a.ndim
        return pl.BlockSpec(a.shape, lambda b, _nd=nd: (0,) * _nd)

    in_specs = [
        pl.BlockSpec((1, S, F), lambda b: (b, 0, 0)),      # per-batch activations
        pl.BlockSpec((1, 1, S), lambda b: (b, 0, 0)),      # per-batch padding row
    ] + [const_spec(a) for a in args[2:]]

    out_specs = pl.BlockSpec((1, S, F_PAD), lambda b: (b, 0, 0))

    y = pl.pallas_call(
        functools.partial(fused_forward_kernel, n_heads=n_heads, scale=math.sqrt(D)),
        grid=(B,),
        out_shape=jax.ShapeDtypeStruct((B, S, F_PAD), jnp.float32),
        in_specs=in_specs,
        out_specs=out_specs,
        compiler_params=pltpu.CompilerParams(
            dimension_semantics=("parallel",),             # megacore / v7x 2nd TC
            vmem_limit_bytes=48 * 1024 * 1024),            # headroom for v7x 64 MiB
    )(*args)

    return jnp.transpose(y[:, :, :F], (1, 0, 2))           # (S, B, F)


# -------------------------- parameter construction -------------------------

def init_params(key, n_features, d_model, n_heads, n_hidden, n_layers, max_len=64):
    initrange = 0.1
    keys = iter(jax.random.split(key, 8 + 8 * n_layers))

    def unif(shape, a):
        return jax.random.uniform(next(keys), shape, jnp.float32, -a, a)

    params = {}
    params['wi'] = unif((n_features, d_model), initrange)
    params['bi'] = unif((1, d_model), 1.0 / math.sqrt(n_features))

    layers = []
    for _ in range(n_layers):
        layers.append({
            'wqkv': unif((d_model, 3 * d_model), 1.0 / math.sqrt(d_model)),
            'bqkv': jnp.zeros((1, 3 * d_model), jnp.float32),
            'wo':   unif((d_model, d_model), 1.0 / math.sqrt(d_model)),
            'bo':   jnp.zeros((1, d_model), jnp.float32),
            'g1':   jnp.ones((1, d_model), jnp.float32),
            'be1':  jnp.zeros((1, d_model), jnp.float32),
            'w1':   unif((d_model, n_hidden), 1.0 / math.sqrt(d_model)),
            'bf1':  unif((1, n_hidden), 1.0 / math.sqrt(d_model)),
            'w2':   unif((n_hidden, d_model), 1.0 / math.sqrt(n_hidden)),
            'bf2':  unif((1, d_model), 1.0 / math.sqrt(n_hidden)),
            'g2':   jnp.ones((1, d_model), jnp.float32),
            'be2':  jnp.zeros((1, d_model), jnp.float32),
        })
    params['layers'] = layers

    params['wo_final'] = unif((d_model, n_features), initrange)
    params['bo_final'] = jnp.zeros((1, n_features), jnp.float32)

    # PositionalEncoding buffer pe[max_len, d_model]
    position = jnp.arange(max_len, dtype=jnp.float32)[:, None]
    div_term = jnp.exp(jnp.arange(0, d_model, 2, dtype=jnp.float32) *
                       (-math.log(10000.0) / d_model))
    pe = jnp.zeros((max_len, d_model), jnp.float32)
    pe = pe.at[:, 0::2].set(jnp.sin(position * div_term))
    pe = pe.at[:, 1::2].set(jnp.cos(position * div_term))
    params['pe'] = pe
    return params


# ------------------------------ pure-JAX reference --------------------------
# Mirrors the kernel's matmul numerics (bf16 operands, f32 accumulation) but uses
# the standard per-batch formulation, explicit causal src_mask and exact division.

def reference_forward(src, src_mask, padding_mask, params, n_heads, d_model):
    S, B, F = src.shape
    D = d_model
    Dh = D // n_heads
    bf16, f32 = jnp.bfloat16, jnp.float32
    inv_sqrt_dh = 1.0 / math.sqrt(Dh)

    def mm(a, b):
        return jnp.einsum('...ij,jk->...ik', a.astype(bf16), b.astype(bf16),
                          preferred_element_type=f32)

    x = jnp.transpose(src, (1, 0, 2)).astype(f32)                 # (B, S, F)
    x = mm(x, params['wi']) + params['bi']
    x = x * math.sqrt(D) + params['pe'][:S][None]
    mask = src_mask[None] + jnp.where(padding_mask[:, None, :], -1e7, 0.0)

    for lp in params['layers']:
        qkv = mm(x, lp['wqkv']) + lp['bqkv']
        q, k, v = jnp.split(qkv, 3, axis=-1)
        q = q.reshape(B, S, n_heads, Dh)
        k = k.reshape(B, S, n_heads, Dh)
        v = v.reshape(B, S, n_heads, Dh)
        s = jnp.einsum('bqhd,bkhd->bhqk', q.astype(bf16), k.astype(bf16),
                       preferred_element_type=f32) * inv_sqrt_dh
        s = s + mask[:, None]
        p = jax.nn.softmax(s, axis=-1)
        ctx = jnp.einsum('bhqk,bkhd->bqhd', p.astype(bf16), v.astype(bf16),
                         preferred_element_type=f32).reshape(B, S, D)
        attn = mm(ctx, lp['wo']) + lp['bo']
        x = _layernorm(x + attn, lp['g1'], lp['be1'])
        h = jnp.maximum(mm(x, lp['w1']) + lp['bf1'], 0.0)
        ffn = mm(h, lp['w2']) + lp['bf2']
        x = _layernorm(x + ffn, lp['g2'], lp['be2'])

    y = mm(x, params['wo_final']) + params['bo_final']
    return jnp.transpose(jax.nn.sigmoid(y), (1, 0, 2))            # (S, B, F)


# ----------------------------------- main ------------------------------------

if __name__ == "__main__":
    n_features, d_model, n_heads, n_hidden, n_layers = 4, 32, 4, 32, 2
    S, B = 8, 2

    key = jax.random.PRNGKey(0)
    kp, kx = jax.random.split(key)
    params = init_params(kp, n_features, d_model, n_heads, n_hidden, n_layers)

    src = jax.random.normal(kx, (S, B, n_features), jnp.float32)
    # generate_square_subsequent_mask(S): 0 on/below diagonal, -1e7 above (reference
    # only; the kernel builds the equivalent causal structure in-kernel).
    causal = jnp.where(jnp.tril(jnp.ones((S, S), jnp.float32)) == 1.0, 0.0, -1e7)
    # key padding mask: True = padded position (pad last 2 tokens of batch 1)
    padding_mask = jnp.zeros((B, S), dtype=bool).at[1, -2:].set(True)

    out = transformer_forward(src, padding_mask, params, n_heads, d_model)
    out = jax.block_until_ready(out)

    ref = reference_forward(src, causal, padding_mask, params, n_heads, d_model)
    assert out.shape == (S, B, n_features)
    # Tolerance accounts for the approx EUP reciprocals (softmax denom / sigmoid)
    # and one-time bf16 truncation of biases / pe; matmul numerics (bf16 operands,
    # f32 accumulation) match the reference.
    assert bool(jnp.allclose(out, ref, atol=1e-2, rtol=1e-2)), \
        float(jnp.max(jnp.abs(out - ref)))
    print("KERNEL_OK")
</pallas_src>

<mosaic_0001>
module attributes {stable_mosaic.version = 11 : i64} {
  func.func @fused_forward_kernel(%arg0: i32, %arg1: memref<1x8x4xf32, #tpu.memory_space<vmem>>, %arg2: memref<1x1x8xf32, #tpu.memory_space<vmem>>, %arg3: memref<8x32xbf16, #tpu.memory_space<vmem>>, %arg4: memref<4x32xbf16, #tpu.memory_space<vmem>>, %arg5: memref<1x32xbf16, #tpu.memory_space<vmem>>, %arg6: memref<32x96xbf16, #tpu.memory_space<vmem>>, %arg7: memref<1x96xbf16, #tpu.memory_space<vmem>>, %arg8: memref<32x32xbf16, #tpu.memory_space<vmem>>, %arg9: memref<1x32xbf16, #tpu.memory_space<vmem>>, %arg10: memref<1x32xbf16, #tpu.memory_space<vmem>>, %arg11: memref<1x32xbf16, #tpu.memory_space<vmem>>, %arg12: memref<32x32xbf16, #tpu.memory_space<vmem>>, %arg13: memref<1x32xbf16, #tpu.memory_space<vmem>>, %arg14: memref<32x32xbf16, #tpu.memory_space<vmem>>, %arg15: memref<1x32xbf16, #tpu.memory_space<vmem>>, %arg16: memref<1x32xbf16, #tpu.memory_space<vmem>>, %arg17: memref<1x32xbf16, #tpu.memory_space<vmem>>, %arg18: memref<32x96xbf16, #tpu.memory_space<vmem>>, %arg19: memref<1x96xbf16, #tpu.memory_space<vmem>>, %arg20: memref<32x32xbf16, #tpu.memory_space<vmem>>, %arg21: memref<1x32xbf16, #tpu.memory_space<vmem>>, %arg22: memref<1x32xbf16, #tpu.memory_space<vmem>>, %arg23: memref<1x32xbf16, #tpu.memory_space<vmem>>, %arg24: memref<32x32xbf16, #tpu.memory_space<vmem>>, %arg25: memref<1x32xbf16, #tpu.memory_space<vmem>>, %arg26: memref<32x32xbf16, #tpu.memory_space<vmem>>, %arg27: memref<1x32xbf16, #tpu.memory_space<vmem>>, %arg28: memref<1x32xbf16, #tpu.memory_space<vmem>>, %arg29: memref<1x32xbf16, #tpu.memory_space<vmem>>, %arg30: memref<32x128xbf16, #tpu.memory_space<vmem>>, %arg31: memref<1x128xbf16, #tpu.memory_space<vmem>>, %arg32: memref<1x8x128xf32, #tpu.memory_space<vmem>>) attributes {dimension_semantics = [#tpu.dimension_semantics<parallel>], iteration_bounds = array<i64: 2>, scalar_prefetch = 0 : i64, scratch_operands = 0 : i64, tpu.core_type = #tpu.core_type<tc>, window_params = [{transform_indices = @transform_0, window_bounds = array<i64: 1, 8, 4>}, {transform_indices = @transform_1, window_bounds = array<i64: 1, 1, 8>}, {pipeline_mode = #tpu.pipeline_mode<synchronous>, transform_indices = @transform_2, window_bounds = array<i64: 8, 32>}, {pipeline_mode = #tpu.pipeline_mode<synchronous>, transform_indices = @transform_3, window_bounds = array<i64: 4, 32>}, {pipeline_mode = #tpu.pipeline_mode<synchronous>, transform_indices = @transform_4, window_bounds = array<i64: 1, 32>}, {pipeline_mode = #tpu.pipeline_mode<synchronous>, transform_indices = @transform_5, window_bounds = array<i64: 32, 96>}, {pipeline_mode = #tpu.pipeline_mode<synchronous>, transform_indices = @transform_6, window_bounds = array<i64: 1, 96>}, {pipeline_mode = #tpu.pipeline_mode<synchronous>, transform_indices = @transform_7, window_bounds = array<i64: 32, 32>}, {pipeline_mode = #tpu.pipeline_mode<synchronous>, transform_indices = @transform_8, window_bounds = array<i64: 1, 32>}, {pipeline_mode = #tpu.pipeline_mode<synchronous>, transform_indices = @transform_9, window_bounds = array<i64: 1, 32>}, {pipeline_mode = #tpu.pipeline_mode<synchronous>, transform_indices = @transform_10, window_bounds = array<i64: 1, 32>}, {pipeline_mode = #tpu.pipeline_mode<synchronous>, transform_indices = @transform_11, window_bounds = array<i64: 32, 32>}, {pipeline_mode = #tpu.pipeline_mode<synchronous>, transform_indices = @transform_12, window_bounds = array<i64: 1, 32>}, {pipeline_mode = #tpu.pipeline_mode<synchronous>, transform_indices = @transform_13, window_bounds = array<i64: 32, 32>}, {pipeline_mode = #tpu.pipeline_mode<synchronous>, transform_indices = @transform_14, window_bounds = array<i64: 1, 32>}, {pipeline_mode = #tpu.pipeline_mode<synchronous>, transform_indices = @transform_15, window_bounds = array<i64: 1, 32>}, {pipeline_mode = #tpu.pipeline_mode<synchronous>, transform_indices = @transform_16, window_bounds = array<i64: 1, 32>}, {pipeline_mode = #tpu.pipeline_mode<synchronous>, transform_indices = @transform_17, window_bounds = array<i64: 32, 96>}, {pipeline_mode = #tpu.pipeline_mode<synchronous>, transform_indices = @transform_18, window_bounds = array<i64: 1, 96>}, {pipeline_mode = #tpu.pipeline_mode<synchronous>, transform_indices = @transform_19, window_bounds = array<i64: 32, 32>}, {pipeline_mode = #tpu.pipeline_mode<synchronous>, transform_indices = @transform_20, window_bounds = array<i64: 1, 32>}, {pipeline_mode = #tpu.pipeline_mode<synchronous>, transform_indices = @transform_21, window_bounds = array<i64: 1, 32>}, {pipeline_mode = #tpu.pipeline_mode<synchronous>, transform_indices = @transform_22, window_bounds = array<i64: 1, 32>}, {pipeline_mode = #tpu.pipeline_mode<synchronous>, transform_indices = @transform_23, window_bounds = array<i64: 32, 32>}, {pipeline_mode = #tpu.pipeline_mode<synchronous>, transform_indices = @transform_24, window_bounds = array<i64: 1, 32>}, {pipeline_mode = #tpu.pipeline_mode<synchronous>, transform_indices = @transform_25, window_bounds = array<i64: 32, 32>}, {pipeline_mode = #tpu.pipeline_mode<synchronous>, transform_indices = @transform_26, window_bounds = array<i64: 1, 32>}, {pipeline_mode = #tpu.pipeline_mode<synchronous>, transform_indices = @transform_27, window_bounds = array<i64: 1, 32>}, {pipeline_mode = #tpu.pipeline_mode<synchronous>, transform_indices = @transform_28, window_bounds = array<i64: 1, 32>}, {pipeline_mode = #tpu.pipeline_mode<synchronous>, transform_indices = @transform_29, window_bounds = array<i64: 32, 128>}, {pipeline_mode = #tpu.pipeline_mode<synchronous>, transform_indices = @transform_30, window_bounds = array<i64: 1, 128>}, {transform_indices = @transform_31, window_bounds = array<i64: 1, 8, 128>}]} {
    %c0 = arith.constant 0 : index
    %c0_0 = arith.constant 0 : index
    %c0_1 = arith.constant 0 : index
    %0 = vector.load %arg1[%c0, %c0_0, %c0_1] : memref<1x8x4xf32, #tpu.memory_space<vmem>>, vector<1x8x4xf32>
    %1 = vector.shape_cast %0 : vector<1x8x4xf32> to vector<8x4xf32>
    %c0_2 = arith.constant 0 : index
    %c0_3 = arith.constant 0 : index
    %2 = vector.load %arg4[%c0_2, %c0_3] : memref<4x32xbf16, #tpu.memory_space<vmem>>, vector<4x32xbf16>
    %3 = arith.truncf %1 : vector<8x4xf32> to vector<8x4xbf16>
    %cst = arith.constant dense<0.000000e+00> : vector<8x32xf32>
    %4 = tpu.matmul %3, %2, %cst {dimension_numbers = #tpu.dot_dimension_numbers<[1], [0], [0], [1], [0, 0, 1, 1], [], []>} : vector<8x4xbf16>, vector<4x32xbf16>, vector<8x32xf32> -> vector<8x32xf32>
    %c0_4 = arith.constant 0 : index
    %c0_5 = arith.constant 0 : index
    %5 = vector.load %arg5[%c0_4, %c0_5] : memref<1x32xbf16, #tpu.memory_space<vmem>>, vector<1x32xbf16>
    %6 = arith.extf %5 : vector<1x32xbf16> to vector<1x32xf32>
    %7 = vector.broadcast %6 : vector<1x32xf32> to vector<8x32xf32>
    %8 = arith.addf %4, %7 : vector<8x32xf32>
    %cst_6 = arith.constant 5.65685415 : f32
    %9 = vector.broadcast %cst_6 : f32 to vector<8x32xf32>
    %10 = arith.mulf %8, %9 : vector<8x32xf32>
    %c0_7 = arith.constant 0 : index
    %c0_8 = arith.constant 0 : index
    %11 = vector.load %arg3[%c0_7, %c0_8] : memref<8x32xbf16, #tpu.memory_space<vmem>>, vector<8x32xbf16>
    %12 = arith.extf %11 : vector<8x32xbf16> to vector<8x32xf32>
    %13 = arith.addf %10, %12 : vector<8x32xf32>
    %14 = tpu.iota {dimensions = array<i32: 0>} : vector<8x8xi32>
    %15 = tpu.iota {dimensions = array<i32: 1>} : vector<8x8xi32>
    %16 = arith.cmpi sle, %15, %14 : vector<8x8xi32>
    %cst_9 = arith.constant 0.000000e+00 : f32
    %cst_10 = arith.constant -1.000000e+09 : f32
    %17 = vector.broadcast %cst_9 : f32 to vector<8x8xf32>
    %18 = vector.broadcast %cst_10 : f32 to vector<8x8xf32>
    %19 = arith.select %16, %17, %18 : vector<8x8xi1>, vector<8x8xf32>
    %c0_11 = arith.constant 0 : index
    %c0_12 = arith.constant 0 : index
    %c0_13 = arith.constant 0 : index
    %20 = vector.load %arg2[%c0_11, %c0_12, %c0_13] : memref<1x1x8xf32, #tpu.memory_space<vmem>>, vector<1x1x8xf32>
    %21 = vector.shape_cast %20 : vector<1x1x8xf32> to vector<1x8xf32>
    %22 = vector.broadcast %21 : vector<1x8xf32> to vector<8x8xf32>
    %23 = arith.addf %19, %22 : vector<8x8xf32>
    %c0_14 = arith.constant 0 : index
    %c0_15 = arith.constant 0 : index
    %24 = vector.load %arg6[%c0_14, %c0_15] : memref<32x96xbf16, #tpu.memory_space<vmem>>, vector<32x96xbf16>
    %25 = arith.truncf %13 : vector<8x32xf32> to vector<8x32xbf16>
    %cst_16 = arith.constant dense<0.000000e+00> : vector<8x96xf32>
    %26 = tpu.matmul %25, %24, %cst_16 {dimension_numbers = #tpu.dot_dimension_numbers<[1], [0], [0], [1], [0, 0, 1, 1], [], []>} : vector<8x32xbf16>, vector<32x96xbf16>, vector<8x96xf32> -> vector<8x96xf32>
    %c0_17 = arith.constant 0 : index
    %c0_18 = arith.constant 0 : index
    %27 = vector.load %arg7[%c0_17, %c0_18] : memref<1x96xbf16, #tpu.memory_space<vmem>>, vector<1x96xbf16>
    %28 = arith.extf %27 : vector<1x96xbf16> to vector<1x96xf32>
    %29 = vector.broadcast %28 : vector<1x96xf32> to vector<8x96xf32>
    %30 = arith.addf %26, %29 : vector<8x96xf32>
    %31 = vector.extract_strided_slice %30 {offsets = [0, 0], sizes = [8, 8], strides = [1, 1]} : vector<8x96xf32> to vector<8x8xf32>
    %32 = vector.extract_strided_slice %30 {offsets = [0, 32], sizes = [8, 8], strides = [1, 1]} : vector<8x96xf32> to vector<8x8xf32>
    %33 = vector.extract_strided_slice %30 {offsets = [0, 64], sizes = [8, 8], strides = [1, 1]} : vector<8x96xf32> to vector<8x8xf32>
    %34 = arith.truncf %31 : vector<8x8xf32> to vector<8x8xbf16>
    %35 = arith.truncf %32 : vector<8x8xf32> to vector<8x8xbf16>
    %cst_19 = arith.constant dense<0.000000e+00> : vector<8x8xf32>
    %36 = tpu.matmul %34, %35, %cst_19 {dimension_numbers = #tpu.dot_dimension_numbers<[1], [1], [0], [0], [0, 0, 1, 0], [], []>} : vector<8x8xbf16>, vector<8x8xbf16>, vector<8x8xf32> -> vector<8x8xf32>
    %cst_20 = arith.constant 0.353553385 : f32
    %37 = vector.broadcast %cst_20 : f32 to vector<8x8xf32>
    %38 = arith.mulf %36, %37 : vector<8x8xf32>
    %39 = arith.addf %38, %23 : vector<8x8xf32>
    %cst_21 = arith.constant dense<0xFF800000> : vector<8xf32>
    %40 = vector.multi_reduction <maximumf>, %39, %cst_21 [1] : vector<8x8xf32> to vector<8xf32>
    %41 = vector.shape_cast %40 : vector<8xf32> to vector<8x1xf32>
    %42 = vector.broadcast %41 : vector<8x1xf32> to vector<8x8xf32>
    %43 = arith.subf %39, %42 : vector<8x8xf32>
    %44 = math.exp %43 : vector<8x8xf32>
    %cst_22 = arith.constant dense<0.000000e+00> : vector<8xf32>
    %45 = vector.multi_reduction <add>, %44, %cst_22 [1] : vector<8x8xf32> to vector<8xf32>
    %46 = vector.shape_cast %45 : vector<8xf32> to vector<8x1xf32>
    %47 = tpu.reciprocal %46 {approx = true} : vector<8x1xf32> -> vector<8x1xf32>
    %48 = vector.broadcast %47 : vector<8x1xf32> to vector<8x8xf32>
    %49 = arith.mulf %44, %48 : vector<8x8xf32>
    %50 = arith.truncf %49 : vector<8x8xf32> to vector<8x8xbf16>
    %51 = arith.truncf %33 : vector<8x8xf32> to vector<8x8xbf16>
    %cst_23 = arith.constant dense<0.000000e+00> : vector<8x8xf32>
    %52 = tpu.matmul %50, %51, %cst_23 {dimension_numbers = #tpu.dot_dimension_numbers<[1], [0], [0], [1], [0, 0, 1, 1], [], []>} : vector<8x8xbf16>, vector<8x8xbf16>, vector<8x8xf32> -> vector<8x8xf32>
    %53 = vector.extract_strided_slice %30 {offsets = [0, 8], sizes = [8, 8], strides = [1, 1]} : vector<8x96xf32> to vector<8x8xf32>
    %54 = vector.extract_strided_slice %30 {offsets = [0, 40], sizes = [8, 8], strides = [1, 1]} : vector<8x96xf32> to vector<8x8xf32>
    %55 = vector.extract_strided_slice %30 {offsets = [0, 72], sizes = [8, 8], strides = [1, 1]} : vector<8x96xf32> to vector<8x8xf32>
    %56 = arith.truncf %53 : vector<8x8xf32> to vector<8x8xbf16>
    %57 = arith.truncf %54 : vector<8x8xf32> to vector<8x8xbf16>
    %cst_24 = arith.constant dense<0.000000e+00> : vector<8x8xf32>
    %58 = tpu.matmul %56, %57, %cst_24 {dimension_numbers = #tpu.dot_dimension_numbers<[1], [1], [0], [0], [0, 0, 1, 0], [], []>} : vector<8x8xbf16>, vector<8x8xbf16>, vector<8x8xf32> -> vector<8x8xf32>
    %cst_25 = arith.constant 0.353553385 : f32
    %59 = vector.broadcast %cst_25 : f32 to vector<8x8xf32>
    %60 = arith.mulf %58, %59 : vector<8x8xf32>
    %61 = arith.addf %60, %23 : vector<8x8xf32>
    %cst_26 = arith.constant dense<0xFF800000> : vector<8xf32>
    %62 = vector.multi_reduction <maximumf>, %61, %cst_26 [1] : vector<8x8xf32> to vector<8xf32>
    %63 = vector.shape_cast %62 : vector<8xf32> to vector<8x1xf32>
    %64 = vector.broadcast %63 : vector<8x1xf32> to vector<8x8xf32>
    %65 = arith.subf %61, %64 : vector<8x8xf32>
    %66 = math.exp %65 : vector<8x8xf32>
    %cst_27 = arith.constant dense<0.000000e+00> : vector<8xf32>
    %67 = vector.multi_reduction <add>, %66, %cst_27 [1] : vector<8x8xf32> to vector<8xf32>
    %68 = vector.shape_cast %67 : vector<8xf32> to vector<8x1xf32>
    %69 = tpu.reciprocal %68 {approx = true} : vector<8x1xf32> -> vector<8x1xf32>
    %70 = vector.broadcast %69 : vector<8x1xf32> to vector<8x8xf32>
    %71 = arith.mulf %66, %70 : vector<8x8xf32>
    %72 = arith.truncf %71 : vector<8x8xf32> to vector<8x8xbf16>
    %73 = arith.truncf %55 : vector<8x8xf32> to vector<8x8xbf16>
    %cst_28 = arith.constant dense<0.000000e+00> : vector<8x8xf32>
    %74 = tpu.matmul %72, %73, %cst_28 {dimension_numbers = #tpu.dot_dimension_numbers<[1], [0], [0], [1], [0, 0, 1, 1], [], []>} : vector<8x8xbf16>, vector<8x8xbf16>, vector<8x8xf32> -> vector<8x8xf32>
    %75 = vector.extract_strided_slice %30 {offsets = [0, 16], sizes = [8, 8], strides = [1, 1]} : vector<8x96xf32> to vector<8x8xf32>
    %76 = vector.extract_strided_slice %30 {offsets = [0, 48], sizes = [8, 8], strides = [1, 1]} : vector<8x96xf32> to vector<8x8xf32>
    %77 = vector.extract_strided_slice %30 {offsets = [0, 80], sizes = [8, 8], strides = [1, 1]} : vector<8x96xf32> to vector<8x8xf32>
    %78 = arith.truncf %75 : vector<8x8xf32> to vector<8x8xbf16>
    %79 = arith.truncf %76 : vector<8x8xf32> to vector<8x8xbf16>
    %cst_29 = arith.constant dense<0.000000e+00> : vector<8x8xf32>
    %80 = tpu.matmul %78, %79, %cst_29 {dimension_numbers = #tpu.dot_dimension_numbers<[1], [1], [0], [0], [0, 0, 1, 0], [], []>} : vector<8x8xbf16>, vector<8x8xbf16>, vector<8x8xf32> -> vector<8x8xf32>
    %cst_30 = arith.constant 0.353553385 : f32
    %81 = vector.broadcast %cst_30 : f32 to vector<8x8xf32>
    %82 = arith.mulf %80, %81 : vector<8x8xf32>
    %83 = arith.addf %82, %23 : vector<8x8xf32>
    %cst_31 = arith.constant dense<0xFF800000> : vector<8xf32>
    %84 = vector.multi_reduction <maximumf>, %83, %cst_31 [1] : vector<8x8xf32> to vector<8xf32>
    %85 = vector.shape_cast %84 : vector<8xf32> to vector<8x1xf32>
    %86 = vector.broadcast %85 : vector<8x1xf32> to vector<8x8xf32>
    %87 = arith.subf %83, %86 : vector<8x8xf32>
    %88 = math.exp %87 : vector<8x8xf32>
    %cst_32 = arith.constant dense<0.000000e+00> : vector<8xf32>
    %89 = vector.multi_reduction <add>, %88, %cst_32 [1] : vector<8x8xf32> to vector<8xf32>
    %90 = vector.shape_cast %89 : vector<8xf32> to vector<8x1xf32>
    %91 = tpu.reciprocal %90 {approx = true} : vector<8x1xf32> -> vector<8x1xf32>
    %92 = vector.broadcast %91 : vector<8x1xf32> to vector<8x8xf32>
    %93 = arith.mulf %88, %92 : vector<8x8xf32>
    %94 = arith.truncf %93 : vector<8x8xf32> to vector<8x8xbf16>
    %95 = arith.truncf %77 : vector<8x8xf32> to vector<8x8xbf16>
    %cst_33 = arith.constant dense<0.000000e+00> : vector<8x8xf32>
    %96 = tpu.matmul %94, %95, %cst_33 {dimension_numbers = #tpu.dot_dimension_numbers<[1], [0], [0], [1], [0, 0, 1, 1], [], []>} : vector<8x8xbf16>, vector<8x8xbf16>, vector<8x8xf32> -> vector<8x8xf32>
    %97 = vector.extract_strided_slice %30 {offsets = [0, 24], sizes = [8, 8], strides = [1, 1]} : vector<8x96xf32> to vector<8x8xf32>
    %98 = vector.extract_strided_slice %30 {offsets = [0, 56], sizes = [8, 8], strides = [1, 1]} : vector<8x96xf32> to vector<8x8xf32>
    %99 = vector.extract_strided_slice %30 {offsets = [0, 88], sizes = [8, 8], strides = [1, 1]} : vector<8x96xf32> to vector<8x8xf32>
    %100 = arith.truncf %97 : vector<8x8xf32> to vector<8x8xbf16>
    %101 = arith.truncf %98 : vector<8x8xf32> to vector<8x8xbf16>
    %cst_34 = arith.constant dense<0.000000e+00> : vector<8x8xf32>
    %102 = tpu.matmul %100, %101, %cst_34 {dimension_numbers = #tpu.dot_dimension_numbers<[1], [1], [0], [0], [0, 0, 1, 0], [], []>} : vector<8x8xbf16>, vector<8x8xbf16>, vector<8x8xf32> -> vector<8x8xf32>
    %cst_35 = arith.constant 0.353553385 : f32
    %103 = vector.broadcast %cst_35 : f32 to vector<8x8xf32>
    %104 = arith.mulf %102, %103 : vector<8x8xf32>
    %105 = arith.addf %104, %23 : vector<8x8xf32>
    %cst_36 = arith.constant dense<0xFF800000> : vector<8xf32>
    %106 = vector.multi_reduction <maximumf>, %105, %cst_36 [1] : vector<8x8xf32> to vector<8xf32>
    %107 = vector.shape_cast %106 : vector<8xf32> to vector<8x1xf32>
    %108 = vector.broadcast %107 : vector<8x1xf32> to vector<8x8xf32>
    %109 = arith.subf %105, %108 : vector<8x8xf32>
    %110 = math.exp %109 : vector<8x8xf32>
    %cst_37 = arith.constant dense<0.000000e+00> : vector<8xf32>
    %111 = vector.multi_reduction <add>, %110, %cst_37 [1] : vector<8x8xf32> to vector<8xf32>
    %112 = vector.shape_cast %111 : vector<8xf32> to vector<8x1xf32>
    %113 = tpu.reciprocal %112 {approx = true} : vector<8x1xf32> -> vector<8x1xf32>
    %114 = vector.broadcast %113 : vector<8x1xf32> to vector<8x8xf32>
    %115 = arith.mulf %110, %114 : vector<8x8xf32>
    %116 = arith.truncf %115 : vector<8x8xf32> to vector<8x8xbf16>
    %117 = arith.truncf %99 : vector<8x8xf32> to vector<8x8xbf16>
    %cst_38 = arith.constant dense<0.000000e+00> : vector<8x8xf32>
    %118 = tpu.matmul %116, %117, %cst_38 {dimension_numbers = #tpu.dot_dimension_numbers<[1], [0], [0], [1], [0, 0, 1, 1], [], []>} : vector<8x8xbf16>, vector<8x8xbf16>, vector<8x8xf32> -> vector<8x8xf32>
    %119 = tpu.concatenate %52, %74, %96, %118 in 1 : vector<8x8xf32>, vector<8x8xf32>, vector<8x8xf32>, vector<8x8xf32> -> vector<8x32xf32>
    %c0_39 = arith.constant 0 : index
    %c0_40 = arith.constant 0 : index
    %120 = vector.load %arg8[%c0_39, %c0_40] : memref<32x32xbf16, #tpu.memory_space<vmem>>, vector<32x32xbf16>
    %121 = arith.truncf %119 : vector<8x32xf32> to vector<8x32xbf16>
    %cst_41 = arith.constant dense<0.000000e+00> : vector<8x32xf32>
    %122 = tpu.matmul %121, %120, %cst_41 {dimension_numbers = #tpu.dot_dimension_numbers<[1], [0], [0], [1], [0, 0, 1, 1], [], []>} : vector<8x32xbf16>, vector<32x32xbf16>, vector<8x32xf32> -> vector<8x32xf32>
    %c0_42 = arith.constant 0 : index
    %c0_43 = arith.constant 0 : index
    %123 = vector.load %arg9[%c0_42, %c0_43] : memref<1x32xbf16, #tpu.memory_space<vmem>>, vector<1x32xbf16>
    %124 = arith.extf %123 : vector<1x32xbf16> to vector<1x32xf32>
    %125 = vector.broadcast %124 : vector<1x32xf32> to vector<8x32xf32>
    %126 = arith.addf %122, %125 : vector<8x32xf32>
    %127 = arith.addf %13, %126 : vector<8x32xf32>
    %c0_44 = arith.constant 0 : index
    %c0_45 = arith.constant 0 : index
    %128 = vector.load %arg10[%c0_44, %c0_45] : memref<1x32xbf16, #tpu.memory_space<vmem>>, vector<1x32xbf16>
    %c0_46 = arith.constant 0 : index
    %c0_47 = arith.constant 0 : index
    %129 = vector.load %arg11[%c0_46, %c0_47] : memref<1x32xbf16, #tpu.memory_space<vmem>>, vector<1x32xbf16>
    %cst_48 = arith.constant dense<0.000000e+00> : vector<8xf32>
    %130 = vector.multi_reduction <add>, %127, %cst_48 [1] : vector<8x32xf32> to vector<8xf32>
    %131 = vector.shape_cast %130 : vector<8xf32> to vector<8x1xf32>
    %cst_49 = arith.constant 3.200000e+01 : f32
    %132 = vector.broadcast %cst_49 : f32 to vector<8x1xf32>
    %133 = arith.divf %131, %132 : vector<8x1xf32>
    %134 = vector.broadcast %133 : vector<8x1xf32> to vector<8x32xf32>
    %135 = arith.subf %127, %134 : vector<8x32xf32>
    %136 = arith.mulf %135, %135 : vector<8x32xf32>
    %cst_50 = arith.constant dense<0.000000e+00> : vector<8xf32>
    %137 = vector.multi_reduction <add>, %136, %cst_50 [1] : vector<8x32xf32> to vector<8xf32>
    %138 = vector.shape_cast %137 : vector<8xf32> to vector<8x1xf32>
    %cst_51 = arith.constant 3.200000e+01 : f32
    %139 = vector.broadcast %cst_51 : f32 to vector<8x1xf32>
    %140 = arith.divf %138, %139 : vector<8x1xf32>
    %141 = vector.broadcast %133 : vector<8x1xf32> to vector<8x32xf32>
    %142 = arith.subf %127, %141 : vector<8x32xf32>
    %cst_52 = arith.constant 9.99999974E-6 : f32
    %143 = vector.broadcast %cst_52 : f32 to vector<8x1xf32>
    %144 = arith.addf %140, %143 : vector<8x1xf32>
    %145 = math.rsqrt %144 : vector<8x1xf32>
    %146 = vector.broadcast %145 : vector<8x1xf32> to vector<8x32xf32>
    %147 = arith.mulf %142, %146 : vector<8x32xf32>
    %148 = arith.extf %128 : vector<1x32xbf16> to vector<1x32xf32>
    %149 = vector.broadcast %148 : vector<1x32xf32> to vector<8x32xf32>
    %150 = arith.mulf %147, %149 : vector<8x32xf32>
    %151 = arith.extf %129 : vector<1x32xbf16> to vector<1x32xf32>
    %152 = vector.broadcast %151 : vector<1x32xf32> to vector<8x32xf32>
    %153 = arith.addf %150, %152 : vector<8x32xf32>
    %c0_53 = arith.constant 0 : index
    %c0_54 = arith.constant 0 : index
    %154 = vector.load %arg12[%c0_53, %c0_54] : memref<32x32xbf16, #tpu.memory_space<vmem>>, vector<32x32xbf16>
    %155 = arith.truncf %153 : vector<8x32xf32> to vector<8x32xbf16>
    %cst_55 = arith.constant dense<0.000000e+00> : vector<8x32xf32>
    %156 = tpu.matmul %155, %154, %cst_55 {dimension_numbers = #tpu.dot_dimension_numbers<[1], [0], [0], [1], [0, 0, 1, 1], [], []>} : vector<8x32xbf16>, vector<32x32xbf16>, vector<8x32xf32> -> vector<8x32xf32>
    %c0_56 = arith.constant 0 : index
    %c0_57 = arith.constant 0 : index
    %157 = vector.load %arg13[%c0_56, %c0_57] : memref<1x32xbf16, #tpu.memory_space<vmem>>, vector<1x32xbf16>
    %158 = arith.extf %157 : vector<1x32xbf16> to vector<1x32xf32>
    %159 = vector.broadcast %158 : vector<1x32xf32> to vector<8x32xf32>
    %160 = arith.addf %156, %159 : vector<8x32xf32>
    %cst_58 = arith.constant 0.000000e+00 : f32
    %161 = vector.broadcast %cst_58 : f32 to vector<8x32xf32>
    %162 = arith.maximumf %160, %161 : vector<8x32xf32>
    %c0_59 = arith.constant 0 : index
    %c0_60 = arith.constant 0 : index
    %163 = vector.load %arg14[%c0_59, %c0_60] : memref<32x32xbf16, #tpu.memory_space<vmem>>, vector<32x32xbf16>
    %164 = arith.truncf %162 : vector<8x32xf32> to vector<8x32xbf16>
    %cst_61 = arith.constant dense<0.000000e+00> : vector<8x32xf32>
    %165 = tpu.matmul %164, %163, %cst_61 {dimension_numbers = #tpu.dot_dimension_numbers<[1], [0], [0], [1], [0, 0, 1, 1], [], []>} : vector<8x32xbf16>, vector<32x32xbf16>, vector<8x32xf32> -> vector<8x32xf32>
    %166 = arith.addf %153, %165 : vector<8x32xf32>
    %c0_62 = arith.constant 0 : index
    %c0_63 = arith.constant 0 : index
    %167 = vector.load %arg15[%c0_62, %c0_63] : memref<1x32xbf16, #tpu.memory_space<vmem>>, vector<1x32xbf16>
    %168 = arith.extf %167 : vector<1x32xbf16> to vector<1x32xf32>
    %169 = vector.broadcast %168 : vector<1x32xf32> to vector<8x32xf32>
    %170 = arith.addf %166, %169 : vector<8x32xf32>
    %c0_64 = arith.constant 0 : index
    %c0_65 = arith.constant 0 : index
    %171 = vector.load %arg16[%c0_64, %c0_65] : memref<1x32xbf16, #tpu.memory_space<vmem>>, vector<1x32xbf16>
    %c0_66 = arith.constant 0 : index
    %c0_67 = arith.constant 0 : index
    %172 = vector.load %arg17[%c0_66, %c0_67] : memref<1x32xbf16, #tpu.memory_space<vmem>>, vector<1x32xbf16>
    %cst_68 = arith.constant dense<0.000000e+00> : vector<8xf32>
    %173 = vector.multi_reduction <add>, %170, %cst_68 [1] : vector<8x32xf32> to vector<8xf32>
    %174 = vector.shape_cast %173 : vector<8xf32> to vector<8x1xf32>
    %cst_69 = arith.constant 3.200000e+01 : f32
    %175 = vector.broadcast %cst_69 : f32 to vector<8x1xf32>
    %176 = arith.divf %174, %175 : vector<8x1xf32>
    %177 = vector.broadcast %176 : vector<8x1xf32> to vector<8x32xf32>
    %178 = arith.subf %170, %177 : vector<8x32xf32>
    %179 = arith.mulf %178, %178 : vector<8x32xf32>
    %cst_70 = arith.constant dense<0.000000e+00> : vector<8xf32>
    %180 = vector.multi_reduction <add>, %179, %cst_70 [1] : vector<8x32xf32> to vector<8xf32>
    %181 = vector.shape_cast %180 : vector<8xf32> to vector<8x1xf32>
    %cst_71 = arith.constant 3.200000e+01 : f32
    %182 = vector.broadcast %cst_71 : f32 to vector<8x1xf32>
    %183 = arith.divf %181, %182 : vector<8x1xf32>
    %184 = vector.broadcast %176 : vector<8x1xf32> to vector<8x32xf32>
    %185 = arith.subf %170, %184 : vector<8x32xf32>
    %cst_72 = arith.constant 9.99999974E-6 : f32
    %186 = vector.broadcast %cst_72 : f32 to vector<8x1xf32>
    %187 = arith.addf %183, %186 : vector<8x1xf32>
    %188 = math.rsqrt %187 : vector<8x1xf32>
    %189 = vector.broadcast %188 : vector<8x1xf32> to vector<8x32xf32>
    %190 = arith.mulf %185, %189 : vector<8x32xf32>
    %191 = arith.extf %171 : vector<1x32xbf16> to vector<1x32xf32>
    %192 = vector.broadcast %191 : vector<1x32xf32> to vector<8x32xf32>
    %193 = arith.mulf %190, %192 : vector<8x32xf32>
    %194 = arith.extf %172 : vector<1x32xbf16> to vector<1x32xf32>
    %195 = vector.broadcast %194 : vector<1x32xf32> to vector<8x32xf32>
    %196 = arith.addf %193, %195 : vector<8x32xf32>
    %c0_73 = arith.constant 0 : index
    %c0_74 = arith.constant 0 : index
    %197 = vector.load %arg18[%c0_73, %c0_74] : memref<32x96xbf16, #tpu.memory_space<vmem>>, vector<32x96xbf16>
    %198 = arith.truncf %196 : vector<8x32xf32> to vector<8x32xbf16>
    %cst_75 = arith.constant dense<0.000000e+00> : vector<8x96xf32>
    %199 = tpu.matmul %198, %197, %cst_75 {dimension_numbers = #tpu.dot_dimension_numbers<[1], [0], [0], [1], [0, 0, 1, 1], [], []>} : vector<8x32xbf16>, vector<32x96xbf16>, vector<8x96xf32> -> vector<8x96xf32>
    %c0_76 = arith.constant 0 : index
    %c0_77 = arith.constant 0 : index
    %200 = vector.load %arg19[%c0_76, %c0_77] : memref<1x96xbf16, #tpu.memory_space<vmem>>, vector<1x96xbf16>
    %201 = arith.extf %200 : vector<1x96xbf16> to vector<1x96xf32>
    %202 = vector.broadcast %201 : vector<1x96xf32> to vector<8x96xf32>
    %203 = arith.addf %199, %202 : vector<8x96xf32>
    %204 = vector.extract_strided_slice %203 {offsets = [0, 0], sizes = [8, 8], strides = [1, 1]} : vector<8x96xf32> to vector<8x8xf32>
    %205 = vector.extract_strided_slice %203 {offsets = [0, 32], sizes = [8, 8], strides = [1, 1]} : vector<8x96xf32> to vector<8x8xf32>
    %206 = vector.extract_strided_slice %203 {offsets = [0, 64], sizes = [8, 8], strides = [1, 1]} : vector<8x96xf32> to vector<8x8xf32>
    %207 = arith.truncf %204 : vector<8x8xf32> to vector<8x8xbf16>
    %208 = arith.truncf %205 : vector<8x8xf32> to vector<8x8xbf16>
    %cst_78 = arith.constant dense<0.000000e+00> : vector<8x8xf32>
    %209 = tpu.matmul %207, %208, %cst_78 {dimension_numbers = #tpu.dot_dimension_numbers<[1], [1], [0], [0], [0, 0, 1, 0], [], []>} : vector<8x8xbf16>, vector<8x8xbf16>, vector<8x8xf32> -> vector<8x8xf32>
    %cst_79 = arith.constant 0.353553385 : f32
    %210 = vector.broadcast %cst_79 : f32 to vector<8x8xf32>
    %211 = arith.mulf %209, %210 : vector<8x8xf32>
    %212 = arith.addf %211, %23 : vector<8x8xf32>
    %cst_80 = arith.constant dense<0xFF800000> : vector<8xf32>
    %213 = vector.multi_reduction <maximumf>, %212, %cst_80 [1] : vector<8x8xf32> to vector<8xf32>
    %214 = vector.shape_cast %213 : vector<8xf32> to vector<8x1xf32>
    %215 = vector.broadcast %214 : vector<8x1xf32> to vector<8x8xf32>
    %216 = arith.subf %212, %215 : vector<8x8xf32>
    %217 = math.exp %216 : vector<8x8xf32>
    %cst_81 = arith.constant dense<0.000000e+00> : vector<8xf32>
    %218 = vector.multi_reduction <add>, %217, %cst_81 [1] : vector<8x8xf32> to vector<8xf32>
    %219 = vector.shape_cast %218 : vector<8xf32> to vector<8x1xf32>
    %220 = tpu.reciprocal %219 {approx = true} : vector<8x1xf32> -> vector<8x1xf32>
    %221 = vector.broadcast %220 : vector<8x1xf32> to vector<8x8xf32>
    %222 = arith.mulf %217, %221 : vector<8x8xf32>
    %223 = arith.truncf %222 : vector<8x8xf32> to vector<8x8xbf16>
    %224 = arith.truncf %206 : vector<8x8xf32> to vector<8x8xbf16>
    %cst_82 = arith.constant dense<0.000000e+00> : vector<8x8xf32>
    %225 = tpu.matmul %223, %224, %cst_82 {dimension_numbers = #tpu.dot_dimension_numbers<[1], [0], [0], [1], [0, 0, 1, 1], [], []>} : vector<8x8xbf16>, vector<8x8xbf16>, vector<8x8xf32> -> vector<8x8xf32>
    %226 = vector.extract_strided_slice %203 {offsets = [0, 8], sizes = [8, 8], strides = [1, 1]} : vector<8x96xf32> to vector<8x8xf32>
    %227 = vector.extract_strided_slice %203 {offsets = [0, 40], sizes = [8, 8], strides = [1, 1]} : vector<8x96xf32> to vector<8x8xf32>
    %228 = vector.extract_strided_slice %203 {offsets = [0, 72], sizes = [8, 8], strides = [1, 1]} : vector<8x96xf32> to vector<8x8xf32>
    %229 = arith.truncf %226 : vector<8x8xf32> to vector<8x8xbf16>
    %230 = arith.truncf %227 : vector<8x8xf32> to vector<8x8xbf16>
    %cst_83 = arith.constant dense<0.000000e+00> : vector<8x8xf32>
    %231 = tpu.matmul %229, %230, %cst_83 {dimension_numbers = #tpu.dot_dimension_numbers<[1], [1], [0], [0], [0, 0, 1, 0], [], []>} : vector<8x8xbf16>, vector<8x8xbf16>, vector<8x8xf32> -> vector<8x8xf32>
    %cst_84 = arith.constant 0.353553385 : f32
    %232 = vector.broadcast %cst_84 : f32 to vector<8x8xf32>
    %233 = arith.mulf %231, %232 : vector<8x8xf32>
    %234 = arith.addf %233, %23 : vector<8x8xf32>
    %cst_85 = arith.constant dense<0xFF800000> : vector<8xf32>
    %235 = vector.multi_reduction <maximumf>, %234, %cst_85 [1] : vector<8x8xf32> to vector<8xf32>
    %236 = vector.shape_cast %235 : vector<8xf32> to vector<8x1xf32>
    %237 = vector.broadcast %236 : vector<8x1xf32> to vector<8x8xf32>
    %238 = arith.subf %234, %237 : vector<8x8xf32>
    %239 = math.exp %238 : vector<8x8xf32>
    %cst_86 = arith.constant dense<0.000000e+00> : vector<8xf32>
    %240 = vector.multi_reduction <add>, %239, %cst_86 [1] : vector<8x8xf32> to vector<8xf32>
    %241 = vector.shape_cast %240 : vector<8xf32> to vector<8x1xf32>
    %242 = tpu.reciprocal %241 {approx = true} : vector<8x1xf32> -> vector<8x1xf32>
    %243 = vector.broadcast %242 : vector<8x1xf32> to vector<8x8xf32>
    %244 = arith.mulf %239, %243 : vector<8x8xf32>
    %245 = arith.truncf %244 : vector<8x8xf32> to vector<8x8xbf16>
    %246 = arith.truncf %228 : vector<8x8xf32> to vector<8x8xbf16>
    %cst_87 = arith.constant dense<0.000000e+00> : vector<8x8xf32>
    %247 = tpu.matmul %245, %246, %cst_87 {dimension_numbers = #tpu.dot_dimension_numbers<[1], [0], [0], [1], [0, 0, 1, 1], [], []>} : vector<8x8xbf16>, vector<8x8xbf16>, vector<8x8xf32> -> vector<8x8xf32>
    %248 = vector.extract_strided_slice %203 {offsets = [0, 16], sizes = [8, 8], strides = [1, 1]} : vector<8x96xf32> to vector<8x8xf32>
    %249 = vector.extract_strided_slice %203 {offsets = [0, 48], sizes = [8, 8], strides = [1, 1]} : vector<8x96xf32> to vector<8x8xf32>
    %250 = vector.extract_strided_slice %203 {offsets = [0, 80], sizes = [8, 8], strides = [1, 1]} : vector<8x96xf32> to vector<8x8xf32>
    %251 = arith.truncf %248 : vector<8x8xf32> to vector<8x8xbf16>
    %252 = arith.truncf %249 : vector<8x8xf32> to vector<8x8xbf16>
    %cst_88 = arith.constant dense<0.000000e+00> : vector<8x8xf32>
    %253 = tpu.matmul %251, %252, %cst_88 {dimension_numbers = #tpu.dot_dimension_numbers<[1], [1], [0], [0], [0, 0, 1, 0], [], []>} : vector<8x8xbf16>, vector<8x8xbf16>, vector<8x8xf32> -> vector<8x8xf32>
    %cst_89 = arith.constant 0.353553385 : f32
    %254 = vector.broadcast %cst_89 : f32 to vector<8x8xf32>
    %255 = arith.mulf %253, %254 : vector<8x8xf32>
    %256 = arith.addf %255, %23 : vector<8x8xf32>
    %cst_90 = arith.constant dense<0xFF800000> : vector<8xf32>
    %257 = vector.multi_reduction <maximumf>, %256, %cst_90 [1] : vector<8x8xf32> to vector<8xf32>
    %258 = vector.shape_cast %257 : vector<8xf32> to vector<8x1xf32>
    %259 = vector.broadcast %258 : vector<8x1xf32> to vector<8x8xf32>
    %260 = arith.subf %256, %259 : vector<8x8xf32>
    %261 = math.exp %260 : vector<8x8xf32>
    %cst_91 = arith.constant dense<0.000000e+00> : vector<8xf32>
    %262 = vector.multi_reduction <add>, %261, %cst_91 [1] : vector<8x8xf32> to vector<8xf32>
    %263 = vector.shape_cast %262 : vector<8xf32> to vector<8x1xf32>
    %264 = tpu.reciprocal %263 {approx = true} : vector<8x1xf32> -> vector<8x1xf32>
    %265 = vector.broadcast %264 : vector<8x1xf32> to vector<8x8xf32>
    %266 = arith.mulf %261, %265 : vector<8x8xf32>
    %267 = arith.truncf %266 : vector<8x8xf32> to vector<8x8xbf16>
    %268 = arith.truncf %250 : vector<8x8xf32> to vector<8x8xbf16>
    %cst_92 = arith.constant dense<0.000000e+00> : vector<8x8xf32>
    %269 = tpu.matmul %267, %268, %cst_92 {dimension_numbers = #tpu.dot_dimension_numbers<[1], [0], [0], [1], [0, 0, 1, 1], [], []>} : vector<8x8xbf16>, vector<8x8xbf16>, vector<8x8xf32> -> vector<8x8xf32>
    %270 = vector.extract_strided_slice %203 {offsets = [0, 24], sizes = [8, 8], strides = [1, 1]} : vector<8x96xf32> to vector<8x8xf32>
    %271 = vector.extract_strided_slice %203 {offsets = [0, 56], sizes = [8, 8], strides = [1, 1]} : vector<8x96xf32> to vector<8x8xf32>
    %272 = vector.extract_strided_slice %203 {offsets = [0, 88], sizes = [8, 8], strides = [1, 1]} : vector<8x96xf32> to vector<8x8xf32>
    %273 = arith.truncf %270 : vector<8x8xf32> to vector<8x8xbf16>
    %274 = arith.truncf %271 : vector<8x8xf32> to vector<8x8xbf16>
    %cst_93 = arith.constant dense<0.000000e+00> : vector<8x8xf32>
    %275 = tpu.matmul %273, %274, %cst_93 {dimension_numbers = #tpu.dot_dimension_numbers<[1], [1], [0], [0], [0, 0, 1, 0], [], []>} : vector<8x8xbf16>, vector<8x8xbf16>, vector<8x8xf32> -> vector<8x8xf32>
    %cst_94 = arith.constant 0.353553385 : f32
    %276 = vector.broadcast %cst_94 : f32 to vector<8x8xf32>
    %277 = arith.mulf %275, %276 : vector<8x8xf32>
    %278 = arith.addf %277, %23 : vector<8x8xf32>
    %cst_95 = arith.constant dense<0xFF800000> : vector<8xf32>
    %279 = vector.multi_reduction <maximumf>, %278, %cst_95 [1] : vector<8x8xf32> to vector<8xf32>
    %280 = vector.shape_cast %279 : vector<8xf32> to vector<8x1xf32>
    %281 = vector.broadcast %280 : vector<8x1xf32> to vector<8x8xf32>
    %282 = arith.subf %278, %281 : vector<8x8xf32>
    %283 = math.exp %282 : vector<8x8xf32>
    %cst_96 = arith.constant dense<0.000000e+00> : vector<8xf32>
    %284 = vector.multi_reduction <add>, %283, %cst_96 [1] : vector<8x8xf32> to vector<8xf32>
    %285 = vector.shape_cast %284 : vector<8xf32> to vector<8x1xf32>
    %286 = tpu.reciprocal %285 {approx = true} : vector<8x1xf32> -> vector<8x1xf32>
    %287 = vector.broadcast %286 : vector<8x1xf32> to vector<8x8xf32>
    %288 = arith.mulf %283, %287 : vector<8x8xf32>
    %289 = arith.truncf %288 : vector<8x8xf32> to vector<8x8xbf16>
    %290 = arith.truncf %272 : vector<8x8xf32> to vector<8x8xbf16>
    %cst_97 = arith.constant dense<0.000000e+00> : vector<8x8xf32>
    %291 = tpu.matmul %289, %290, %cst_97 {dimension_numbers = #tpu.dot_dimension_numbers<[1], [0], [0], [1], [0, 0, 1, 1], [], []>} : vector<8x8xbf16>, vector<8x8xbf16>, vector<8x8xf32> -> vector<8x8xf32>
    %292 = tpu.concatenate %225, %247, %269, %291 in 1 : vector<8x8xf32>, vector<8x8xf32>, vector<8x8xf32>, vector<8x8xf32> -> vector<8x32xf32>
    %c0_98 = arith.constant 0 : index
    %c0_99 = arith.constant 0 : index
    %293 = vector.load %arg20[%c0_98, %c0_99] : memref<32x32xbf16, #tpu.memory_space<vmem>>, vector<32x32xbf16>
    %294 = arith.truncf %292 : vector<8x32xf32> to vector<8x32xbf16>
    %cst_100 = arith.constant dense<0.000000e+00> : vector<8x32xf32>
    %295 = tpu.matmul %294, %293, %cst_100 {dimension_numbers = #tpu.dot_dimension_numbers<[1], [0], [0], [1], [0, 0, 1, 1], [], []>} : vector<8x32xbf16>, vector<32x32xbf16>, vector<8x32xf32> -> vector<8x32xf32>
    %c0_101 = arith.constant 0 : index
    %c0_102 = arith.constant 0 : index
    %296 = vector.load %arg21[%c0_101, %c0_102] : memref<1x32xbf16, #tpu.memory_space<vmem>>, vector<1x32xbf16>
    %297 = arith.extf %296 : vector<1x32xbf16> to vector<1x32xf32>
    %298 = vector.broadcast %297 : vector<1x32xf32> to vector<8x32xf32>
    %299 = arith.addf %295, %298 : vector<8x32xf32>
    %300 = arith.addf %196, %299 : vector<8x32xf32>
    %c0_103 = arith.constant 0 : index
    %c0_104 = arith.constant 0 : index
    %301 = vector.load %arg22[%c0_103, %c0_104] : memref<1x32xbf16, #tpu.memory_space<vmem>>, vector<1x32xbf16>
    %c0_105 = arith.constant 0 : index
    %c0_106 = arith.constant 0 : index
    %302 = vector.load %arg23[%c0_105, %c0_106] : memref<1x32xbf16, #tpu.memory_space<vmem>>, vector<1x32xbf16>
    %cst_107 = arith.constant dense<0.000000e+00> : vector<8xf32>
    %303 = vector.multi_reduction <add>, %300, %cst_107 [1] : vector<8x32xf32> to vector<8xf32>
    %304 = vector.shape_cast %303 : vector<8xf32> to vector<8x1xf32>
    %cst_108 = arith.constant 3.200000e+01 : f32
    %305 = vector.broadcast %cst_108 : f32 to vector<8x1xf32>
    %306 = arith.divf %304, %305 : vector<8x1xf32>
    %307 = vector.broadcast %306 : vector<8x1xf32> to vector<8x32xf32>
    %308 = arith.subf %300, %307 : vector<8x32xf32>
    %309 = arith.mulf %308, %308 : vector<8x32xf32>
    %cst_109 = arith.constant dense<0.000000e+00> : vector<8xf32>
    %310 = vector.multi_reduction <add>, %309, %cst_109 [1] : vector<8x32xf32> to vector<8xf32>
    %311 = vector.shape_cast %310 : vector<8xf32> to vector<8x1xf32>
    %cst_110 = arith.constant 3.200000e+01 : f32
    %312 = vector.broadcast %cst_110 : f32 to vector<8x1xf32>
    %313 = arith.divf %311, %312 : vector<8x1xf32>
    %314 = vector.broadcast %306 : vector<8x1xf32> to vector<8x32xf32>
    %315 = arith.subf %300, %314 : vector<8x32xf32>
    %cst_111 = arith.constant 9.99999974E-6 : f32
    %316 = vector.broadcast %cst_111 : f32 to vector<8x1xf32>
    %317 = arith.addf %313, %316 : vector<8x1xf32>
    %318 = math.rsqrt %317 : vector<8x1xf32>
    %319 = vector.broadcast %318 : vector<8x1xf32> to vector<8x32xf32>
    %320 = arith.mulf %315, %319 : vector<8x32xf32>
    %321 = arith.extf %301 : vector<1x32xbf16> to vector<1x32xf32>
    %322 = vector.broadcast %321 : vector<1x32xf32> to vector<8x32xf32>
    %323 = arith.mulf %320, %322 : vector<8x32xf32>
    %324 = arith.extf %302 : vector<1x32xbf16> to vector<1x32xf32>
    %325 = vector.broadcast %324 : vector<1x32xf32> to vector<8x32xf32>
    %326 = arith.addf %323, %325 : vector<8x32xf32>
    %c0_112 = arith.constant 0 : index
    %c0_113 = arith.constant 0 : index
    %327 = vector.load %arg24[%c0_112, %c0_113] : memref<32x32xbf16, #tpu.memory_space<vmem>>, vector<32x32xbf16>
    %328 = arith.truncf %326 : vector<8x32xf32> to vector<8x32xbf16>
    %cst_114 = arith.constant dense<0.000000e+00> : vector<8x32xf32>
    %329 = tpu.matmul %328, %327, %cst_114 {dimension_numbers = #tpu.dot_dimension_numbers<[1], [0], [0], [1], [0, 0, 1, 1], [], []>} : vector<8x32xbf16>, vector<32x32xbf16>, vector<8x32xf32> -> vector<8x32xf32>
    %c0_115 = arith.constant 0 : index
    %c0_116 = arith.constant 0 : index
    %330 = vector.load %arg25[%c0_115, %c0_116] : memref<1x32xbf16, #tpu.memory_space<vmem>>, vector<1x32xbf16>
    %331 = arith.extf %330 : vector<1x32xbf16> to vector<1x32xf32>
    %332 = vector.broadcast %331 : vector<1x32xf32> to vector<8x32xf32>
    %333 = arith.addf %329, %332 : vector<8x32xf32>
    %cst_117 = arith.constant 0.000000e+00 : f32
    %334 = vector.broadcast %cst_117 : f32 to vector<8x32xf32>
    %335 = arith.maximumf %333, %334 : vector<8x32xf32>
    %c0_118 = arith.constant 0 : index
    %c0_119 = arith.constant 0 : index
    %336 = vector.load %arg26[%c0_118, %c0_119] : memref<32x32xbf16, #tpu.memory_space<vmem>>, vector<32x32xbf16>
    %337 = arith.truncf %335 : vector<8x32xf32> to vector<8x32xbf16>
    %cst_120 = arith.constant dense<0.000000e+00> : vector<8x32xf32>
    %338 = tpu.matmul %337, %336, %cst_120 {dimension_numbers = #tpu.dot_dimension_numbers<[1], [0], [0], [1], [0, 0, 1, 1], [], []>} : vector<8x32xbf16>, vector<32x32xbf16>, vector<8x32xf32> -> vector<8x32xf32>
    %339 = arith.addf %326, %338 : vector<8x32xf32>
    %c0_121 = arith.constant 0 : index
    %c0_122 = arith.constant 0 : index
    %340 = vector.load %arg27[%c0_121, %c0_122] : memref<1x32xbf16, #tpu.memory_space<vmem>>, vector<1x32xbf16>
    %341 = arith.extf %340 : vector<1x32xbf16> to vector<1x32xf32>
    %342 = vector.broadcast %341 : vector<1x32xf32> to vector<8x32xf32>
    %343 = arith.addf %339, %342 : vector<8x32xf32>
    %c0_123 = arith.constant 0 : index
    %c0_124 = arith.constant 0 : index
    %344 = vector.load %arg28[%c0_123, %c0_124] : memref<1x32xbf16, #tpu.memory_space<vmem>>, vector<1x32xbf16>
    %c0_125 = arith.constant 0 : index
    %c0_126 = arith.constant 0 : index
    %345 = vector.load %arg29[%c0_125, %c0_126] : memref<1x32xbf16, #tpu.memory_space<vmem>>, vector<1x32xbf16>
    %cst_127 = arith.constant dense<0.000000e+00> : vector<8xf32>
    %346 = vector.multi_reduction <add>, %343, %cst_127 [1] : vector<8x32xf32> to vector<8xf32>
    %347 = vector.shape_cast %346 : vector<8xf32> to vector<8x1xf32>
    %cst_128 = arith.constant 3.200000e+01 : f32
    %348 = vector.broadcast %cst_128 : f32 to vector<8x1xf32>
    %349 = arith.divf %347, %348 : vector<8x1xf32>
    %350 = vector.broadcast %349 : vector<8x1xf32> to vector<8x32xf32>
    %351 = arith.subf %343, %350 : vector<8x32xf32>
    %352 = arith.mulf %351, %351 : vector<8x32xf32>
    %cst_129 = arith.constant dense<0.000000e+00> : vector<8xf32>
    %353 = vector.multi_reduction <add>, %352, %cst_129 [1] : vector<8x32xf32> to vector<8xf32>
    %354 = vector.shape_cast %353 : vector<8xf32> to vector<8x1xf32>
    %cst_130 = arith.constant 3.200000e+01 : f32
    %355 = vector.broadcast %cst_130 : f32 to vector<8x1xf32>
    %356 = arith.divf %354, %355 : vector<8x1xf32>
    %357 = vector.broadcast %349 : vector<8x1xf32> to vector<8x32xf32>
    %358 = arith.subf %343, %357 : vector<8x32xf32>
    %cst_131 = arith.constant 9.99999974E-6 : f32
    %359 = vector.broadcast %cst_131 : f32 to vector<8x1xf32>
    %360 = arith.addf %356, %359 : vector<8x1xf32>
    %361 = math.rsqrt %360 : vector<8x1xf32>
    %362 = vector.broadcast %361 : vector<8x1xf32> to vector<8x32xf32>
    %363 = arith.mulf %358, %362 : vector<8x32xf32>
    %364 = arith.extf %344 : vector<1x32xbf16> to vector<1x32xf32>
    %365 = vector.broadcast %364 : vector<1x32xf32> to vector<8x32xf32>
    %366 = arith.mulf %363, %365 : vector<8x32xf32>
    %367 = arith.extf %345 : vector<1x32xbf16> to vector<1x32xf32>
    %368 = vector.broadcast %367 : vector<1x32xf32> to vector<8x32xf32>
    %369 = arith.addf %366, %368 : vector<8x32xf32>
    %c0_132 = arith.constant 0 : index
    %c0_133 = arith.constant 0 : index
    %370 = vector.load %arg30[%c0_132, %c0_133] : memref<32x128xbf16, #tpu.memory_space<vmem>>, vector<32x128xbf16>
    %371 = arith.truncf %369 : vector<8x32xf32> to vector<8x32xbf16>
    %cst_134 = arith.constant dense<0.000000e+00> : vector<8x128xf32>
    %372 = tpu.matmul %371, %370, %cst_134 {dimension_numbers = #tpu.dot_dimension_numbers<[1], [0], [0], [1], [0, 0, 1, 1], [], []>} : vector<8x32xbf16>, vector<32x128xbf16>, vector<8x128xf32> -> vector<8x128xf32>
    %c0_135 = arith.constant 0 : index
    %c0_136 = arith.constant 0 : index
    %373 = vector.load %arg31[%c0_135, %c0_136] : memref<1x128xbf16, #tpu.memory_space<vmem>>, vector<1x128xbf16>
    %374 = arith.extf %373 : vector<1x128xbf16> to vector<1x128xf32>
    %375 = vector.broadcast %374 : vector<1x128xf32> to vector<8x128xf32>
    %376 = arith.addf %372, %375 : vector<8x128xf32>
    %cst_137 = arith.constant 0.000000e+00 : f32
    %377 = vector.broadcast %cst_137 : f32 to vector<8x128xf32>
    %378 = arith.subf %377, %376 : vector<8x128xf32>
    %379 = math.exp %378 : vector<8x128xf32>
    %cst_138 = arith.constant 1.000000e+00 : f32
    %380 = vector.broadcast %cst_138 : f32 to vector<8x128xf32>
    %381 = arith.addf %380, %379 : vector<8x128xf32>
    %382 = tpu.reciprocal %381 {approx = true} : vector<8x128xf32> -> vector<8x128xf32>
    %c0_139 = arith.constant 0 : index
    %c0_140 = arith.constant 0 : index
    %c0_141 = arith.constant 0 : index
    %383 = vector.load %arg32[%c0_139, %c0_140, %c0_141] : memref<1x8x128xf32, #tpu.memory_space<vmem>>, vector<1x8x128xf32>
    %384 = vector.shape_cast %383 : vector<1x8x128xf32> to vector<8x128xf32>
    %385 = vector.shape_cast %382 : vector<8x128xf32> to vector<1x8x128xf32>
    tpu.vector_store %arg32[%c0_139, %c0_140, %c0_141], %385 {strides = array<i32>} : memref<1x8x128xf32, #tpu.memory_space<vmem>>, vector<1x8x128xf32>,
    return
  }
  func.func @transform_0(%arg0: i32) -> (i32, i32, i32) {
    %c0_i32 = arith.constant 0 : i32
    %c0_i32_0 = arith.constant 0 : i32
    %c0_i32_1 = arith.constant 0 : i32
    return %arg0, %c0_i32, %c0_i32_0 : i32, i32, i32
  }
  func.func @transform_1(%arg0: i32) -> (i32, i32, i32) {
    %c0_i32 = arith.constant 0 : i32
    %c0_i32_0 = arith.constant 0 : i32
    %c0_i32_1 = arith.constant 0 : i32
    return %arg0, %c0_i32, %c0_i32_0 : i32, i32, i32
  }
  func.func @transform_2(%arg0: i32) -> (i32, i32) {
    %c0_i32 = arith.constant 0 : i32
    %c0_i32_0 = arith.constant 0 : i32
    %c0_i32_1 = arith.constant 0 : i32
    return %c0_i32, %c0_i32_0 : i32, i32
  }
  func.func @transform_3(%arg0: i32) -> (i32, i32) {
    %c0_i32 = arith.constant 0 : i32
    %c0_i32_0 = arith.constant 0 : i32
    %c0_i32_1 = arith.constant 0 : i32
    return %c0_i32, %c0_i32_0 : i32, i32
  }
  func.func @transform_4(%arg0: i32) -> (i32, i32) {
    %c0_i32 = arith.constant 0 : i32
    %c0_i32_0 = arith.constant 0 : i32
    %c0_i32_1 = arith.constant 0 : i32
    return %c0_i32, %c0_i32_0 : i32, i32
  }
  func.func @transform_5(%arg0: i32) -> (i32, i32) {
    %c0_i32 = arith.constant 0 : i32
    %c0_i32_0 = arith.constant 0 : i32
    %c0_i32_1 = arith.constant 0 : i32
    return %c0_i32, %c0_i32_0 : i32, i32
  }
  func.func @transform_6(%arg0: i32) -> (i32, i32) {
    %c0_i32 = arith.constant 0 : i32
    %c0_i32_0 = arith.constant 0 : i32
    %c0_i32_1 = arith.constant 0 : i32
    return %c0_i32, %c0_i32_0 : i32, i32
  }
  func.func @transform_7(%arg0: i32) -> (i32, i32) {
    %c0_i32 = arith.constant 0 : i32
    %c0_i32_0 = arith.constant 0 : i32
    %c0_i32_1 = arith.constant 0 : i32
    return %c0_i32, %c0_i32_0 : i32, i32
  }
  func.func @transform_8(%arg0: i32) -> (i32, i32) {
    %c0_i32 = arith.constant 0 : i32
    %c0_i32_0 = arith.constant 0 : i32
    %c0_i32_1 = arith.constant 0 : i32
    return %c0_i32, %c0_i32_0 : i32, i32
  }
  func.func @transform_9(%arg0: i32) -> (i32, i32) {
    %c0_i32 = arith.constant 0 : i32
    %c0_i32_0 = arith.constant 0 : i32
    %c0_i32_1 = arith.constant 0 : i32
    return %c0_i32, %c0_i32_0 : i32, i32
  }
  func.func @transform_10(%arg0: i32) -> (i32, i32) {
    %c0_i32 = arith.constant 0 : i32
    %c0_i32_0 = arith.constant 0 : i32
    %c0_i32_1 = arith.constant 0 : i32
    return %c0_i32, %c0_i32_0 : i32, i32
  }
  func.func @transform_11(%arg0: i32) -> (i32, i32) {
    %c0_i32 = arith.constant 0 : i32
    %c0_i32_0 = arith.constant 0 : i32
    %c0_i32_1 = arith.constant 0 : i32
    return %c0_i32, %c0_i32_0 : i32, i32
  }
  func.func @transform_12(%arg0: i32) -> (i32, i32) {
    %c0_i32 = arith.constant 0 : i32
    %c0_i32_0 = arith.constant 0 : i32
    %c0_i32_1 = arith.constant 0 : i32
    return %c0_i32, %c0_i32_0 : i32, i32
  }
  func.func @transform_13(%arg0: i32) -> (i32, i32) {
    %c0_i32 = arith.constant 0 : i32
    %c0_i32_0 = arith.constant 0 : i32
    %c0_i32_1 = arith.constant 0 : i32
    return %c0_i32, %c0_i32_0 : i32, i32
  }
  func.func @transform_14(%arg0: i32) -> (i32, i32) {
    %c0_i32 = arith.constant 0 : i32
    %c0_i32_0 = arith.constant 0 : i32
    %c0_i32_1 = arith.constant 0 : i32
    return %c0_i32, %c0_i32_0 : i32, i32
  }
  func.func @transform_15(%arg0: i32) -> (i32, i32) {
    %c0_i32 = arith.constant 0 : i32
    %c0_i32_0 = arith.constant 0 : i32
    %c0_i32_1 = arith.constant 0 : i32
    return %c0_i32, %c0_i32_0 : i32, i32
  }
  func.func @transform_16(%arg0: i32) -> (i32, i32) {
    %c0_i32 = arith.constant 0 : i32
    %c0_i32_0 = arith.constant 0 : i32
    %c0_i32_1 = arith.constant 0 : i32
    return %c0_i32, %c0_i32_0 : i32, i32
  }
  func.func @transform_17(%arg0: i32) -> (i32, i32) {
    %c0_i32 = arith.constant 0 : i32
    %c0_i32_0 = arith.constant 0 : i32
    %c0_i32_1 = arith.constant 0 : i32
    return %c0_i32, %c0_i32_0 : i32, i32
  }
  func.func @transform_18(%arg0: i32) -> (i32, i32) {
    %c0_i32 = arith.constant 0 : i32
    %c0_i32_0 = arith.constant 0 : i32
    %c0_i32_1 = arith.constant 0 : i32
    return %c0_i32, %c0_i32_0 : i32, i32
  }
  func.func @transform_19(%arg0: i32) -> (i32, i32) {
    %c0_i32 = arith.constant 0 : i32
    %c0_i32_0 = arith.constant 0 : i32
    %c0_i32_1 = arith.constant 0 : i32
    return %c0_i32, %c0_i32_0 : i32, i32
  }
  func.func @transform_20(%arg0: i32) -> (i32, i32) {
    %c0_i32 = arith.constant 0 : i32
    %c0_i32_0 = arith.constant 0 : i32
    %c0_i32_1 = arith.constant 0 : i32
    return %c0_i32, %c0_i32_0 : i32, i32
  }
  func.func @transform_21(%arg0: i32) -> (i32, i32) {
    %c0_i32 = arith.constant 0 : i32
    %c0_i32_0 = arith.constant 0 : i32
    %c0_i32_1 = arith.constant 0 : i32
    return %c0_i32, %c0_i32_0 : i32, i32
  }
  func.func @transform_22(%arg0: i32) -> (i32, i32) {
    %c0_i32 = arith.constant 0 : i32
    %c0_i32_0 = arith.constant 0 : i32
    %c0_i32_1 = arith.constant 0 : i32
    return %c0_i32, %c0_i32_0 : i32, i32
  }
  func.func @transform_23(%arg0: i32) -> (i32, i32) {
    %c0_i32 = arith.constant 0 : i32
    %c0_i32_0 = arith.constant 0 : i32
    %c0_i32_1 = arith.constant 0 : i32
    return %c0_i32, %c0_i32_0 : i32, i32
  }
  func.func @transform_24(%arg0: i32) -> (i32, i32) {
    %c0_i32 = arith.constant 0 : i32
    %c0_i32_0 = arith.constant 0 : i32
    %c0_i32_1 = arith.constant 0 : i32
    return %c0_i32, %c0_i32_0 : i32, i32
  }
  func.func @transform_25(%arg0: i32) -> (i32, i32) {
    %c0_i32 = arith.constant 0 : i32
    %c0_i32_0 = arith.constant 0 : i32
    %c0_i32_1 = arith.constant 0 : i32
    return %c0_i32, %c0_i32_0 : i32, i32
  }
  func.func @transform_26(%arg0: i32) -> (i32, i32) {
    %c0_i32 = arith.constant 0 : i32
    %c0_i32_0 = arith.constant 0 : i32
    %c0_i32_1 = arith.constant 0 : i32
    return %c0_i32, %c0_i32_0 : i32, i32
  }
  func.func @transform_27(%arg0: i32) -> (i32, i32) {
    %c0_i32 = arith.constant 0 : i32
    %c0_i32_0 = arith.constant 0 : i32
    %c0_i32_1 = arith.constant 0 : i32
    return %c0_i32, %c0_i32_0 : i32, i32
  }
  func.func @transform_28(%arg0: i32) -> (i32, i32) {
    %c0_i32 = arith.constant 0 : i32
    %c0_i32_0 = arith.constant 0 : i32
    %c0_i32_1 = arith.constant 0 : i32
    return %c0_i32, %c0_i32_0 : i32, i32
  }
  func.func @transform_29(%arg0: i32) -> (i32, i32) {
    %c0_i32 = arith.constant 0 : i32
    %c0_i32_0 = arith.constant 0 : i32
    %c0_i32_1 = arith.constant 0 : i32
    return %c0_i32, %c0_i32_0 : i32, i32
  }
  func.func @transform_30(%arg0: i32) -> (i32, i32) {
    %c0_i32 = arith.constant 0 : i32
    %c0_i32_0 = arith.constant 0 : i32
    %c0_i32_1 = arith.constant 0 : i32
    return %c0_i32, %c0_i32_0 : i32, i32
  }
  func.func @transform_31(%arg0: i32) -> (i32, i32, i32) {
    %c0_i32 = arith.constant 0 : i32
    %c0_i32_0 = arith.constant 0 : i32
    %c0_i32_1 = arith.constant 0 : i32
    return %arg0, %c0_i32, %c0_i32_0 : i32, i32, i32
  }
}

</mosaic_0001>

<llo_original>
// kernel: tpu_custom_call.1
$region0: #{tpu_custom_call.1}
  #allocation0 [shape = 'u32[]', space=smem, size = 0x4, offset = 0x4, fixed_abs, tag = 'smem constant byte address 0x4 - core index']
  #allocation1 [shape = 'u32[72,128]{1,0:T(1,128)}', space=vmem, size = 0x9000, scoped, tag = 'internal scratch']
  %s0 = inlined_call_operand.smem [shape: u32[32], index: -1, kind: input, shape index: {}]
  %s1 = sld [smem:[%s0]]
  %s2 = scalar_lea.smem %s0, 1
  %s3 = sld [smem:[%s2]]
  %s4 = scalar_lea.smem %s0, 2
  %s5 = sld [smem:[%s4]]
  %s6 = scalar_lea.smem %s0, 3
  %s7 = sld [smem:[%s6]]
  %s8 = scalar_lea.smem %s0, 4
  %s9 = sld [smem:[%s8]]
  %s10 = scalar_lea.smem %s0, 5
  %s11 = sld [smem:[%s10]]
  %s12 = scalar_lea.smem %s0, 6
  %s13 = sld [smem:[%s12]]
  %s14 = scalar_lea.smem %s0, 7
  %s15 = sld [smem:[%s14]]
  %s16 = scalar_lea.smem %s0, 8
  %s17 = sld [smem:[%s16]]
  %s18 = scalar_lea.smem %s0, 9
  %s19 = sld [smem:[%s18]]
  %s20 = scalar_lea.smem %s0, 10
  %s21 = sld [smem:[%s20]]
  %s22 = scalar_lea.smem %s0, 11
  %s23 = sld [smem:[%s22]]
  %s24 = scalar_lea.smem %s0, 12
  %s25 = sld [smem:[%s24]]
  %s26 = scalar_lea.smem %s0, 13
  %s27 = sld [smem:[%s26]]
  %s28 = scalar_lea.smem %s0, 14
  %s29 = sld [smem:[%s28]]
  %s30 = scalar_lea.smem %s0, 15
  %s31 = sld [smem:[%s30]]
  %s32 = scalar_lea.smem %s0, 16
  %s33 = sld [smem:[%s32]]
  %s34 = scalar_lea.smem %s0, 17
  %s35 = sld [smem:[%s34]]
  %s36 = scalar_lea.smem %s0, 18
  %s37 = sld [smem:[%s36]]
  %s38 = scalar_lea.smem %s0, 19
  %s39 = sld [smem:[%s38]]
  %s40 = scalar_lea.smem %s0, 20
  %s41 = sld [smem:[%s40]]
  %s42 = scalar_lea.smem %s0, 21
  %s43 = sld [smem:[%s42]]
  %s44 = scalar_lea.smem %s0, 22
  %s45 = sld [smem:[%s44]]
  %s46 = scalar_lea.smem %s0, 23
  %s47 = sld [smem:[%s46]]
  %s48 = scalar_lea.smem %s0, 24
  %s49 = sld [smem:[%s48]]
  %s50 = scalar_lea.smem %s0, 25
  %s51 = sld [smem:[%s50]]
  %s52 = scalar_lea.smem %s0, 26
  %s53 = sld [smem:[%s52]]
  %s54 = scalar_lea.smem %s0, 27
  %s55 = sld [smem:[%s54]]
  %s56 = scalar_lea.smem %s0, 28
  %s57 = sld [smem:[%s56]]
  %s58 = scalar_lea.smem %s0, 29
  %s59 = sld [smem:[%s58]]
  %s60 = scalar_lea.smem %s0, 30
  %s61 = sld [smem:[%s60]]
  %s62 = scalar_lea.smem %s0, 31
  %s63 = sld [smem:[%s62]]
  %s64 = sld [smem:[#allocation0]]
  $region253: #{tpu_custom_call.1} parent=0
    _
  %s66 = ssub.s32 1, %s64
  %s67 = scalar_select 0, %s66, %s64
  $region1: #{tpu_custom_call.1} parent=0
    #allocation2 [shape = 'u8[1024]{0}', space=vmem, size = 0x400, scoped, tag = 'input window, operand 1']
    #allocation3 [shape = 's32[2]{0}', space=sflag, size = 0x8, scoped, tag = 'scoped memory for tpu_custom_call.1']
    #allocation4 [shape = 's32[2]{0}', space=sflag, size = 0x8, scoped, tag = 'scoped memory for tpu_custom_call.1']
    #allocation5 [shape = 'u8[2048]{0}', space=vmem, size = 0x800, scoped, tag = 'input window, operand 2, single buffered']
    #allocation6 [shape = 's32[1]{0}', space=sflag, size = 0x4, scoped, tag = 'scoped memory for tpu_custom_call.1']
    #allocation7 [shape = 'u8[1024]{0}', space=vmem, size = 0x400, scoped, tag = 'input window, operand 3, single buffered']
    #allocation8 [shape = 'u8[512]{0}', space=vmem, size = 0x400, scoped, tag = 'input window, operand 4, single buffered']
    #allocation9 [shape = 's32[1]{0}', space=sflag, size = 0x4, scoped, tag = 'scoped memory for tpu_custom_call.1']
    #allocation10 [shape = 'u8[512]{0}', space=vmem, size = 0x400, scoped, tag = 'input window, operand 6, single buffered']
    #allocation11 [shape = 'u8[8192]{0}', space=vmem, size = 0x2000, scoped, tag = 'input window, operand 7, single buffered']
    #allocation12 [shape = 's32[1]{0}', space=sflag, size = 0x4, scoped, tag = 'scoped memory for tpu_custom_call.1']
    #allocation13 [shape = 'u8[512]{0}', space=vmem, size = 0x400, scoped, tag = 'input window, operand 8, single buffered']
    #allocation14 [shape = 'u8[512]{0}', space=vmem, size = 0x400, scoped, tag = 'input window, operand 9, single buffered']
    #allocation15 [shape = 's32[1]{0}', space=sflag, size = 0x4, scoped, tag = 'scoped memory for tpu_custom_call.1']
    #allocation16 [shape = 'u8[512]{0}', space=vmem, size = 0x400, scoped, tag = 'input window, operand 10, single buffered']
    #allocation17 [shape = 'u8[512]{0}', space=vmem, size = 0x400, scoped, tag = 'input window, operand 12, single buffered']
    #allocation18 [shape = 's32[1]{0}', space=sflag, size = 0x4, scoped, tag = 'scoped memory for tpu_custom_call.1']
    #allocation19 [shape = 'u8[8192]{0}', space=vmem, size = 0x2000, scoped, tag = 'input window, operand 13, single buffered']
    #allocation20 [shape = 'u8[512]{0}', space=vmem, size = 0x400, scoped, tag = 'input window, operand 14, single buffered']
    #allocation21 [shape = 's32[1]{0}', space=sflag, size = 0x4, scoped, tag = 'scoped memory for tpu_custom_call.1']
    #allocation22 [shape = 'u8[512]{0}', space=vmem, size = 0x400, scoped, tag = 'input window, operand 15, single buffered']
    #allocation23 [shape = 'u8[512]{0}', space=vmem, size = 0x400, scoped, tag = 'input window, operand 16, single buffered']
    #allocation24 [shape = 's32[1]{0}', space=sflag, size = 0x4, scoped, tag = 'scoped memory for tpu_custom_call.1']
    #allocation25 [shape = 'u8[8192]{0}', space=vmem, size = 0x2000, scoped, tag = 'input window, operand 17, single buffered']
    #allocation26 [shape = 'u8[512]{0}', space=vmem, size = 0x400, scoped, tag = 'input window, operand 18, single buffered']
    #allocation27 [shape = 's32[1]{0}', space=sflag, size = 0x4, scoped, tag = 'scoped memory for tpu_custom_call.1']
    #allocation28 [shape = 'u8[8192]{0}', space=vmem, size = 0x2000, scoped, tag = 'input window, operand 19, single buffered']
    #allocation29 [shape = 'u8[512]{0}', space=vmem, size = 0x400, scoped, tag = 'input window, operand 20, single buffered']
    #allocation30 [shape = 's32[1]{0}', space=sflag, size = 0x4, scoped, tag = 'scoped memory for tpu_custom_call.1']
    #allocation31 [shape = 'u8[512]{0}', space=vmem, size = 0x400, scoped, tag = 'input window, operand 21, single buffered']
    #allocation32 [shape = 'u8[512]{0}', space=vmem, size = 0x400, scoped, tag = 'input window, operand 22, single buffered']
    #allocation33 [shape = 's32[1]{0}', space=sflag, size = 0x4, scoped, tag = 'scoped memory for tpu_custom_call.1']
    #allocation34 [shape = 'u8[8192]{0}', space=vmem, size = 0x2000, scoped, tag = 'input window, operand 23, single buffered']
    #allocation35 [shape = 'u8[512]{0}', space=vmem, size = 0x400, scoped, tag = 'input window, operand 24, single buffered']
    #allocation36 [shape = 's32[1]{0}', space=sflag, size = 0x4, scoped, tag = 'scoped memory for tpu_custom_call.1']
    #allocation37 [shape = 'u8[512]{0}', space=vmem, size = 0x400, scoped, tag = 'input window, operand 26, single buffered']
    #allocation38 [shape = 'u8[8192]{0}', space=vmem, size = 0x2000, scoped, tag = 'input window, operand 29, single buffered']
    #allocation39 [shape = 's32[1]{0}', space=sflag, size = 0x4, scoped, tag = 'scoped memory for tpu_custom_call.1']
    #allocation40 [shape = 'u8[8192]{0}', space=vmem, size = 0x2000, scoped, tag = 'output window, operand 0']
    %68 = vsyncpa [#allocation3], 0
    %s69 = scalar_lea.sflag [#allocation3], 1
    %70 = vsyncpa %s69, 0
    %71 = vsyncpa [#allocation6], 0
    %72 = vsyncpa [#allocation9], 0
    %73 = vsyncpa [#allocation12], 0
    %74 = vsyncpa [#allocation15], 0
    %75 = vsyncpa [#allocation18], 0
    %76 = vsyncpa [#allocation21], 0
    %77 = vsyncpa [#allocation24], 0
    %78 = vsyncpa [#allocation27], 0
    %79 = vsyncpa [#allocation30], 0
    %80 = vsyncpa [#allocation33], 0
    %81 = vsyncpa [#allocation36], 0
    %82 = vsyncpa [#allocation39], 0
    %83 = vsyncpa [#allocation4], 0
    %s84 = scalar_lea.sflag [#allocation4], 1
    %85 = vsyncpa %s84, 0
    loop: start=0, step=1, limit=4
    $region2: #{tpu_custom_call.1} parent=1 // loop_pre_header
      _
    $region3: #{tpu_custom_call.1} parent=1 // loop_header
      %s87 = sphi 0, %s91
      %p88 = scmp.ge.s32.totalorder %s87, 4
      %s97 = sphi 0, %s99
      %s100 = sphi 0, %s97
      %s101 = sphi 0, %s100
      %s117 = sphi 0, %s101
      %s123 = sphi 0, %s125
      %s126 = sphi 0, %s123
      %s127 = sphi 0, %s126
      %s143 = sphi 0, %s127
      %s147 = sphi 0, %s147
      %s149 = sphi 0, %s147
      %s150 = sphi 0, %s149
      %s164 = sphi 0, %s150
      %s168 = sphi 0, %s168
      %s170 = sphi 0, %s168
      %s171 = sphi 0, %s170
      %s185 = sphi 0, %s171
      %s189 = sphi 0, %s189
      %s191 = sphi 0, %s189
      %s192 = sphi 0, %s191
      %s206 = sphi 0, %s192
      %s210 = sphi 0, %s210
      %s212 = sphi 0, %s210
      %s213 = sphi 0, %s212
      %s227 = sphi 0, %s213
      %s231 = sphi 0, %s231
      %s233 = sphi 0, %s231
      %s234 = sphi 0, %s233
      %s248 = sphi 0, %s234
      %s252 = sphi 0, %s252
      %s254 = sphi 0, %s252
      %s255 = sphi 0, %s254
      %s269 = sphi 0, %s255
      %s273 = sphi 0, %s273
      %s275 = sphi 0, %s273
      %s276 = sphi 0, %s275
      %s290 = sphi 0, %s276
      %s294 = sphi 0, %s294
      %s296 = sphi 0, %s294
      %s297 = sphi 0, %s296
      %s311 = sphi 0, %s297
      %s315 = sphi 0, %s315
      %s317 = sphi 0, %s315
      %s318 = sphi 0, %s317
      %s332 = sphi 0, %s318
      %s336 = sphi 0, %s336
      %s338 = sphi 0, %s336
      %s339 = sphi 0, %s338
      %s353 = sphi 0, %s339
      %s357 = sphi 0, %s357
      %s359 = sphi 0, %s357
      %s360 = sphi 0, %s359
      %s374 = sphi 0, %s360
      %s378 = sphi 0, %s378
      %s380 = sphi 0, %s378
      %s381 = sphi 0, %s380
      %s395 = sphi 0, %s381
      %s399 = sphi 0, %s399
      %s401 = sphi 0, %s399
      %s402 = sphi 0, %s401
      %s416 = sphi 0, %s402
      %s420 = sphi 0, %s420
      %s422 = sphi 0, %s420
      %s423 = sphi 0, %s422
      %s437 = sphi 0, %s423
      %s441 = sphi 0, %s441
      %s443 = sphi 0, %s441
      %s444 = sphi 0, %s443
      %s458 = sphi 0, %s444
      %s462 = sphi 0, %s462
      %s464 = sphi 0, %s462
      %s465 = sphi 0, %s464
      %s479 = sphi 0, %s465
      %s483 = sphi 0, %s483
      %s485 = sphi 0, %s483
      %s486 = sphi 0, %s485
      %s500 = sphi 0, %s486
      %s504 = sphi 0, %s504
      %s506 = sphi 0, %s504
      %s507 = sphi 0, %s506
      %s521 = sphi 0, %s507
      %s525 = sphi 0, %s525
      %s527 = sphi 0, %s525
      %s528 = sphi 0, %s527
      %s542 = sphi 0, %s528
      %s546 = sphi 0, %s546
      %s548 = sphi 0, %s546
      %s549 = sphi 0, %s548
      %s563 = sphi 0, %s549
      %s567 = sphi 0, %s567
      %s569 = sphi 0, %s567
      %s570 = sphi 0, %s569
      %s584 = sphi 0, %s570
      %s588 = sphi 0, %s588
      %s590 = sphi 0, %s588
      %s591 = sphi 0, %s590
      %s605 = sphi 0, %s591
      %s609 = sphi 0, %s609
      %s611 = sphi 0, %s609
      %s612 = sphi 0, %s611
      %s626 = sphi 0, %s612
      %s630 = sphi 0, %s630
      %s632 = sphi 0, %s630
      %s633 = sphi 0, %s632
      %s647 = sphi 0, %s633
      %s651 = sphi 0, %s651
      %s653 = sphi 0, %s651
      %s654 = sphi 0, %s653
      %s668 = sphi 0, %s654
      %s672 = sphi 0, %s672
      %s674 = sphi 0, %s672
      %s675 = sphi 0, %s674
      %s689 = sphi 0, %s675
      %s693 = sphi 0, %s693
      %s695 = sphi 0, %s693
      %s696 = sphi 0, %s695
      %s710 = sphi 0, %s696
      %s714 = sphi 0, %s714
      %s716 = sphi 0, %s714
      %s717 = sphi 0, %s716
      %s731 = sphi 0, %s717
      %s735 = sphi 0, %s735
      %s737 = sphi 0, %s735
      %s738 = sphi 0, %s737
      %s752 = sphi 0, %s738
      %s758 = sphi 0, %s760
      %s761 = sphi 0, %s758
      %s762 = sphi 0, %s761
      %s778 = sphi 0, %s762
    $region4: #{tpu_custom_call.1} parent=1 // loop_header_branch
      %90 = sbr.rel (%p88) target = $region8
    $region5: #{tpu_custom_call.1} parent=1 // loop_body
      %s92 = ssub.s32 %s87, 1
      %s93 = ssub.s32 %s87, 2
      %s94 = sadd.s32 %s87, 1
      %s95 = ssub.s32 %s87, %s94
      %p96 = scmp.eq.s32.totalorder %s95, 0
      %s98 = sadd.s32 %s97, 1
      %s99 = scalar_select %p96, %s97, %s98
      %p102 = pneg %p96
      %p103 = scmp.eq.s32.totalorder %s87, 1
      %p104 = por %p102, %p103
      %p105 = scmp.ne.s32.totalorder %s97, %s100
      %p106 = scmp.eq.s32.totalorder %s87, 0
      %p107 = por %p105, %p106
      %p108 = scmp.ne.s32.totalorder %s97, %s100
      %p109 = scmp.eq.s32.totalorder %s92, 1
      %p110 = por %p108, %p109
      %p111 = scmp.ne.s32.totalorder %s100, %s101
      %p112 = scmp.eq.s32.totalorder %s92, 0
      %p113 = por %p111, %p112
      %p114 = scmp.ne.s32.totalorder %s100, %s101
      %p115 = scmp.eq.s32.totalorder %s93, 1
      %p116 = por %p114, %p115
      %p118 = scmp.ne.s32.totalorder %s101, %s117
      %p119 = scmp.eq.s32.totalorder %s93, 0
      %p120 = por %p118, %p119
      %s121 = ssub.s32 %s87, %s94
      %p122 = scmp.eq.s32.totalorder %s121, 0
      %s124 = sadd.s32 %s123, 1
      %s125 = scalar_select %p122, %s123, %s124
      %p128 = pneg %p122
      %p129 = scmp.eq.s32.totalorder %s87, 1
      %p130 = por %p128, %p129
      %p131 = scmp.ne.s32.totalorder %s123, %s126
      %p132 = scmp.eq.s32.totalorder %s87, 0
      %p133 = por %p131, %p132
      %p134 = scmp.ne.s32.totalorder %s123, %s126
      %p135 = scmp.eq.s32.totalorder %s92, 1
      %p136 = por %p134, %p135
      %p137 = scmp.ne.s32.totalorder %s126, %s127
      %p138 = scmp.eq.s32.totalorder %s92, 0
      %p139 = por %p137, %p138
      %p140 = scmp.ne.s32.totalorder %s126, %s127
      %p141 = scmp.eq.s32.totalorder %s93, 1
      %p142 = por %p140, %p141
      %p144 = scmp.ne.s32.totalorder %s127, %s143
      %p145 = scmp.eq.s32.totalorder %s93, 0
      %p146 = por %p144, %p145
      %s148 = sadd.s32 %s147, 1
      %p151 = scmp.eq.s32.totalorder %s87, 1
      %p152 = scmp.ne.s32.totalorder %s147, %s149
      %p153 = scmp.eq.s32.totalorder %s87, 0
      %p154 = por %p152, %p153
      %p155 = scmp.ne.s32.totalorder %s147, %s149
      %p156 = scmp.eq.s32.totalorder %s92, 1
      %p157 = por %p155, %p156
      %p158 = scmp.ne.s32.totalorder %s149, %s150
      %p159 = scmp.eq.s32.totalorder %s92, 0
      %p160 = por %p158, %p159
      %p161 = scmp.ne.s32.totalorder %s149, %s150
      %p162 = scmp.eq.s32.totalorder %s93, 1
      %p163 = por %p161, %p162
      %p165 = scmp.ne.s32.totalorder %s150, %s164
      %p166 = scmp.eq.s32.totalorder %s93, 0
      %p167 = por %p165, %p166
      %s169 = sadd.s32 %s168, 1
      %p172 = scmp.eq.s32.totalorder %s87, 1
      %p173 = scmp.ne.s32.totalorder %s168, %s170
      %p174 = scmp.eq.s32.totalorder %s87, 0
      %p175 = por %p173, %p174
      %p176 = scmp.ne.s32.totalorder %s168, %s170
      %p177 = scmp.eq.s32.totalorder %s92, 1
      %p178 = por %p176, %p177
      %p179 = scmp.ne.s32.totalorder %s170, %s171
      %p180 = scmp.eq.s32.totalorder %s92, 0
      %p181 = por %p179, %p180
      %p182 = scmp.ne.s32.totalorder %s170, %s171
      %p183 = scmp.eq.s32.totalorder %s93, 1
      %p184 = por %p182, %p183
      %p186 = scmp.ne.s32.totalorder %s171, %s185
      %p187 = scmp.eq.s32.totalorder %s93, 0
      %p188 = por %p186, %p187
      %s190 = sadd.s32 %s189, 1
      %p193 = scmp.eq.s32.totalorder %s87, 1
      %p194 = scmp.ne.s32.totalorder %s189, %s191
      %p195 = scmp.eq.s32.totalorder %s87, 0
      %p196 = por %p194, %p195
      %p197 = scmp.ne.s32.totalorder %s189, %s191
      %p198 = scmp.eq.s32.totalorder %s92, 1
      %p199 = por %p197, %p198
      %p200 = scmp.ne.s32.totalorder %s191, %s192
      %p201 = scmp.eq.s32.totalorder %s92, 0
      %p202 = por %p200, %p201
      %p203 = scmp.ne.s32.totalorder %s191, %s192
      %p204 = scmp.eq.s32.totalorder %s93, 1
      %p205 = por %p203, %p204
      %p207 = scmp.ne.s32.totalorder %s192, %s206
      %p208 = scmp.eq.s32.totalorder %s93, 0
      %p209 = por %p207, %p208
      %s211 = sadd.s32 %s210, 1
      %p214 = scmp.eq.s32.totalorder %s87, 1
      %p215 = scmp.ne.s32.totalorder %s210, %s212
      %p216 = scmp.eq.s32.totalorder %s87, 0
      %p217 = por %p215, %p216
      %p218 = scmp.ne.s32.totalorder %s210, %s212
      %p219 = scmp.eq.s32.totalorder %s92, 1
      %p220 = por %p218, %p219
      %p221 = scmp.ne.s32.totalorder %s212, %s213
      %p222 = scmp.eq.s32.totalorder %s92, 0
      %p223 = por %p221, %p222
      %p224 = scmp.ne.s32.totalorder %s212, %s213
      %p225 = scmp.eq.s32.totalorder %s93, 1
      %p226 = por %p224, %p225
      %p228 = scmp.ne.s32.totalorder %s213, %s227
      %p229 = scmp.eq.s32.totalorder %s93, 0
      %p230 = por %p228, %p229
      %s232 = sadd.s32 %s231, 1
      %p235 = scmp.eq.s32.totalorder %s87, 1
      %p236 = scmp.ne.s32.totalorder %s231, %s233
      %p237 = scmp.eq.s32.totalorder %s87, 0
      %p238 = por %p236, %p237
      %p239 = scmp.ne.s32.totalorder %s231, %s233
      %p240 = scmp.eq.s32.totalorder %s92, 1
      %p241 = por %p239, %p240
      %p242 = scmp.ne.s32.totalorder %s233, %s234
      %p243 = scmp.eq.s32.totalorder %s92, 0
      %p244 = por %p242, %p243
      %p245 = scmp.ne.s32.totalorder %s233, %s234
      %p246 = scmp.eq.s32.totalorder %s93, 1
      %p247 = por %p245, %p246
      %p249 = scmp.ne.s32.totalorder %s234, %s248
      %p250 = scmp.eq.s32.totalorder %s93, 0
      %p251 = por %p249, %p250
      %s253 = sadd.s32 %s252, 1
      %p256 = scmp.eq.s32.totalorder %s87, 1
      %p257 = scmp.ne.s32.totalorder %s252, %s254
      %p258 = scmp.eq.s32.totalorder %s87, 0
      %p259 = por %p257, %p258
      %p260 = scmp.ne.s32.totalorder %s252, %s254
      %p261 = scmp.eq.s32.totalorder %s92, 1
      %p262 = por %p260, %p261
      %p263 = scmp.ne.s32.totalorder %s254, %s255
      %p264 = scmp.eq.s32.totalorder %s92, 0
      %p265 = por %p263, %p264
      %p266 = scmp.ne.s32.totalorder %s254, %s255
      %p267 = scmp.eq.s32.totalorder %s93, 1
      %p268 = por %p266, %p267
      %p270 = scmp.ne.s32.totalorder %s255, %s269
      %p271 = scmp.eq.s32.totalorder %s93, 0
      %p272 = por %p270, %p271
      %s274 = sadd.s32 %s273, 1
      %p277 = scmp.eq.s32.totalorder %s87, 1
      %p278 = scmp.ne.s32.totalorder %s273, %s275
      %p279 = scmp.eq.s32.totalorder %s87, 0
      %p280 = por %p278, %p279
      %p281 = scmp.ne.s32.totalorder %s273, %s275
      %p282 = scmp.eq.s32.totalorder %s92, 1
      %p283 = por %p281, %p282
      %p284 = scmp.ne.s32.totalorder %s275, %s276
      %p285 = scmp.eq.s32.totalorder %s92, 0
      %p286 = por %p284, %p285
      %p287 = scmp.ne.s32.totalorder %s275, %s276
      %p288 = scmp.eq.s32.totalorder %s93, 1
      %p289 = por %p287, %p288
      %p291 = scmp.ne.s32.totalorder %s276, %s290
      %p292 = scmp.eq.s32.totalorder %s93, 0
      %p293 = por %p291, %p292
      %s295 = sadd.s32 %s294, 1
      %p298 = scmp.eq.s32.totalorder %s87, 1
      %p299 = scmp.ne.s32.totalorder %s294, %s296
      %p300 = scmp.eq.s32.totalorder %s87, 0
      %p301 = por %p299, %p300
      %p302 = scmp.ne.s32.totalorder %s294, %s296
      %p303 = scmp.eq.s32.totalorder %s92, 1
      %p304 = por %p302, %p303
      %p305 = scmp.ne.s32.totalorder %s296, %s297
      %p306 = scmp.eq.s32.totalorder %s92, 0
      %p307 = por %p305, %p306
      %p308 = scmp.ne.s32.totalorder %s296, %s297
      %p309 = scmp.eq.s32.totalorder %s93, 1
      %p310 = por %p308, %p309
      %p312 = scmp.ne.s32.totalorder %s297, %s311
      %p313 = scmp.eq.s32.totalorder %s93, 0
      %p314 = por %p312, %p313
      %s316 = sadd.s32 %s315, 1
      %p319 = scmp.eq.s32.totalorder %s87, 1
      %p320 = scmp.ne.s32.totalorder %s315, %s317
      %p321 = scmp.eq.s32.totalorder %s87, 0
      %p322 = por %p320, %p321
      %p323 = scmp.ne.s32.totalorder %s315, %s317
      %p324 = scmp.eq.s32.totalorder %s92, 1
      %p325 = por %p323, %p324
      %p326 = scmp.ne.s32.totalorder %s317, %s318
      %p327 = scmp.eq.s32.totalorder %s92, 0
      %p328 = por %p326, %p327
      %p329 = scmp.ne.s32.totalorder %s317, %s318
      %p330 = scmp.eq.s32.totalorder %s93, 1
      %p331 = por %p329, %p330
      %p333 = scmp.ne.s32.totalorder %s318, %s332
      %p334 = scmp.eq.s32.totalorder %s93, 0
      %p335 = por %p333, %p334
      %s337 = sadd.s32 %s336, 1
      %p340 = scmp.eq.s32.totalorder %s87, 1
      %p341 = scmp.ne.s32.totalorder %s336, %s338
      %p342 = scmp.eq.s32.totalorder %s87, 0
      %p343 = por %p341, %p342
      %p344 = scmp.ne.s32.totalorder %s336, %s338
      %p345 = scmp.eq.s32.totalorder %s92, 1
      %p346 = por %p344, %p345
      %p347 = scmp.ne.s32.totalorder %s338, %s339
      %p348 = scmp.eq.s32.totalorder %s92, 0
      %p349 = por %p347, %p348
      %p350 = scmp.ne.s32.totalorder %s338, %s339
      %p351 = scmp.eq.s32.totalorder %s93, 1
      %p352 = por %p350, %p351
      %p354 = scmp.ne.s32.totalorder %s339, %s353
      %p355 = scmp.eq.s32.totalorder %s93, 0
      %p356 = por %p354, %p355
      %s358 = sadd.s32 %s357, 1
      %p361 = scmp.eq.s32.totalorder %s87, 1
      %p362 = scmp.ne.s32.totalorder %s357, %s359
      %p363 = scmp.eq.s32.totalorder %s87, 0
      %p364 = por %p362, %p363
      %p365 = scmp.ne.s32.totalorder %s357, %s359
      %p366 = scmp.eq.s32.totalorder %s92, 1
      %p367 = por %p365, %p366
      %p368 = scmp.ne.s32.totalorder %s359, %s360
      %p369 = scmp.eq.s32.totalorder %s92, 0
      %p370 = por %p368, %p369
      %p371 = scmp.ne.s32.totalorder %s359, %s360
      %p372 = scmp.eq.s32.totalorder %s93, 1
      %p373 = por %p371, %p372
      %p375 = scmp.ne.s32.totalorder %s360, %s374
      %p376 = scmp.eq.s32.totalorder %s93, 0
      %p377 = por %p375, %p376
      %s379 = sadd.s32 %s378, 1
      %p382 = scmp.eq.s32.totalorder %s87, 1
      %p383 = scmp.ne.s32.totalorder %s378, %s380
      %p384 = scmp.eq.s32.totalorder %s87, 0
      %p385 = por %p383, %p384
      %p386 = scmp.ne.s32.totalorder %s378, %s380
      %p387 = scmp.eq.s32.totalorder %s92, 1
      %p388 = por %p386, %p387
      %p389 = scmp.ne.s32.totalorder %s380, %s381
      %p390 = scmp.eq.s32.totalorder %s92, 0
      %p391 = por %p389, %p390
      %p392 = scmp.ne.s32.totalorder %s380, %s381
      %p393 = scmp.eq.s32.totalorder %s93, 1
      %p394 = por %p392, %p393
      %p396 = scmp.ne.s32.totalorder %s381, %s395
      %p397 = scmp.eq.s32.totalorder %s93, 0
      %p398 = por %p396, %p397
      %s400 = sadd.s32 %s399, 1
      %p403 = scmp.eq.s32.totalorder %s87, 1
      %p404 = scmp.ne.s32.totalorder %s399, %s401
      %p405 = scmp.eq.s32.totalorder %s87, 0
      %p406 = por %p404, %p405
      %p407 = scmp.ne.s32.totalorder %s399, %s401
      %p408 = scmp.eq.s32.totalorder %s92, 1
      %p409 = por %p407, %p408
      %p410 = scmp.ne.s32.totalorder %s401, %s402
      %p411 = scmp.eq.s32.totalorder %s92, 0
      %p412 = por %p410, %p411
      %p413 = scmp.ne.s32.totalorder %s401, %s402
      %p414 = scmp.eq.s32.totalorder %s93, 1
      %p415 = por %p413, %p414
      %p417 = scmp.ne.s32.totalorder %s402, %s416
      %p418 = scmp.eq.s32.totalorder %s93, 0
      %p419 = por %p417, %p418
      %s421 = sadd.s32 %s420, 1
      %p424 = scmp.eq.s32.totalorder %s87, 1
      %p425 = scmp.ne.s32.totalorder %s420, %s422
      %p426 = scmp.eq.s32.totalorder %s87, 0
      %p427 = por %p425, %p426
      %p428 = scmp.ne.s32.totalorder %s420, %s422
      %p429 = scmp.eq.s32.totalorder %s92, 1
      %p430 = por %p428, %p429
      %p431 = scmp.ne.s32.totalorder %s422, %s423
      %p432 = scmp.eq.s32.totalorder %s92, 0
      %p433 = por %p431, %p432
      %p434 = scmp.ne.s32.totalorder %s422, %s423
      %p435 = scmp.eq.s32.totalorder %s93, 1
      %p436 = por %p434, %p435
      %p438 = scmp.ne.s32.totalorder %s423, %s437
      %p439 = scmp.eq.s32.totalorder %s93, 0
      %p440 = por %p438, %p439
      %s442 = sadd.s32 %s441, 1
      %p445 = scmp.eq.s32.totalorder %s87, 1
      %p446 = scmp.ne.s32.totalorder %s441, %s443
      %p447 = scmp.eq.s32.totalorder %s87, 0
      %p448 = por %p446, %p447
      %p449 = scmp.ne.s32.totalorder %s441, %s443
      %p450 = scmp.eq.s32.totalorder %s92, 1
      %p451 = por %p449, %p450
      %p452 = scmp.ne.s32.totalorder %s443, %s444
      %p453 = scmp.eq.s32.totalorder %s92, 0
      %p454 = por %p452, %p453
      %p455 = scmp.ne.s32.totalorder %s443, %s444
      %p456 = scmp.eq.s32.totalorder %s93, 1
      %p457 = por %p455, %p456
      %p459 = scmp.ne.s32.totalorder %s444, %s458
      %p460 = scmp.eq.s32.totalorder %s93, 0
      %p461 = por %p459, %p460
      %s463 = sadd.s32 %s462, 1
      %p466 = scmp.eq.s32.totalorder %s87, 1
      %p467 = scmp.ne.s32.totalorder %s462, %s464
      %p468 = scmp.eq.s32.totalorder %s87, 0
      %p469 = por %p467, %p468
      %p470 = scmp.ne.s32.totalorder %s462, %s464
      %p471 = scmp.eq.s32.totalorder %s92, 1
      %p472 = por %p470, %p471
      %p473 = scmp.ne.s32.totalorder %s464, %s465
      %p474 = scmp.eq.s32.totalorder %s92, 0
      %p475 = por %p473, %p474
      %p476 = scmp.ne.s32.totalorder %s464, %s465
      %p477 = scmp.eq.s32.totalorder %s93, 1
      %p478 = por %p476, %p477
      %p480 = scmp.ne.s32.totalorder %s465, %s479
      %p481 = scmp.eq.s32.totalorder %s93, 0
      %p482 = por %p480, %p481
      %s484 = sadd.s32 %s483, 1
      %p487 = scmp.eq.s32.totalorder %s87, 1
      %p488 = scmp.ne.s32.totalorder %s483, %s485
      %p489 = scmp.eq.s32.totalorder %s87, 0
      %p490 = por %p488, %p489
      %p491 = scmp.ne.s32.totalorder %s483, %s485
      %p492 = scmp.eq.s32.totalorder %s92, 1
      %p493 = por %p491, %p492
      %p494 = scmp.ne.s32.totalorder %s485, %s486
      %p495 = scmp.eq.s32.totalorder %s92, 0
      %p496 = por %p494, %p495
      %p497 = scmp.ne.s32.totalorder %s485, %s486
      %p498 = scmp.eq.s32.totalorder %s93, 1
      %p499 = por %p497, %p498
      %p501 = scmp.ne.s32.totalorder %s486, %s500
      %p502 = scmp.eq.s32.totalorder %s93, 0
      %p503 = por %p501, %p502
      %s505 = sadd.s32 %s504, 1
      %p508 = scmp.eq.s32.totalorder %s87, 1
      %p509 = scmp.ne.s32.totalorder %s504, %s506
      %p510 = scmp.eq.s32.totalorder %s87, 0
      %p511 = por %p509, %p510
      %p512 = scmp.ne.s32.totalorder %s504, %s506
      %p513 = scmp.eq.s32.totalorder %s92, 1
      %p514 = por %p512, %p513
      %p515 = scmp.ne.s32.totalorder %s506, %s507
      %p516 = scmp.eq.s32.totalorder %s92, 0
      %p517 = por %p515, %p516
      %p518 = scmp.ne.s32.totalorder %s506, %s507
      %p519 = scmp.eq.s32.totalorder %s93, 1
      %p520 = por %p518, %p519
      %p522 = scmp.ne.s32.totalorder %s507, %s521
      %p523 = scmp.eq.s32.totalorder %s93, 0
      %p524 = por %p522, %p523
      %s526 = sadd.s32 %s525, 1
      %p529 = scmp.eq.s32.totalorder %s87, 1
      %p530 = scmp.ne.s32.totalorder %s525, %s527
      %p531 = scmp.eq.s32.totalorder %s87, 0
      %p532 = por %p530, %p531
      %p533 = scmp.ne.s32.totalorder %s525, %s527
      %p534 = scmp.eq.s32.totalorder %s92, 1
      %p535 = por %p533, %p534
      %p536 = scmp.ne.s32.totalorder %s527, %s528
      %p537 = scmp.eq.s32.totalorder %s92, 0
      %p538 = por %p536, %p537
      %p539 = scmp.ne.s32.totalorder %s527, %s528
      %p540 = scmp.eq.s32.totalorder %s93, 1
      %p541 = por %p539, %p540
      %p543 = scmp.ne.s32.totalorder %s528, %s542
      %p544 = scmp.eq.s32.totalorder %s93, 0
      %p545 = por %p543, %p544
      %s547 = sadd.s32 %s546, 1
      %p550 = scmp.eq.s32.totalorder %s87, 1
      %p551 = scmp.ne.s32.totalorder %s546, %s548
      %p552 = scmp.eq.s32.totalorder %s87, 0
      %p553 = por %p551, %p552
      %p554 = scmp.ne.s32.totalorder %s546, %s548
      %p555 = scmp.eq.s32.totalorder %s92, 1
      %p556 = por %p554, %p555
      %p557 = scmp.ne.s32.totalorder %s548, %s549
      %p558 = scmp.eq.s32.totalorder %s92, 0
      %p559 = por %p557, %p558
      %p560 = scmp.ne.s32.totalorder %s548, %s549
      %p561 = scmp.eq.s32.totalorder %s93, 1
      %p562 = por %p560, %p561
      %p564 = scmp.ne.s32.totalorder %s549, %s563
      %p565 = scmp.eq.s32.totalorder %s93, 0
      %p566 = por %p564, %p565
      %s568 = sadd.s32 %s567, 1
      %p571 = scmp.eq.s32.totalorder %s87, 1
      %p572 = scmp.ne.s32.totalorder %s567, %s569
      %p573 = scmp.eq.s32.totalorder %s87, 0
      %p574 = por %p572, %p573
      %p575 = scmp.ne.s32.totalorder %s567, %s569
      %p576 = scmp.eq.s32.totalorder %s92, 1
      %p577 = por %p575, %p576
      %p578 = scmp.ne.s32.totalorder %s569, %s570
      %p579 = scmp.eq.s32.totalorder %s92, 0
      %p580 = por %p578, %p579
      %p581 = scmp.ne.s32.totalorder %s569, %s570
      %p582 = scmp.eq.s32.totalorder %s93, 1
      %p583 = por %p581, %p582
      %p585 = scmp.ne.s32.totalorder %s570, %s584
      %p586 = scmp.eq.s32.totalorder %s93, 0
      %p587 = por %p585, %p586
      %s589 = sadd.s32 %s588, 1
      %p592 = scmp.eq.s32.totalorder %s87, 1
      %p593 = scmp.ne.s32.totalorder %s588, %s590
      %p594 = scmp.eq.s32.totalorder %s87, 0
      %p595 = por %p593, %p594
      %p596 = scmp.ne.s32.totalorder %s588, %s590
      %p597 = scmp.eq.s32.totalorder %s92, 1
      %p598 = por %p596, %p597
      %p599 = scmp.ne.s32.totalorder %s590, %s591
      %p600 = scmp.eq.s32.totalorder %s92, 0
      %p601 = por %p599, %p600
      %p602 = scmp.ne.s32.totalorder %s590, %s591
      %p603 = scmp.eq.s32.totalorder %s93, 1
      %p604 = por %p602, %p603
      %p606 = scmp.ne.s32.totalorder %s591, %s605
      %p607 = scmp.eq.s32.totalorder %s93, 0
      %p608 = por %p606, %p607
      %s610 = sadd.s32 %s609, 1
      %p613 = scmp.eq.s32.totalorder %s87, 1
      %p614 = scmp.ne.s32.totalorder %s609, %s611
      %p615 = scmp.eq.s32.totalorder %s87, 0
      %p616 = por %p614, %p615
      %p617 = scmp.ne.s32.totalorder %s609, %s611
      %p618 = scmp.eq.s32.totalorder %s92, 1
      %p619 = por %p617, %p618
      %p620 = scmp.ne.s32.totalorder %s611, %s612
      %p621 = scmp.eq.s32.totalorder %s92, 0
      %p622 = por %p620, %p621
      %p623 = scmp.ne.s32.totalorder %s611, %s612
      %p624 = scmp.eq.s32.totalorder %s93, 1
      %p625 = por %p623, %p624
      %p627 = scmp.ne.s32.totalorder %s612, %s626
      %p628 = scmp.eq.s32.totalorder %s93, 0
      %p629 = por %p627, %p628
      %s631 = sadd.s32 %s630, 1
      %p634 = scmp.eq.s32.totalorder %s87, 1
      %p635 = scmp.ne.s32.totalorder %s630, %s632
      %p636 = scmp.eq.s32.totalorder %s87, 0
      %p637 = por %p635, %p636
      %p638 = scmp.ne.s32.totalorder %s630, %s632
      %p639 = scmp.eq.s32.totalorder %s92, 1
      %p640 = por %p638, %p639
      %p641 = scmp.ne.s32.totalorder %s632, %s633
      %p642 = scmp.eq.s32.totalorder %s92, 0
      %p643 = por %p641, %p642
      %p644 = scmp.ne.s32.totalorder %s632, %s633
      %p645 = scmp.eq.s32.totalorder %s93, 1
      %p646 = por %p644, %p645
      %p648 = scmp.ne.s32.totalorder %s633, %s647
      %p649 = scmp.eq.s32.totalorder %s93, 0
      %p650 = por %p648, %p649
      %s652 = sadd.s32 %s651, 1
      %p655 = scmp.eq.s32.totalorder %s87, 1
      %p656 = scmp.ne.s32.totalorder %s651, %s653
      %p657 = scmp.eq.s32.totalorder %s87, 0
      %p658 = por %p656, %p657
      %p659 = scmp.ne.s32.totalorder %s651, %s653
      %p660 = scmp.eq.s32.totalorder %s92, 1
      %p661 = por %p659, %p660
      %p662 = scmp.ne.s32.totalorder %s653, %s654
      %p663 = scmp.eq.s32.totalorder %s92, 0
      %p664 = por %p662, %p663
      %p665 = scmp.ne.s32.totalorder %s653, %s654
      %p666 = scmp.eq.s32.totalorder %s93, 1
      %p667 = por %p665, %p666
      %p669 = scmp.ne.s32.totalorder %s654, %s668
      %p670 = scmp.eq.s32.totalorder %s93, 0
      %p671 = por %p669, %p670
      %s673 = sadd.s32 %s672, 1
      %p676 = scmp.eq.s32.totalorder %s87, 1
      %p677 = scmp.ne.s32.totalorder %s672, %s674
      %p678 = scmp.eq.s32.totalorder %s87, 0
      %p679 = por %p677, %p678
      %p680 = scmp.ne.s32.totalorder %s672, %s674
      %p681 = scmp.eq.s32.totalorder %s92, 1
      %p682 = por %p680, %p681
      %p683 = scmp.ne.s32.totalorder %s674, %s675
      %p684 = scmp.eq.s32.totalorder %s92, 0
      %p685 = por %p683, %p684
      %p686 = scmp.ne.s32.totalorder %s674, %s675
      %p687 = scmp.eq.s32.totalorder %s93, 1
      %p688 = por %p686, %p687
      %p690 = scmp.ne.s32.totalorder %s675, %s689
      %p691 = scmp.eq.s32.totalorder %s93, 0
      %p692 = por %p690, %p691
      %s694 = sadd.s32 %s693, 1
      %p697 = scmp.eq.s32.totalorder %s87, 1
      %p698 = scmp.ne.s32.totalorder %s693, %s695
      %p699 = scmp.eq.s32.totalorder %s87, 0
      %p700 = por %p698, %p699
      %p701 = scmp.ne.s32.totalorder %s693, %s695
      %p702 = scmp.eq.s32.totalorder %s92, 1
      %p703 = por %p701, %p702
      %p704 = scmp.ne.s32.totalorder %s695, %s696
      %p705 = scmp.eq.s32.totalorder %s92, 0
      %p706 = por %p704, %p705
      %p707 = scmp.ne.s32.totalorder %s695, %s696
      %p708 = scmp.eq.s32.totalorder %s93, 1
      %p709 = por %p707, %p708
      %p711 = scmp.ne.s32.totalorder %s696, %s710
      %p712 = scmp.eq.s32.totalorder %s93, 0
      %p713 = por %p711, %p712
      %s715 = sadd.s32 %s714, 1
      %p718 = scmp.eq.s32.totalorder %s87, 1
      %p719 = scmp.ne.s32.totalorder %s714, %s716
      %p720 = scmp.eq.s32.totalorder %s87, 0
      %p721 = por %p719, %p720
      %p722 = scmp.ne.s32.totalorder %s714, %s716
      %p723 = scmp.eq.s32.totalorder %s92, 1
      %p724 = por %p722, %p723
      %p725 = scmp.ne.s32.totalorder %s716, %s717
      %p726 = scmp.eq.s32.totalorder %s92, 0
      %p727 = por %p725, %p726
      %p728 = scmp.ne.s32.totalorder %s716, %s717
      %p729 = scmp.eq.s32.totalorder %s93, 1
      %p730 = por %p728, %p729
      %p732 = scmp.ne.s32.totalorder %s717, %s731
      %p733 = scmp.eq.s32.totalorder %s93, 0
      %p734 = por %p732, %p733
      %s736 = sadd.s32 %s735, 1
      %p739 = scmp.eq.s32.totalorder %s87, 1
      %p740 = scmp.ne.s32.totalorder %s735, %s737
      %p741 = scmp.eq.s32.totalorder %s87, 0
      %p742 = por %p740, %p741
      %p743 = scmp.ne.s32.totalorder %s735, %s737
      %p744 = scmp.eq.s32.totalorder %s92, 1
      %p745 = por %p743, %p744
      %p746 = scmp.ne.s32.totalorder %s737, %s738
      %p747 = scmp.eq.s32.totalorder %s92, 0
      %p748 = por %p746, %p747
      %p749 = scmp.ne.s32.totalorder %s737, %s738
      %p750 = scmp.eq.s32.totalorder %s93, 1
      %p751 = por %p749, %p750
      %p753 = scmp.ne.s32.totalorder %s738, %s752
      %p754 = scmp.eq.s32.totalorder %s93, 0
      %p755 = por %p753, %p754
      %s756 = ssub.s32 %s87, %s94
      %p757 = scmp.eq.s32.totalorder %s756, 0
      %s759 = sadd.s32 %s758, 1
      %s760 = scalar_select %p757, %s758, %s759
      %p763 = pneg %p757
      %p764 = scmp.eq.s32.totalorder %s87, 1
      %p765 = por %p763, %p764
      %p766 = scmp.ne.s32.totalorder %s758, %s761
      %p767 = scmp.eq.s32.totalorder %s87, 0
      %p768 = por %p766, %p767
      %p769 = scmp.ne.s32.totalorder %s758, %s761
      %p770 = scmp.eq.s32.totalorder %s92, 1
      %p771 = por %p769, %p770
      %p772 = scmp.ne.s32.totalorder %s761, %s762
      %p773 = scmp.eq.s32.totalorder %s92, 0
      %p774 = por %p772, %p773
      %p775 = scmp.ne.s32.totalorder %s761, %s762
      %p776 = scmp.eq.s32.totalorder %s93, 1
      %p777 = por %p775, %p776
      %p779 = scmp.ne.s32.totalorder %s762, %s778
      %p780 = scmp.eq.s32.totalorder %s93, 0
      %p781 = por %p779, %p780
      %p782 = scmp.le.s32.totalorder 1, %s87
      %p783 = scmp.lt.s32.totalorder %s87, 3
      %p784 = pnand %p782, %p783
      %p785 = pneg %p784
      // Predicated region
      $region9: #{tpu_custom_call.1} parent=5 // pred_check
        _
      $region10: #{tpu_custom_call.1} parent=5 // pred_check_branch
        %787 = sbr.rel (%p784) target = $region12
      $region11: #{tpu_custom_call.1} parent=5 // pred_region
        %s788 = ssub.s32 %s87, 1
        // Predicated region
        $region13: #{tpu_custom_call.1} parent=11 // pred_check
          %p789 = pneg %p160
        $region14: #{tpu_custom_call.1} parent=11 // pred_check_branch
          %791 = sbr.rel (%p789) target = $region16
        $region15: #{tpu_custom_call.1} parent=11 // pred_region
          %793 = vsyncadd [#allocation6], 0
          %s795 = sshll.u32 %s5, 4
          %s796 = int_to_ptr.hbm [resolvable:$true] %s795
          %s797 = sshll.u32 [#allocation5], 4
          %s798 = int_to_ptr.vmem [resolvable:$true] %s797
          %800 = dma.hbm_to_vmem [thread:$0]  %s796, 64, %s798, [#allocation6]
        $region16: #{tpu_custom_call.1} parent=11 // pred_fallthru
          _
        // Predicated region
        $region17: #{tpu_custom_call.1} parent=11 // pred_check
          %p801 = pneg %p181
        $region18: #{tpu_custom_call.1} parent=11 // pred_check_branch
          %803 = sbr.rel (%p801) target = $region20
        $region19: #{tpu_custom_call.1} parent=11 // pred_region
          %805 = vsyncadd [#allocation6], 0
          %s807 = sshll.u32 %s7, 4
          %s808 = int_to_ptr.hbm [resolvable:$true] %s807
          %s809 = sshll.u32 [#allocation7], 4
          %s810 = int_to_ptr.vmem [resolvable:$true] %s809
          %812 = dma.hbm_to_vmem [thread:$0]  %s808, 32, %s810, [#allocation6]
        $region20: #{tpu_custom_call.1} parent=11 // pred_fallthru
          _
        // Predicated region
        $region21: #{tpu_custom_call.1} parent=11 // pred_check
          %p813 = pneg %p202
        $region22: #{tpu_custom_call.1} parent=11 // pred_check_branch
          %815 = sbr.rel (%p813) target = $region24
        $region23: #{tpu_custom_call.1} parent=11 // pred_region
          %817 = vsyncadd [#allocation9], 0
          %s819 = sshll.u32 %s9, 4
          %s820 = int_to_ptr.hbm [resolvable:$true] %s819
          %s821 = sshll.u32 [#allocation8], 4
          %s822 = int_to_ptr.vmem [resolvable:$true] %s821
          %824 = dma.hbm_to_vmem [thread:$0]  %s820, 16, %s822, [#allocation9]
        $region24: #{tpu_custom_call.1} parent=11 // pred_fallthru
          _
        // Predicated region
        $region25: #{tpu_custom_call.1} parent=11 // pred_check
          %p825 = pneg %p223
        $region26: #{tpu_custom_call.1} parent=11 // pred_check_branch
          %827 = sbr.rel (%p825) target = $region28
        $region27: #{tpu_custom_call.1} parent=11 // pred_region
          _
        $region28: #{tpu_custom_call.1} parent=11 // pred_fallthru
          _
        // Predicated region
        $region29: #{tpu_custom_call.1} parent=11 // pred_check
          %p828 = pneg %p244
        $region30: #{tpu_custom_call.1} parent=11 // pred_check_branch
          %830 = sbr.rel (%p828) target = $region32
        $region31: #{tpu_custom_call.1} parent=11 // pred_region
          %832 = vsyncadd [#allocation9], 0
          %s834 = sshll.u32 %s13, 4
          %s835 = int_to_ptr.hbm [resolvable:$true] %s834
          %s836 = sshll.u32 [#allocation10], 4
          %s837 = int_to_ptr.vmem [resolvable:$true] %s836
          %839 = dma.hbm_to_vmem [thread:$0]  %s835, 16, %s837, [#allocation9]
        $region32: #{tpu_custom_call.1} parent=11 // pred_fallthru
          _
        // Predicated region
        $region33: #{tpu_custom_call.1} parent=11 // pred_check
          %p840 = pneg %p265
        $region34: #{tpu_custom_call.1} parent=11 // pred_check_branch
          %842 = sbr.rel (%p840) target = $region36
        $region35: #{tpu_custom_call.1} parent=11 // pred_region
          %844 = vsyncadd [#allocation12], 0
          %s845 = sshll.u32 %s15, 4
          %s846 = int_to_ptr.hbm [resolvable:$true] %s845
          %s847 = sshll.u32 [#allocation11], 4
          %s848 = int_to_ptr.vmem [resolvable:$true] %s847
          %853 = dma.hbm_to_vmem [thread:$0]  %s846, 256, %s848, [#allocation12], 64, 64, 4
        $region36: #{tpu_custom_call.1} parent=11 // pred_fallthru
          _
        // Predicated region
        $region37: #{tpu_custom_call.1} parent=11 // pred_check
          %p854 = pneg %p286
        $region38: #{tpu_custom_call.1} parent=11 // pred_check_branch
          %856 = sbr.rel (%p854) target = $region40
        $region39: #{tpu_custom_call.1} parent=11 // pred_region
          %858 = vsyncadd [#allocation12], 0
          %s860 = sshll.u32 %s17, 4
          %s861 = int_to_ptr.hbm [resolvable:$true] %s860
          %s862 = sshll.u32 [#allocation13], 4
          %s863 = int_to_ptr.vmem [resolvable:$true] %s862
          %865 = dma.hbm_to_vmem [thread:$0]  %s861, 16, %s863, [#allocation12]
        $region40: #{tpu_custom_call.1} parent=11 // pred_fallthru
          _
        // Predicated region
        $region41: #{tpu_custom_call.1} parent=11 // pred_check
          %p866 = pneg %p307
        $region42: #{tpu_custom_call.1} parent=11 // pred_check_branch
          %868 = sbr.rel (%p866) target = $region44
        $region43: #{tpu_custom_call.1} parent=11 // pred_region
          %870 = vsyncadd [#allocation15], 0
          %s872 = sshll.u32 %s19, 4
          %s873 = int_to_ptr.hbm [resolvable:$true] %s872
          %s874 = sshll.u32 [#allocation14], 4
          %s875 = int_to_ptr.vmem [resolvable:$true] %s874
          %877 = dma.hbm_to_vmem [thread:$0]  %s873, 16, %s875, [#allocation15]
        $region44: #{tpu_custom_call.1} parent=11 // pred_fallthru
          _
        // Predicated region
        $region45: #{tpu_custom_call.1} parent=11 // pred_check
          %p878 = pneg %p328
        $region46: #{tpu_custom_call.1} parent=11 // pred_check_branch
          %880 = sbr.rel (%p878) target = $region48
        $region47: #{tpu_custom_call.1} parent=11 // pred_region
          %882 = vsyncadd [#allocation15], 0
          %s884 = sshll.u32 %s21, 4
          %s885 = int_to_ptr.hbm [resolvable:$true] %s884
          %s886 = sshll.u32 [#allocation16], 4
          %s887 = int_to_ptr.vmem [resolvable:$true] %s886
          %889 = dma.hbm_to_vmem [thread:$0]  %s885, 16, %s887, [#allocation15]
        $region48: #{tpu_custom_call.1} parent=11 // pred_fallthru
          _
        // Predicated region
        $region49: #{tpu_custom_call.1} parent=11 // pred_check
          %p890 = pneg %p349
        $region50: #{tpu_custom_call.1} parent=11 // pred_check_branch
          %892 = sbr.rel (%p890) target = $region52
        $region51: #{tpu_custom_call.1} parent=11 // pred_region
          _
        $region52: #{tpu_custom_call.1} parent=11 // pred_fallthru
          _
        // Predicated region
        $region53: #{tpu_custom_call.1} parent=11 // pred_check
          %p893 = pneg %p370
        $region54: #{tpu_custom_call.1} parent=11 // pred_check_branch
          %895 = sbr.rel (%p893) target = $region56
        $region55: #{tpu_custom_call.1} parent=11 // pred_region
          %897 = vsyncadd [#allocation18], 0
          %s899 = sshll.u32 %s25, 4
          %s900 = int_to_ptr.hbm [resolvable:$true] %s899
          %s901 = sshll.u32 [#allocation17], 4
          %s902 = int_to_ptr.vmem [resolvable:$true] %s901
          %904 = dma.hbm_to_vmem [thread:$0]  %s900, 16, %s902, [#allocation18]
        $region56: #{tpu_custom_call.1} parent=11 // pred_fallthru
          _
        // Predicated region
        $region57: #{tpu_custom_call.1} parent=11 // pred_check
          %p905 = pneg %p391
        $region58: #{tpu_custom_call.1} parent=11 // pred_check_branch
          %907 = sbr.rel (%p905) target = $region60
        $region59: #{tpu_custom_call.1} parent=11 // pred_region
          %909 = vsyncadd [#allocation18], 0
          %s910 = sshll.u32 %s27, 4
          %s911 = int_to_ptr.hbm [resolvable:$true] %s910
          %s912 = sshll.u32 [#allocation19], 4
          %s913 = int_to_ptr.vmem [resolvable:$true] %s912
          %918 = dma.hbm_to_vmem [thread:$0]  %s911, 256, %s913, [#allocation18], 64, 64, 4
        $region60: #{tpu_custom_call.1} parent=11 // pred_fallthru
          _
        // Predicated region
        $region61: #{tpu_custom_call.1} parent=11 // pred_check
          %p919 = pneg %p412
        $region62: #{tpu_custom_call.1} parent=11 // pred_check_branch
          %921 = sbr.rel (%p919) target = $region64
        $region63: #{tpu_custom_call.1} parent=11 // pred_region
          %923 = vsyncadd [#allocation21], 0
          %s925 = sshll.u32 %s29, 4
          %s926 = int_to_ptr.hbm [resolvable:$true] %s925
          %s927 = sshll.u32 [#allocation20], 4
          %s928 = int_to_ptr.vmem [resolvable:$true] %s927
          %930 = dma.hbm_to_vmem [thread:$0]  %s926, 16, %s928, [#allocation21]
        $region64: #{tpu_custom_call.1} parent=11 // pred_fallthru
          _
        // Predicated region
        $region65: #{tpu_custom_call.1} parent=11 // pred_check
          %p931 = pneg %p433
        $region66: #{tpu_custom_call.1} parent=11 // pred_check_branch
          %933 = sbr.rel (%p931) target = $region68
        $region67: #{tpu_custom_call.1} parent=11 // pred_region
          %935 = vsyncadd [#allocation21], 0
          %s937 = sshll.u32 %s31, 4
          %s938 = int_to_ptr.hbm [resolvable:$true] %s937
          %s939 = sshll.u32 [#allocation22], 4
          %s940 = int_to_ptr.vmem [resolvable:$true] %s939
          %942 = dma.hbm_to_vmem [thread:$0]  %s938, 16, %s940, [#allocation21]
        $region68: #{tpu_custom_call.1} parent=11 // pred_fallthru
          _
        // Predicated region
        $region69: #{tpu_custom_call.1} parent=11 // pred_check
          %p943 = pneg %p454
        $region70: #{tpu_custom_call.1} parent=11 // pred_check_branch
          %945 = sbr.rel (%p943) target = $region72
        $region71: #{tpu_custom_call.1} parent=11 // pred_region
          %947 = vsyncadd [#allocation24], 0
          %s949 = sshll.u32 %s33, 4
          %s950 = int_to_ptr.hbm [resolvable:$true] %s949
          %s951 = sshll.u32 [#allocation23], 4
          %s952 = int_to_ptr.vmem [resolvable:$true] %s951
          %954 = dma.hbm_to_vmem [thread:$0]  %s950, 16, %s952, [#allocation24]
        $region72: #{tpu_custom_call.1} parent=11 // pred_fallthru
          _
        // Predicated region
        $region73: #{tpu_custom_call.1} parent=11 // pred_check
          %p955 = pneg %p475
        $region74: #{tpu_custom_call.1} parent=11 // pred_check_branch
          %957 = sbr.rel (%p955) target = $region76
        $region75: #{tpu_custom_call.1} parent=11 // pred_region
          %959 = vsyncadd [#allocation24], 0
          %s960 = sshll.u32 %s35, 4
          %s961 = int_to_ptr.hbm [resolvable:$true] %s960
          %s962 = sshll.u32 [#allocation25], 4
          %s963 = int_to_ptr.vmem [resolvable:$true] %s962
          %968 = dma.hbm_to_vmem [thread:$0]  %s961, 256, %s963, [#allocation24], 64, 64, 4
        $region76: #{tpu_custom_call.1} parent=11 // pred_fallthru
          _
        // Predicated region
        $region77: #{tpu_custom_call.1} parent=11 // pred_check
          %p969 = pneg %p496
        $region78: #{tpu_custom_call.1} parent=11 // pred_check_branch
          %971 = sbr.rel (%p969) target = $region80
        $region79: #{tpu_custom_call.1} parent=11 // pred_region
          %973 = vsyncadd [#allocation27], 0
          %s975 = sshll.u32 %s37, 4
          %s976 = int_to_ptr.hbm [resolvable:$true] %s975
          %s977 = sshll.u32 [#allocation26], 4
          %s978 = int_to_ptr.vmem [resolvable:$true] %s977
          %980 = dma.hbm_to_vmem [thread:$0]  %s976, 16, %s978, [#allocation27]
        $region80: #{tpu_custom_call.1} parent=11 // pred_fallthru
          _
        // Predicated region
        $region81: #{tpu_custom_call.1} parent=11 // pred_check
          %p981 = pneg %p517
        $region82: #{tpu_custom_call.1} parent=11 // pred_check_branch
          %983 = sbr.rel (%p981) target = $region84
        $region83: #{tpu_custom_call.1} parent=11 // pred_region
          %985 = vsyncadd [#allocation27], 0
          %s986 = sshll.u32 %s39, 4
          %s987 = int_to_ptr.hbm [resolvable:$true] %s986
          %s988 = sshll.u32 [#allocation28], 4
          %s989 = int_to_ptr.vmem [resolvable:$true] %s988
          %994 = dma.hbm_to_vmem [thread:$0]  %s987, 256, %s989, [#allocation27], 64, 64, 4
        $region84: #{tpu_custom_call.1} parent=11 // pred_fallthru
          _
        // Predicated region
        $region85: #{tpu_custom_call.1} parent=11 // pred_check
          %p995 = pneg %p538
        $region86: #{tpu_custom_call.1} parent=11 // pred_check_branch
          %997 = sbr.rel (%p995) target = $region88
        $region87: #{tpu_custom_call.1} parent=11 // pred_region
          %999 = vsyncadd [#allocation30], 0
          %s1001 = sshll.u32 %s41, 4
          %s1002 = int_to_ptr.hbm [resolvable:$true] %s1001
          %s1003 = sshll.u32 [#allocation29], 4
          %s1004 = int_to_ptr.vmem [resolvable:$true] %s1003
          %1006 = dma.hbm_to_vmem [thread:$0]  %s1002, 16, %s1004, [#allocation30]
        $region88: #{tpu_custom_call.1} parent=11 // pred_fallthru
          _
        // Predicated region
        $region89: #{tpu_custom_call.1} parent=11 // pred_check
          %p1007 = pneg %p559
        $region90: #{tpu_custom_call.1} parent=11 // pred_check_branch
          %1009 = sbr.rel (%p1007) target = $region92
        $region91: #{tpu_custom_call.1} parent=11 // pred_region
          %1011 = vsyncadd [#allocation30], 0
          %s1013 = sshll.u32 %s43, 4
          %s1014 = int_to_ptr.hbm [resolvable:$true] %s1013
          %s1015 = sshll.u32 [#allocation31], 4
          %s1016 = int_to_ptr.vmem [resolvable:$true] %s1015
          %1018 = dma.hbm_to_vmem [thread:$0]  %s1014, 16, %s1016, [#allocation30]
        $region92: #{tpu_custom_call.1} parent=11 // pred_fallthru
          _
        // Predicated region
        $region93: #{tpu_custom_call.1} parent=11 // pred_check
          %p1019 = pneg %p580
        $region94: #{tpu_custom_call.1} parent=11 // pred_check_branch
          %1021 = sbr.rel (%p1019) target = $region96
        $region95: #{tpu_custom_call.1} parent=11 // pred_region
          %1023 = vsyncadd [#allocation33], 0
          %s1025 = sshll.u32 %s45, 4
          %s1026 = int_to_ptr.hbm [resolvable:$true] %s1025
          %s1027 = sshll.u32 [#allocation32], 4
          %s1028 = int_to_ptr.vmem [resolvable:$true] %s1027
          %1030 = dma.hbm_to_vmem [thread:$0]  %s1026, 16, %s1028, [#allocation33]
        $region96: #{tpu_custom_call.1} parent=11 // pred_fallthru
          _
        // Predicated region
        $region97: #{tpu_custom_call.1} parent=11 // pred_check
          %p1031 = pneg %p601
        $region98: #{tpu_custom_call.1} parent=11 // pred_check_branch
          %1033 = sbr.rel (%p1031) target = $region100
        $region99: #{tpu_custom_call.1} parent=11 // pred_region
          %1035 = vsyncadd [#allocation33], 0
          %s1036 = sshll.u32 %s47, 4
          %s1037 = int_to_ptr.hbm [resolvable:$true] %s1036
          %s1038 = sshll.u32 [#allocation34], 4
          %s1039 = int_to_ptr.vmem [resolvable:$true] %s1038
          %1044 = dma.hbm_to_vmem [thread:$0]  %s1037, 256, %s1039, [#allocation33], 64, 64, 4
        $region100: #{tpu_custom_call.1} parent=11 // pred_fallthru
          _
        // Predicated region
        $region101: #{tpu_custom_call.1} parent=11 // pred_check
          %p1045 = pneg %p622
        $region102: #{tpu_custom_call.1} parent=11 // pred_check_branch
          %1047 = sbr.rel (%p1045) target = $region104
        $region103: #{tpu_custom_call.1} parent=11 // pred_region
          %1049 = vsyncadd [#allocation36], 0
          %s1051 = sshll.u32 %s49, 4
          %s1052 = int_to_ptr.hbm [resolvable:$true] %s1051
          %s1053 = sshll.u32 [#allocation35], 4
          %s1054 = int_to_ptr.vmem [resolvable:$true] %s1053
          %1056 = dma.hbm_to_vmem [thread:$0]  %s1052, 16, %s1054, [#allocation36]
        $region104: #{tpu_custom_call.1} parent=11 // pred_fallthru
          _
        // Predicated region
        $region105: #{tpu_custom_call.1} parent=11 // pred_check
          %p1057 = pneg %p643
        $region106: #{tpu_custom_call.1} parent=11 // pred_check_branch
          %1059 = sbr.rel (%p1057) target = $region108
        $region107: #{tpu_custom_call.1} parent=11 // pred_region
          _
        $region108: #{tpu_custom_call.1} parent=11 // pred_fallthru
          _
        // Predicated region
        $region109: #{tpu_custom_call.1} parent=11 // pred_check
          %p1060 = pneg %p664
        $region110: #{tpu_custom_call.1} parent=11 // pred_check_branch
          %1062 = sbr.rel (%p1060) target = $region112
        $region111: #{tpu_custom_call.1} parent=11 // pred_region
          %1064 = vsyncadd [#allocation36], 0
          %s1066 = sshll.u32 %s53, 4
          %s1067 = int_to_ptr.hbm [resolvable:$true] %s1066
          %s1068 = sshll.u32 [#allocation37], 4
          %s1069 = int_to_ptr.vmem [resolvable:$true] %s1068
          %1071 = dma.hbm_to_vmem [thread:$0]  %s1067, 16, %s1069, [#allocation36]
        $region112: #{tpu_custom_call.1} parent=11 // pred_fallthru
          _
        // Predicated region
        $region113: #{tpu_custom_call.1} parent=11 // pred_check
          %p1072 = pneg %p685
        $region114: #{tpu_custom_call.1} parent=11 // pred_check_branch
          %1074 = sbr.rel (%p1072) target = $region116
        $region115: #{tpu_custom_call.1} parent=11 // pred_region
          _
        $region116: #{tpu_custom_call.1} parent=11 // pred_fallthru
          _
        // Predicated region
        $region117: #{tpu_custom_call.1} parent=11 // pred_check
          %p1075 = pneg %p706
        $region118: #{tpu_custom_call.1} parent=11 // pred_check_branch
          %1077 = sbr.rel (%p1075) target = $region120
        $region119: #{tpu_custom_call.1} parent=11 // pred_region
          _
        $region120: #{tpu_custom_call.1} parent=11 // pred_fallthru
          _
        // Predicated region
        $region121: #{tpu_custom_call.1} parent=11 // pred_check
          %p1078 = pneg %p727
        $region122: #{tpu_custom_call.1} parent=11 // pred_check_branch
          %1080 = sbr.rel (%p1078) target = $region124
        $region123: #{tpu_custom_call.1} parent=11 // pred_region
          %1082 = vsyncadd [#allocation39], 0
          %s1083 = sshll.u32 %s59, 4
          %s1084 = int_to_ptr.hbm [resolvable:$true] %s1083
          %s1085 = sshll.u32 [#allocation38], 4
          %s1086 = int_to_ptr.vmem [resolvable:$true] %s1085
          %1091 = dma.hbm_to_vmem [thread:$0]  %s1084, 256, %s1086, [#allocation39], 64, 64, 4
        $region124: #{tpu_custom_call.1} parent=11 // pred_fallthru
          _
        // Predicated region
        $region125: #{tpu_custom_call.1} parent=11 // pred_check
          %p1092 = pneg %p748
        $region126: #{tpu_custom_call.1} parent=11 // pred_check_branch
          %1094 = sbr.rel (%p1092) target = $region128
        $region127: #{tpu_custom_call.1} parent=11 // pred_region
          _
        $region128: #{tpu_custom_call.1} parent=11 // pred_fallthru
          _
      $region12: #{tpu_custom_call.1} parent=5 // pred_fallthru
        _
      %p1095 = scmp.lt.s32.totalorder %s87, 2
      // Predicated region
      $region129: #{tpu_custom_call.1} parent=5 // pred_check
        %p1096 = pneg %p1095
      $region130: #{tpu_custom_call.1} parent=5 // pred_check_branch
        %1098 = sbr.rel (%p1096) target = $region132
      $region131: #{tpu_custom_call.1} parent=5 // pred_region
        // Predicated region
        $region133: #{tpu_custom_call.1} parent=131 // pred_check
          %p1099 = pneg %p107
        $region134: #{tpu_custom_call.1} parent=131 // pred_check_branch
          %1101 = sbr.rel (%p1099) target = $region136
        $region135: #{tpu_custom_call.1} parent=131 // pred_region
          %p1102 = scmp.lt.s32.totalorder %s87, 1
          %s1103 = scalar_select %p1102, %s87, 1
          %s1104 = smul.addr %s1103, 8
          %s1105 = scalar_lea.vmem %s1, %s1104
        $region136: #{tpu_custom_call.1} parent=131 // pred_fallthru
          _
        // Predicated region
        $region137: #{tpu_custom_call.1} parent=131 // pred_check
          %p1106 = pneg %p133
        $region138: #{tpu_custom_call.1} parent=131 // pred_check_branch
          %1108 = sbr.rel (%p1106) target = $region140
        $region139: #{tpu_custom_call.1} parent=131 // pred_region
          %s1109 = sand.u32 %s123, 1
          %s1110 = scalar_lea.sflag [#allocation3], %s1109
          %s1111 = sand.u32 %s123, 1
          %s1112 = scalar_lea.vmem [#allocation2], %s1111
          %1114 = vsyncadd %s1110, 0
          %s1115 = scalar_lea.hbm %s3, %s87
          %s1117 = sshll.u32 %s1115, 4
          %s1118 = int_to_ptr.hbm [resolvable:$true] %s1117
          %s1119 = sshll.u32 %s1112, 4
          %s1120 = int_to_ptr.vmem [resolvable:$true] %s1119
          %1122 = dma.hbm_to_vmem [thread:$0]  %s1118, 16, %s1120, %s1110
        $region140: #{tpu_custom_call.1} parent=131 // pred_fallthru
          _
      $region132: #{tpu_custom_call.1} parent=5 // pred_fallthru
        _
      %p1123 = scmp.le.s32.totalorder 1, %s87
      %p1124 = scmp.lt.s32.totalorder %s87, 3
      %p1125 = pnand %p1123, %p1124
      %p1126 = pneg %p1125
      // Predicated region
      $region141: #{tpu_custom_call.1} parent=5 // pred_check
        _
      $region142: #{tpu_custom_call.1} parent=5 // pred_check_branch
        %1128 = sbr.rel (%p1125) target = $region144
      $region143: #{tpu_custom_call.1} parent=5 // pred_region
        %s1129 = ssub.s32 %s87, 1
        %s1130 = sand.u32 %s126, 1
        %s1131 = scalar_lea.sflag [#allocation3], %s1130
        %s1132 = sand.u32 %s126, 1
        %s1133 = scalar_lea.vmem [#allocation2], %s1132
        // Predicated region
        $region145: #{tpu_custom_call.1} parent=143 // pred_check
          %p1134 = pneg %p139
        $region146: #{tpu_custom_call.1} parent=143 // pred_check_branch
          %1136 = sbr.rel (%p1134) target = $region148
        $region147: #{tpu_custom_call.1} parent=143 // pred_region
          %1138 = dma.done %s1131, 16
        $region148: #{tpu_custom_call.1} parent=143 // pred_fallthru
          _
        // Predicated region
        $region149: #{tpu_custom_call.1} parent=143 // pred_check
          %p1139 = pneg %p160
        $region150: #{tpu_custom_call.1} parent=143 // pred_check_branch
          %1141 = sbr.rel (%p1139) target = $region152
        $region151: #{tpu_custom_call.1} parent=143 // pred_region
          %1143 = dma.done [#allocation6], 64
        $region152: #{tpu_custom_call.1} parent=143 // pred_fallthru
          _
        // Predicated region
        $region153: #{tpu_custom_call.1} parent=143 // pred_check
          %p1144 = pneg %p181
        $region154: #{tpu_custom_call.1} parent=143 // pred_check_branch
          %1146 = sbr.rel (%p1144) target = $region156
        $region155: #{tpu_custom_call.1} parent=143 // pred_region
          %1148 = dma.done [#allocation6], 32
        $region156: #{tpu_custom_call.1} parent=143 // pred_fallthru
          _
        // Predicated region
        $region157: #{tpu_custom_call.1} parent=143 // pred_check
          %p1149 = pneg %p202
        $region158: #{tpu_custom_call.1} parent=143 // pred_check_branch
          %1151 = sbr.rel (%p1149) target = $region160
        $region159: #{tpu_custom_call.1} parent=143 // pred_region
          %1153 = dma.done [#allocation9], 16
        $region160: #{tpu_custom_call.1} parent=143 // pred_fallthru
          _
        // Predicated region
        $region161: #{tpu_custom_call.1} parent=143 // pred_check
          %p1154 = pneg %p244
        $region162: #{tpu_custom_call.1} parent=143 // pred_check_branch
          %1156 = sbr.rel (%p1154) target = $region164
        $region163: #{tpu_custom_call.1} parent=143 // pred_region
          %1158 = dma.done [#allocation9], 16
        $region164: #{tpu_custom_call.1} parent=143 // pred_fallthru
          _
        // Predicated region
        $region165: #{tpu_custom_call.1} parent=143 // pred_check
          %p1159 = pneg %p265
        $region166: #{tpu_custom_call.1} parent=143 // pred_check_branch
          %1161 = sbr.rel (%p1159) target = $region168
        $region167: #{tpu_custom_call.1} parent=143 // pred_region
          %1163 = dma.done [#allocation12], 256
        $region168: #{tpu_custom_call.1} parent=143 // pred_fallthru
          _
        // Predicated region
        $region169: #{tpu_custom_call.1} parent=143 // pred_check
          %p1164 = pneg %p286
        $region170: #{tpu_custom_call.1} parent=143 // pred_check_branch
          %1166 = sbr.rel (%p1164) target = $region172
        $region171: #{tpu_custom_call.1} parent=143 // pred_region
          %1168 = dma.done [#allocation12], 16
        $region172: #{tpu_custom_call.1} parent=143 // pred_fallthru
          _
        // Predicated region
        $region173: #{tpu_custom_call.1} parent=143 // pred_check
          %p1169 = pneg %p307
        $region174: #{tpu_custom_call.1} parent=143 // pred_check_branch
          %1171 = sbr.rel (%p1169) target = $region176
        $region175: #{tpu_custom_call.1} parent=143 // pred_region
          %1173 = dma.done [#allocation15], 16
        $region176: #{tpu_custom_call.1} parent=143 // pred_fallthru
          _
        // Predicated region
        $region177: #{tpu_custom_call.1} parent=143 // pred_check
          %p1174 = pneg %p328
        $region178: #{tpu_custom_call.1} parent=143 // pred_check_branch
          %1176 = sbr.rel (%p1174) target = $region180
        $region179: #{tpu_custom_call.1} parent=143 // pred_region
          %1178 = dma.done [#allocation15], 16
        $region180: #{tpu_custom_call.1} parent=143 // pred_fallthru
          _
        // Predicated region
        $region181: #{tpu_custom_call.1} parent=143 // pred_check
          %p1179 = pneg %p370
        $region182: #{tpu_custom_call.1} parent=143 // pred_check_branch
          %1181 = sbr.rel (%p1179) target = $region184
        $region183: #{tpu_custom_call.1} parent=143 // pred_region
          %1183 = dma.done [#allocation18], 16
        $region184: #{tpu_custom_call.1} parent=143 // pred_fallthru
          _
        // Predicated region
        $region185: #{tpu_custom_call.1} parent=143 // pred_check
          %p1184 = pneg %p391
        $region186: #{tpu_custom_call.1} parent=143 // pred_check_branch
          %1186 = sbr.rel (%p1184) target = $region188
        $region187: #{tpu_custom_call.1} parent=143 // pred_region
          %1188 = dma.done [#allocation18], 256
        $region188: #{tpu_custom_call.1} parent=143 // pred_fallthru
          _
        // Predicated region
        $region189: #{tpu_custom_call.1} parent=143 // pred_check
          %p1189 = pneg %p412
        $region190: #{tpu_custom_call.1} parent=143 // pred_check_branch
          %1191 = sbr.rel (%p1189) target = $region192
        $region191: #{tpu_custom_call.1} parent=143 // pred_region
          %1193 = dma.done [#allocation21], 16
        $region192: #{tpu_custom_call.1} parent=143 // pred_fallthru
          _
        // Predicated region
        $region193: #{tpu_custom_call.1} parent=143 // pred_check
          %p1194 = pneg %p433
        $region194: #{tpu_custom_call.1} parent=143 // pred_check_branch
          %1196 = sbr.rel (%p1194) target = $region196
        $region195: #{tpu_custom_call.1} parent=143 // pred_region
          %1198 = dma.done [#allocation21], 16
        $region196: #{tpu_custom_call.1} parent=143 // pred_fallthru
          _
        // Predicated region
        $region197: #{tpu_custom_call.1} parent=143 // pred_check
          %p1199 = pneg %p454
        $region198: #{tpu_custom_call.1} parent=143 // pred_check_branch
          %1201 = sbr.rel (%p1199) target = $region200
        $region199: #{tpu_custom_call.1} parent=143 // pred_region
          %1203 = dma.done [#allocation24], 16
        $region200: #{tpu_custom_call.1} parent=143 // pred_fallthru
          _
        // Predicated region
        $region201: #{tpu_custom_call.1} parent=143 // pred_check
          %p1204 = pneg %p475
        $region202: #{tpu_custom_call.1} parent=143 // pred_check_branch
          %1206 = sbr.rel (%p1204) target = $region204
        $region203: #{tpu_custom_call.1} parent=143 // pred_region
          %1208 = dma.done [#allocation24], 256
        $region204: #{tpu_custom_call.1} parent=143 // pred_fallthru
          _
        // Predicated region
        $region205: #{tpu_custom_call.1} parent=143 // pred_check
          %p1209 = pneg %p496
        $region206: #{tpu_custom_call.1} parent=143 // pred_check_branch
          %1211 = sbr.rel (%p1209) target = $region208
        $region207: #{tpu_custom_call.1} parent=143 // pred_region
          %1213 = dma.done [#allocation27], 16
        $region208: #{tpu_custom_call.1} parent=143 // pred_fallthru
          _
        // Predicated region
        $region209: #{tpu_custom_call.1} parent=143 // pred_check
          %p1214 = pneg %p517
        $region210: #{tpu_custom_call.1} parent=143 // pred_check_branch
          %1216 = sbr.rel (%p1214) target = $region212
        $region211: #{tpu_custom_call.1} parent=143 // pred_region
          %1218 = dma.done [#allocation27], 256
        $region212: #{tpu_custom_call.1} parent=143 // pred_fallthru
          _
        // Predicated region
        $region213: #{tpu_custom_call.1} parent=143 // pred_check
          %p1219 = pneg %p538
        $region214: #{tpu_custom_call.1} parent=143 // pred_check_branch
          %1221 = sbr.rel (%p1219) target = $region216
        $region215: #{tpu_custom_call.1} parent=143 // pred_region
          %1223 = dma.done [#allocation30], 16
        $region216: #{tpu_custom_call.1} parent=143 // pred_fallthru
          _
        // Predicated region
        $region217: #{tpu_custom_call.1} parent=143 // pred_check
          %p1224 = pneg %p559
        $region218: #{tpu_custom_call.1} parent=143 // pred_check_branch
          %1226 = sbr.rel (%p1224) target = $region220
        $region219: #{tpu_custom_call.1} parent=143 // pred_region
          %1228 = dma.done [#allocation30], 16
        $region220: #{tpu_custom_call.1} parent=143 // pred_fallthru
          _
        // Predicated region
        $region221: #{tpu_custom_call.1} parent=143 // pred_check
          %p1229 = pneg %p580
        $region222: #{tpu_custom_call.1} parent=143 // pred_check_branch
          %1231 = sbr.rel (%p1229) target = $region224
        $region223: #{tpu_custom_call.1} parent=143 // pred_region
          %1233 = dma.done [#allocation33], 16
        $region224: #{tpu_custom_call.1} parent=143 // pred_fallthru
          _
        // Predicated region
        $region225: #{tpu_custom_call.1} parent=143 // pred_check
          %p1234 = pneg %p601
        $region226: #{tpu_custom_call.1} parent=143 // pred_check_branch
          %1236 = sbr.rel (%p1234) target = $region228
        $region227: #{tpu_custom_call.1} parent=143 // pred_region
          %1238 = dma.done [#allocation33], 256
        $region228: #{tpu_custom_call.1} parent=143 // pred_fallthru
          _
        // Predicated region
        $region229: #{tpu_custom_call.1} parent=143 // pred_check
          %p1239 = pneg %p622
        $region230: #{tpu_custom_call.1} parent=143 // pred_check_branch
          %1241 = sbr.rel (%p1239) target = $region232
        $region231: #{tpu_custom_call.1} parent=143 // pred_region
          %1243 = dma.done [#allocation36], 16
        $region232: #{tpu_custom_call.1} parent=143 // pred_fallthru
          _
        // Predicated region
        $region233: #{tpu_custom_call.1} parent=143 // pred_check
          %p1244 = pneg %p664
        $region234: #{tpu_custom_call.1} parent=143 // pred_check_branch
          %1246 = sbr.rel (%p1244) target = $region236
        $region235: #{tpu_custom_call.1} parent=143 // pred_region
          %1248 = dma.done [#allocation36], 16
        $region236: #{tpu_custom_call.1} parent=143 // pred_fallthru
          _
        // Predicated region
        $region237: #{tpu_custom_call.1} parent=143 // pred_check
          %p1249 = pneg %p727
        $region238: #{tpu_custom_call.1} parent=143 // pred_check_branch
          %1251 = sbr.rel (%p1249) target = $region240
        $region239: #{tpu_custom_call.1} parent=143 // pred_region
          %1253 = dma.done [#allocation39], 256
        $region240: #{tpu_custom_call.1} parent=143 // pred_fallthru
          _
        %p1254 = scmp.lt.s32.totalorder %s92, 1
        %s1255 = scalar_select %p1254, %s92, 1
        %s1256 = smul.addr %s1255, 8
        %s1257 = scalar_lea.vmem %s1, %s1256
        %p1258 = pneg %p113
        %p1259 = pneg %p110
        %s1260 = sand.u32 %s126, 1
        %s1261 = scalar_lea.sflag [#allocation3], %s1260
        %s1262 = sand.u32 %s126, 1
        %s1263 = scalar_lea.vmem [#allocation2], %s1262
        %p1264 = pneg %p139
        %p1265 = pneg %p136
        %p1266 = pneg %p160
        %p1267 = pneg %p157
        %p1268 = pneg %p181
        %p1269 = pneg %p178
        %p1270 = pneg %p202
        %p1271 = pneg %p199
        %p1272 = pneg %p223
        %p1273 = pneg %p220
        %p1274 = pneg %p244
        %p1275 = pneg %p241
        %p1276 = pneg %p265
        %p1277 = pneg %p262
        %p1278 = pneg %p286
        %p1279 = pneg %p283
        %p1280 = pneg %p307
        %p1281 = pneg %p304
        %p1282 = pneg %p328
        %p1283 = pneg %p325
        %p1284 = pneg %p349
        %p1285 = pneg %p346
        %p1286 = pneg %p370
        %p1287 = pneg %p367
        %p1288 = pneg %p391
        %p1289 = pneg %p388
        %p1290 = pneg %p412
        %p1291 = pneg %p409
        %p1292 = pneg %p433
        %p1293 = pneg %p430
        %p1294 = pneg %p454
        %p1295 = pneg %p451
        %p1296 = pneg %p475
        %p1297 = pneg %p472
        %p1298 = pneg %p496
        %p1299 = pneg %p493
        %p1300 = pneg %p517
        %p1301 = pneg %p514
        %p1302 = pneg %p538
        %p1303 = pneg %p535
        %p1304 = pneg %p559
        %p1305 = pneg %p556
        %p1306 = pneg %p580
        %p1307 = pneg %p577
        %p1308 = pneg %p601
        %p1309 = pneg %p598
        %p1310 = pneg %p622
        %p1311 = pneg %p619
        %p1312 = pneg %p643
        %p1313 = pneg %p640
        %p1314 = pneg %p664
        %p1315 = pneg %p661
        %p1316 = pneg %p685
        %p1317 = pneg %p682
        %p1318 = pneg %p706
        %p1319 = pneg %p703
        %p1320 = pneg %p727
        %p1321 = pneg %p724
        %p1322 = pneg %p748
        %p1323 = pneg %p745
        %p1324 = pneg %p774
        %p1325 = pneg %p771
        %s1326 = sand.u32 %s761, 1
        %s1327 = scalar_lea.sflag [#allocation4], %s1326
        %s1328 = sand.u32 %s761, 1
        %s1329 = smul.addr %s1328, 8
        %s1330 = scalar_lea.vmem [#allocation40], %s1329
        %p1331 = scmp.lt.s32.totalorder %s92, 1
        %s1332 = scalar_select %p1331, %s92, 1
        %s1333 = smul.addr %s1332, 8
        %s1334 = scalar_lea.vmem %s1, %s1333
        %v1336 = vld [vmem:[%s1334] sm:$0xff]
        %v1337 = vld [vmem:[#allocation7] sm:$0x3]
        %v1338 = vpack.c.bf16 %v1336, %v1336
        %v1339 = vld [vmem:[#allocation8] sm:$0x1]
        %v1340 = vunpack.c.l.bf16 %v1339
        %v1341 = vperm.slane %v1340, 0
        %vm1342 = vcmask 31744
        %v1344 = vsel %vm1342, %v1338, 0
        %vm1346 = vcmask 1041408
        %v1348 = vsel %vm1346, %v1337, 0
        %1350 = vmatpush.bf16.msra.mxu0 0
        %1351 = vmatpush.bf16.msra.mxu0 0
        %1352 = vmatpush.bf16.msra.mxu0 0
        %1353 = vmatpush.bf16.msra.mxu0 0
        %1354 = vmatpush.bf16.msra.mxu0 0
        %1355 = vmatpush.bf16.msra.mxu0 0
        %1356 = vmatpush.bf16.msra.mxu0 0
        %1357 = vmatpush.bf16.msra.mxu0 %v1348
        %1358 = vmatmul.bf16.gmra.mxu0 %v1344
        %v1359 = vpop.f32.mrf.mxu0
        %v1360 = vadd.f32 %v1341, %v1359
        %v1361 = vpop.f32.mrf.mxu0
        %1362 = vdwg.mxu0
        %v1363 = vmul.f32 %v1360, 5.656854
        %v1364 = vld [vmem:[#allocation5] sm:$0xf]
        %v1365 = vunpack.c.l.bf16 %v1364
        %v1366 = vadd.f32 %v1363, %v1365
        %v1367 = vlaneseq
        %v1368 = vshrl.u32 %v1367, 7
        %v1369 = vlaneseq
        %v1370 = vand.u32 %v1369, 127
        %vm1371 = vcmp.le.s32.totalorder %v1370, %v1368
        %v1372 = vsel %vm1371, 0.0, -1e+09
        %v1373 = vld [vmem:[%s1133] sm:$0x1]
        %v1375 = vperm.slane %v1373, 0
        %v1377 = vadd.f32 %v1372, %v1375
        %v1378 = vld [vmem:[%s11] sm:$0xf]
        %v1379 = vld [vmem:[%s11 + $0x4] sm:$0xf]
        %v1380 = vld [vmem:[%s11 + $0x8] sm:$0xf]
        %v1381 = vld [vmem:[%s11 + $0xc] sm:$0xf]
        %v1382 = vpack.c.bf16 %v1366, %v1366
        %v1383 = vld [vmem:[#allocation10] sm:$0x1]
        %v1384 = vunpack.c.l.bf16 %v1383
        %v1385 = vperm.slane %v1384, 0
        %v1390 = vunpack.c.l.b16 %v1378
        %v1391 = vunpack.c.l.b16 %v1379
        %v1392 = vunpack.c.l.b16 %v1380
        %v1393 = vunpack.c.l.b16 %v1381
        %v1394 = vpack.c.b16 %v1391, %v1390
        %v1395 = vpack.c.b16 %v1393, %v1392
        %vm1398 = vcmask 261120
        %v1400 = vsel %vm1398, %v1382, 0
        %1402 = vmatpush.bf16.msra.mxu0 0
        %1403 = vmatpush.bf16.msra.mxu0 0
        %1404 = vmatpush.bf16.msra.mxu0 0
        %1405 = vmatpush.bf16.msra.mxu0 0
        %1406 = vmatpush.bf16.msra.mxu0 0
        %1407 = vmatpush.bf16.msra.mxu0 0
        %1408 = vmatpush.bf16.msra.mxu0 %v1395
        %1409 = vmatpush.bf16.msra.mxu0 %v1394
        %1410 = vmatmul.bf16.gmra.mxu0 %v1400
        %v1411 = vpop.f32.mrf.mxu0
        %v1412 = vadd.f32 %v1385, %v1411
        %v1413 = vpop.f32.mrf.mxu0
        %1414 = vdwg.mxu0
        %v1415 = vpack.c.bf16 %v1412, %v1412
        %1417 = vrot.lane.b32.xlu0 %v1415, 96
        %v1418 = vpop.permute.xlu0 %1417
        %vm1419 = vcmask 64512
        %v1421 = vsel %vm1419, %v1415, 0
        %v1424 = vsel %vm1419, %v1418, 0
        %1426 = vmatpush.bf16.xpose.msra.mxu0 0
        %1427 = vmatpush.bf16.xpose.msra.mxu0 0
        %1428 = vmatpush.bf16.xpose.msra.mxu0 0
        %1429 = vmatpush.bf16.xpose.msra.mxu0 0
        %1430 = vmatpush.bf16.xpose.msra.mxu0 0
        %1431 = vmatpush.bf16.xpose.msra.mxu0 0
        %1432 = vmatpush.bf16.xpose.msra.mxu0 0
        %1433 = vmatpush.bf16.xpose.msra.mxu0 %v1424
        %1434 = vmatmul.bf16.gmra.mxu0 %v1421
        %v1435 = vpop.f32.mrf.mxu0
        %v1436 = vadd.f32 0.0, %v1435
        %v1437 = vpop.f32.mrf.mxu0
        %1438 = vdwg.mxu0
        %v1439 = vmul.f32 %v1436, 0.35355338
        %v1440 = vadd.f32 %v1439, %v1377
        %v1441 = vsel %vm1419, %v1440, -inf
        %1442 = vmax.xlane.f32.xlu0 %v1441
        %v1443 = vpop.xlane.xlu0 %1442
        %v1444 = vsub.f32 %v1440, %v1443
        %v1445 = vmul.f32 %v1444, 1.442695
        %v1446 = vpow.pop %v1445
        %v1447 = vsel %vm1419, %v1446, 0.0
        %1448 = vadd.xlane.f32.xlu0 %v1447
        %v1449 = vpop.xlane.xlu0 %1448
        %v1450 = vrcp.pop %v1449
        %v1451 = vmul.f32 %v1446, %v1450
        %v1452 = vpack.c.bf16 %v1451, %v1451
        %1453 = vrot.lane.b32.xlu0 %v1415, 64
        %v1454 = vpop.permute.xlu0 %1453
        %v1456 = vsel %vm1419, %v1452, 0
        %vm1458 = vcmask 1043456
        %v1460 = vsel %vm1458, %v1454, 0
        %1462 = vmatpush.bf16.msra.mxu0 0
        %1463 = vmatpush.bf16.msra.mxu0 0
        %1464 = vmatpush.bf16.msra.mxu0 0
        %1465 = vmatpush.bf16.msra.mxu0 0
        %1466 = vmatpush.bf16.msra.mxu0 0
        %1467 = vmatpush.bf16.msra.mxu0 0
        %1468 = vmatpush.bf16.msra.mxu0 0
        %1469 = vmatpush.bf16.msra.mxu0 %v1460
        %1470 = vmatmul.bf16.gmra.mxu0 %v1456
        %v1471 = vpop.f32.mrf.mxu0
        %v1472 = vadd.f32 0.0, %v1471
        %v1473 = vpop.f32.mrf.mxu0
        %1474 = vdwg.mxu0
        %1475 = vrot.lane.b32.xlu0 %v1415, 120
        %v1476 = vpop.permute.xlu0 %1475
        %1477 = vrot.lane.b32.xlu0 %v1415, 88
        %v1478 = vpop.permute.xlu0 %1477
        %v1480 = vsel %vm1419, %v1476, 0
        %v1483 = vsel %vm1419, %v1478, 0
        %1485 = vmatpush.bf16.xpose.msra.mxu0 0
        %1486 = vmatpush.bf16.xpose.msra.mxu0 0
        %1487 = vmatpush.bf16.xpose.msra.mxu0 0
        %1488 = vmatpush.bf16.xpose.msra.mxu0 0
        %1489 = vmatpush.bf16.xpose.msra.mxu0 0
        %1490 = vmatpush.bf16.xpose.msra.mxu0 0
        %1491 = vmatpush.bf16.xpose.msra.mxu0 0
        %1492 = vmatpush.bf16.xpose.msra.mxu0 %v1483
        %1493 = vmatmul.bf16.gmra.mxu0 %v1480
        %v1494 = vpop.f32.mrf.mxu0
        %v1495 = vadd.f32 0.0, %v1494
        %v1496 = vpop.f32.mrf.mxu0
        %1497 = vdwg.mxu0
        %v1498 = vmul.f32 %v1495, 0.35355338
        %v1499 = vadd.f32 %v1498, %v1377
        %v1500 = vsel %vm1419, %v1499, -inf
        %1501 = vmax.xlane.f32.xlu0 %v1500
        %v1502 = vpop.xlane.xlu0 %1501
        %v1503 = vsub.f32 %v1499, %v1502
        %v1504 = vmul.f32 %v1503, 1.442695
        %v1505 = vpow.pop %v1504
        %v1506 = vsel %vm1419, %v1505, 0.0
        %1507 = vadd.xlane.f32.xlu0 %v1506
        %v1508 = vpop.xlane.xlu0 %1507
        %v1509 = vrcp.pop %v1508
        %v1510 = vmul.f32 %v1505, %v1509
        %v1511 = vpack.c.bf16 %v1510, %v1510
        %1512 = vrot.lane.b32.xlu0 %v1415, 56
        %v1513 = vpop.permute.xlu0 %1512
        %v1515 = vsel %vm1419, %v1511, 0
        %v1518 = vsel %vm1458, %v1513, 0
        %1520 = vmatpush.bf16.msra.mxu0 0
        %1521 = vmatpush.bf16.msra.mxu0 0
        %1522 = vmatpush.bf16.msra.mxu0 0
        %1523 = vmatpush.bf16.msra.mxu0 0
        %1524 = vmatpush.bf16.msra.mxu0 0
        %1525 = vmatpush.bf16.msra.mxu0 0
        %1526 = vmatpush.bf16.msra.mxu0 0
        %1527 = vmatpush.bf16.msra.mxu0 %v1518
        %1528 = vmatmul.bf16.gmra.mxu0 %v1515
        %v1529 = vpop.f32.mrf.mxu0
        %v1530 = vadd.f32 0.0, %v1529
        %v1531 = vpop.f32.mrf.mxu0
        %1532 = vdwg.mxu0
        %1533 = vrot.lane.b32.xlu0 %v1415, 112
        %v1534 = vpop.permute.xlu0 %1533
        %1535 = vrot.lane.b32.xlu0 %v1415, 80
        %v1536 = vpop.permute.xlu0 %1535
        %v1538 = vsel %vm1419, %v1534, 0
        %v1541 = vsel %vm1419, %v1536, 0
        %1543 = vmatpush.bf16.xpose.msra.mxu0 0
        %1544 = vmatpush.bf16.xpose.msra.mxu0 0
        %1545 = vmatpush.bf16.xpose.msra.mxu0 0
        %1546 = vmatpush.bf16.xpose.msra.mxu0 0
        %1547 = vmatpush.bf16.xpose.msra.mxu0 0
        %1548 = vmatpush.bf16.xpose.msra.mxu0 0
        %1549 = vmatpush.bf16.xpose.msra.mxu0 0
        %1550 = vmatpush.bf16.xpose.msra.mxu0 %v1541
        %1551 = vmatmul.bf16.gmra.mxu0 %v1538
        %v1552 = vpop.f32.mrf.mxu0
        %v1553 = vadd.f32 0.0, %v1552
        %v1554 = vpop.f32.mrf.mxu0
        %1555 = vdwg.mxu0
        %v1556 = vmul.f32 %v1553, 0.35355338
        %v1557 = vadd.f32 %v1556, %v1377
        %v1558 = vsel %vm1419, %v1557, -inf
        %1559 = vmax.xlane.f32.xlu0 %v1558
        %v1560 = vpop.xlane.xlu0 %1559
        %v1561 = vsub.f32 %v1557, %v1560
        %v1562 = vmul.f32 %v1561, 1.442695
        %v1563 = vpow.pop %v1562
        %v1564 = vsel %vm1419, %v1563, 0.0
        %1565 = vadd.xlane.f32.xlu0 %v1564
        %v1566 = vpop.xlane.xlu0 %1565
        %v1567 = vrcp.pop %v1566
        %v1568 = vmul.f32 %v1563, %v1567
        %v1569 = vpack.c.bf16 %v1568, %v1568
        %1570 = vrot.lane.b32.xlu0 %v1415, 48
        %v1571 = vpop.permute.xlu0 %1570
        %v1573 = vsel %vm1419, %v1569, 0
        %v1576 = vsel %vm1458, %v1571, 0
        %1578 = vmatpush.bf16.msra.mxu0 0
        %1579 = vmatpush.bf16.msra.mxu0 0
        %1580 = vmatpush.bf16.msra.mxu0 0
        %1581 = vmatpush.bf16.msra.mxu0 0
        %1582 = vmatpush.bf16.msra.mxu0 0
        %1583 = vmatpush.bf16.msra.mxu0 0
        %1584 = vmatpush.bf16.msra.mxu0 0
        %1585 = vmatpush.bf16.msra.mxu0 %v1576
        %1586 = vmatmul.bf16.gmra.mxu0 %v1573
        %v1587 = vpop.f32.mrf.mxu0
        %v1588 = vadd.f32 0.0, %v1587
        %v1589 = vpop.f32.mrf.mxu0
        %1590 = vdwg.mxu0
        %1591 = vrot.lane.b32.xlu0 %v1415, 104
        %v1592 = vpop.permute.xlu0 %1591
        %1593 = vrot.lane.b32.xlu0 %v1415, 72
        %v1594 = vpop.permute.xlu0 %1593
        %v1596 = vsel %vm1419, %v1592, 0
        %v1599 = vsel %vm1419, %v1594, 0
        %1601 = vmatpush.bf16.xpose.msra.mxu0 0
        %1602 = vmatpush.bf16.xpose.msra.mxu0 0
        %1603 = vmatpush.bf16.xpose.msra.mxu0 0
        %1604 = vmatpush.bf16.xpose.msra.mxu0 0
        %1605 = vmatpush.bf16.xpose.msra.mxu0 0
        %1606 = vmatpush.bf16.xpose.msra.mxu0 0
        %1607 = vmatpush.bf16.xpose.msra.mxu0 0
        %1608 = vmatpush.bf16.xpose.msra.mxu0 %v1599
        %1609 = vmatmul.bf16.gmra.mxu0 %v1596
        %v1610 = vpop.f32.mrf.mxu0
        %v1611 = vadd.f32 0.0, %v1610
        %v1612 = vpop.f32.mrf.mxu0
        %1613 = vdwg.mxu0
        %v1614 = vmul.f32 %v1611, 0.35355338
        %v1615 = vadd.f32 %v1614, %v1377
        %v1616 = vsel %vm1419, %v1615, -inf
        %1617 = vmax.xlane.f32.xlu0 %v1616
        %v1618 = vpop.xlane.xlu0 %1617
        %v1619 = vsub.f32 %v1615, %v1618
        %v1620 = vmul.f32 %v1619, 1.442695
        %v1621 = vpow.pop %v1620
        %v1622 = vsel %vm1419, %v1621, 0.0
        %1623 = vadd.xlane.f32.xlu0 %v1622
        %v1624 = vpop.xlane.xlu0 %1623
        %v1625 = vrcp.pop %v1624
        %v1626 = vmul.f32 %v1621, %v1625
        %v1627 = vpack.c.bf16 %v1626, %v1626
        %1628 = vrot.lane.b32.xlu0 %v1415, 40
        %v1629 = vpop.permute.xlu0 %1628
        %v1631 = vsel %vm1419, %v1627, 0
        %v1634 = vsel %vm1458, %v1629, 0
        %1636 = vmatpush.bf16.msra.mxu0 0
        %1637 = vmatpush.bf16.msra.mxu0 0
        %1638 = vmatpush.bf16.msra.mxu0 0
        %1639 = vmatpush.bf16.msra.mxu0 0
        %1640 = vmatpush.bf16.msra.mxu0 0
        %1641 = vmatpush.bf16.msra.mxu0 0
        %1642 = vmatpush.bf16.msra.mxu0 0
        %1643 = vmatpush.bf16.msra.mxu0 %v1634
        %1644 = vmatmul.bf16.gmra.mxu0 %v1631
        %v1645 = vpop.f32.mrf.mxu0
        %v1646 = vadd.f32 0.0, %v1645
        %v1647 = vpop.f32.mrf.mxu0
        %1648 = vdwg.mxu0
        %1650 = vrot.lane.b32.xlu0 %v1530, 8
        %v1651 = vpop.permute.xlu0 %1650
        %1654 = vrot.lane.b32.xlu0 %v1588, 16
        %v1655 = vpop.permute.xlu0 %1654
        %1658 = vrot.lane.b32.xlu0 %v1646, 24
        %v1659 = vpop.permute.xlu0 %1658
        %v1661 = vsel %vm1419, %v1472, %v1651
        %vm1662 = vcmask 130048
        %v1663 = vsel %vm1662, %v1661, %v1655
        %vm1664 = vcmask 195584
        %v1665 = vsel %vm1664, %v1663, %v1659
        %v1666 = vld [vmem:[#allocation11] sm:$0xf]
        %v1667 = vld [vmem:[#allocation11 + $0x4] sm:$0xf]
        %v1668 = vld [vmem:[#allocation11 + $0x8] sm:$0xf]
        %v1669 = vld [vmem:[#allocation11 + $0xc] sm:$0xf]
        %v1670 = vpack.c.bf16 %v1665, %v1665
        %v1671 = vld [vmem:[#allocation13] sm:$0x1]
        %v1672 = vunpack.c.l.bf16 %v1671
        %v1673 = vperm.slane %v1672, 0
        %v1678 = vunpack.c.l.b16 %v1666
        %v1679 = vunpack.c.l.b16 %v1667
        %v1680 = vunpack.c.l.b16 %v1668
        %v1681 = vunpack.c.l.b16 %v1669
        %v1682 = vpack.c.b16 %v1679, %v1678
        %v1683 = vpack.c.b16 %v1681, %v1680
        %v1687 = vsel %vm1398, %v1670, 0
        %1689 = vmatpush.bf16.msra.mxu0 0
        %1690 = vmatpush.bf16.msra.mxu0 0
        %1691 = vmatpush.bf16.msra.mxu0 0
        %1692 = vmatpush.bf16.msra.mxu0 0
        %1693 = vmatpush.bf16.msra.mxu0 0
        %1694 = vmatpush.bf16.msra.mxu0 0
        %1695 = vmatpush.bf16.msra.mxu0 %v1683
        %1696 = vmatpush.bf16.msra.mxu0 %v1682
        %1697 = vmatmul.bf16.gmra.mxu0 %v1687
        %v1698 = vpop.f32.mrf.mxu0
        %v1699 = vadd.f32 %v1673, %v1698
        %v1700 = vpop.f32.mrf.mxu0
        %1701 = vdwg.mxu0
        %v1702 = vadd.f32 %v1366, %v1699
        %v1703 = vld [vmem:[#allocation14] sm:$0x1]
        %v1704 = vld [vmem:[#allocation16] sm:$0x1]
        %v1705 = vsel %vm1398, %v1702, 0.0
        %1706 = vadd.xlane.f32.xlu0 %v1705
        %v1707 = vpop.xlane.xlu0 %1706
        %v1708 = vrcp.pop 32.0
        %v1709 = vmul.f32 32.0, %v1708
        %v1710 = vsub.f32 1.0, %v1709
        %v1711 = vmul.f32 %v1708, %v1710
        %v1712 = vadd.f32 %v1708, %v1711
        %vm1713 = vweird.f32 %v1708
        %v1714 = vsel %vm1713, %v1708, %v1712
        %v1715 = vmul.f32 %v1707, %v1714
        %v1716 = vsub.f32 %v1702, %v1715
        %v1717 = vmul.f32 %v1716, %v1716
        %v1718 = vsel %vm1398, %v1717, 0.0
        %1719 = vadd.xlane.f32.xlu0 %v1718
        %v1720 = vpop.xlane.xlu0 %1719
        %v1721 = vmul.f32 %v1720, %v1714
        %v1722 = vadd.f32 %v1721, 1e-05
        %v1723 = vrsqrt.pop %v1722
        %v1724 = vmul.f32 %v1723, %v1722
        %v1725 = vmul.f32 %v1724, %v1723
        %v1726 = vmul.f32 0.5, %v1725
        %v1727 = vsub.f32 1.5, %v1726
        %v1728 = vmul.f32 %v1723, %v1727
        %vm1729 = vweird.f32 %v1722
        %vm1730 = vweird.f32 %v1723
        %vm1731 = vmor %vm1729, %vm1730
        %v1732 = vsel %vm1731, %v1723, %v1728
        %v1733 = vmul.f32 %v1716, %v1732
        %v1734 = vunpack.c.l.bf16 %v1703
        %v1735 = vperm.slane %v1734, 0
        %v1736 = vmul.f32 %v1733, %v1735
        %v1737 = vunpack.c.l.bf16 %v1704
        %v1738 = vperm.slane %v1737, 0
        %v1739 = vadd.f32 %v1736, %v1738
        %v1740 = vld [vmem:[%s23] sm:$0xf]
        %v1741 = vld [vmem:[%s23 + $0x4] sm:$0xf]
        %v1742 = vld [vmem:[%s23 + $0x8] sm:$0xf]
        %v1743 = vld [vmem:[%s23 + $0xc] sm:$0xf]
        %v1744 = vpack.c.bf16 %v1739, %v1739
        %v1745 = vld [vmem:[#allocation17] sm:$0x1]
        %v1746 = vunpack.c.l.bf16 %v1745
        %v1747 = vperm.slane %v1746, 0
        %v1752 = vunpack.c.l.b16 %v1740
        %v1753 = vunpack.c.l.b16 %v1741
        %v1754 = vunpack.c.l.b16 %v1742
        %v1755 = vunpack.c.l.b16 %v1743
        %v1756 = vpack.c.b16 %v1753, %v1752
        %v1757 = vpack.c.b16 %v1755, %v1754
        %v1761 = vsel %vm1398, %v1744, 0
        %1763 = vmatpush.bf16.msra.mxu0 0
        %1764 = vmatpush.bf16.msra.mxu0 0
        %1765 = vmatpush.bf16.msra.mxu0 0
        %1766 = vmatpush.bf16.msra.mxu0 0
        %1767 = vmatpush.bf16.msra.mxu0 0
        %1768 = vmatpush.bf16.msra.mxu0 0
        %1769 = vmatpush.bf16.msra.mxu0 %v1757
        %1770 = vmatpush.bf16.msra.mxu0 %v1756
        %1771 = vmatmul.bf16.gmra.mxu0 %v1761
        %v1772 = vpop.f32.mrf.mxu0
        %v1773 = vadd.f32 %v1747, %v1772
        %v1774 = vpop.f32.mrf.mxu0
        %1775 = vdwg.mxu0
        %v1776 = vmax.f32 %v1773, 0.0
        %v1777 = vld [vmem:[#allocation19] sm:$0xf]
        %v1778 = vld [vmem:[#allocation19 + $0x4] sm:$0xf]
        %v1779 = vld [vmem:[#allocation19 + $0x8] sm:$0xf]
        %v1780 = vld [vmem:[#allocation19 + $0xc] sm:$0xf]
        %v1781 = vpack.c.bf16 %v1776, %v1776
        %v1786 = vunpack.c.l.b16 %v1777
        %v1787 = vunpack.c.l.b16 %v1778
        %v1788 = vunpack.c.l.b16 %v1779
        %v1789 = vunpack.c.l.b16 %v1780
        %v1790 = vpack.c.b16 %v1787, %v1786
        %v1791 = vpack.c.b16 %v1789, %v1788
        %v1795 = vsel %vm1398, %v1781, 0
        %1797 = vmatpush.bf16.msra.mxu0 0
        %1798 = vmatpush.bf16.msra.mxu0 0
        %1799 = vmatpush.bf16.msra.mxu0 0
        %1800 = vmatpush.bf16.msra.mxu0 0
        %1801 = vmatpush.bf16.msra.mxu0 0
        %1802 = vmatpush.bf16.msra.mxu0 0
        %1803 = vmatpush.bf16.msra.mxu0 %v1791
        %1804 = vmatpush.bf16.msra.mxu0 %v1790
        %1805 = vmatmul.bf16.gmra.mxu0 %v1795
        %v1806 = vpop.f32.mrf.mxu0
        %v1807 = vadd.f32 0.0, %v1806
        %v1808 = vpop.f32.mrf.mxu0
        %1809 = vdwg.mxu0
        %v1810 = vadd.f32 %v1739, %v1807
        %v1811 = vld [vmem:[#allocation20] sm:$0x1]
        %v1812 = vunpack.c.l.bf16 %v1811
        %v1813 = vperm.slane %v1812, 0
        %v1814 = vadd.f32 %v1810, %v1813
        %v1815 = vld [vmem:[#allocation22] sm:$0x1]
        %v1816 = vld [vmem:[#allocation23] sm:$0x1]
        %v1817 = vsel %vm1398, %v1814, 0.0
        %1818 = vadd.xlane.f32.xlu0 %v1817
        %v1819 = vpop.xlane.xlu0 %1818
        %v1820 = vmul.f32 %v1819, %v1714
        %v1821 = vsub.f32 %v1814, %v1820
        %v1822 = vmul.f32 %v1821, %v1821
        %v1823 = vsel %vm1398, %v1822, 0.0
        %1824 = vadd.xlane.f32.xlu0 %v1823
        %v1825 = vpop.xlane.xlu0 %1824
        %v1826 = vmul.f32 %v1825, %v1714
        %v1827 = vadd.f32 %v1826, 1e-05
        %v1828 = vrsqrt.pop %v1827
        %v1829 = vmul.f32 %v1828, %v1827
        %v1830 = vmul.f32 %v1829, %v1828
        %v1831 = vmul.f32 0.5, %v1830
        %v1832 = vsub.f32 1.5, %v1831
        %v1833 = vmul.f32 %v1828, %v1832
        %vm1834 = vweird.f32 %v1827
        %vm1835 = vweird.f32 %v1828
        %vm1836 = vmor %vm1834, %vm1835
        %v1837 = vsel %vm1836, %v1828, %v1833
        %v1838 = vmul.f32 %v1821, %v1837
        %v1839 = vunpack.c.l.bf16 %v1815
        %v1840 = vperm.slane %v1839, 0
        %v1841 = vmul.f32 %v1838, %v1840
        %v1842 = vunpack.c.l.bf16 %v1816
        %v1843 = vperm.slane %v1842, 0
        %v1844 = vadd.f32 %v1841, %v1843
        %v1845 = vld [vmem:[#allocation25] sm:$0xf]
        %v1846 = vld [vmem:[#allocation25 + $0x4] sm:$0xf]
        %v1847 = vld [vmem:[#allocation25 + $0x8] sm:$0xf]
        %v1848 = vld [vmem:[#allocation25 + $0xc] sm:$0xf]
        %v1849 = vpack.c.bf16 %v1844, %v1844
        %v1850 = vld [vmem:[#allocation26] sm:$0x1]
        %v1851 = vunpack.c.l.bf16 %v1850
        %v1852 = vperm.slane %v1851, 0
        %v1857 = vunpack.c.l.b16 %v1845
        %v1858 = vunpack.c.l.b16 %v1846
        %v1859 = vunpack.c.l.b16 %v1847
        %v1860 = vunpack.c.l.b16 %v1848
        %v1861 = vpack.c.b16 %v1858, %v1857
        %v1862 = vpack.c.b16 %v1860, %v1859
        %v1866 = vsel %vm1398, %v1849, 0
        %1868 = vmatpush.bf16.msra.mxu0 0
        %1869 = vmatpush.bf16.msra.mxu0 0
        %1870 = vmatpush.bf16.msra.mxu0 0
        %1871 = vmatpush.bf16.msra.mxu0 0
        %1872 = vmatpush.bf16.msra.mxu0 0
        %1873 = vmatpush.bf16.msra.mxu0 0
        %1874 = vmatpush.bf16.msra.mxu0 %v1862
        %1875 = vmatpush.bf16.msra.mxu0 %v1861
        %1876 = vmatmul.bf16.gmra.mxu0 %v1866
        %v1877 = vpop.f32.mrf.mxu0
        %v1878 = vadd.f32 %v1852, %v1877
        %v1879 = vpop.f32.mrf.mxu0
        %1880 = vdwg.mxu0
        %v1881 = vpack.c.bf16 %v1878, %v1878
        %1883 = vrot.lane.b32.xlu0 %v1881, 96
        %v1884 = vpop.permute.xlu0 %1883
        %v1886 = vsel %vm1419, %v1881, 0
        %v1889 = vsel %vm1419, %v1884, 0
        %1891 = vmatpush.bf16.xpose.msra.mxu0 0
        %1892 = vmatpush.bf16.xpose.msra.mxu0 0
        %1893 = vmatpush.bf16.xpose.msra.mxu0 0
        %1894 = vmatpush.bf16.xpose.msra.mxu0 0
        %1895 = vmatpush.bf16.xpose.msra.mxu0 0
        %1896 = vmatpush.bf16.xpose.msra.mxu0 0
        %1897 = vmatpush.bf16.xpose.msra.mxu0 0
        %1898 = vmatpush.bf16.xpose.msra.mxu0 %v1889
        %1899 = vmatmul.bf16.gmra.mxu0 %v1886
        %v1900 = vpop.f32.mrf.mxu0
        %v1901 = vadd.f32 0.0, %v1900
        %v1902 = vpop.f32.mrf.mxu0
        %1903 = vdwg.mxu0
        %v1904 = vmul.f32 %v1901, 0.35355338
        %v1905 = vadd.f32 %v1904, %v1377
        %v1906 = vsel %vm1419, %v1905, -inf
        %1907 = vmax.xlane.f32.xlu0 %v1906
        %v1908 = vpop.xlane.xlu0 %1907
        %v1909 = vsub.f32 %v1905, %v1908
        %v1910 = vmul.f32 %v1909, 1.442695
        %v1911 = vpow.pop %v1910
        %v1912 = vsel %vm1419, %v1911, 0.0
        %1913 = vadd.xlane.f32.xlu0 %v1912
        %v1914 = vpop.xlane.xlu0 %1913
        %v1915 = vrcp.pop %v1914
        %v1916 = vmul.f32 %v1911, %v1915
        %v1917 = vpack.c.bf16 %v1916, %v1916
        %1918 = vrot.lane.b32.xlu0 %v1881, 64
        %v1919 = vpop.permute.xlu0 %1918
        %v1921 = vsel %vm1419, %v1917, 0
        %v1924 = vsel %vm1458, %v1919, 0
        %1926 = vmatpush.bf16.msra.mxu0 0
        %1927 = vmatpush.bf16.msra.mxu0 0
        %1928 = vmatpush.bf16.msra.mxu0 0
        %1929 = vmatpush.bf16.msra.mxu0 0
        %1930 = vmatpush.bf16.msra.mxu0 0
        %1931 = vmatpush.bf16.msra.mxu0 0
        %1932 = vmatpush.bf16.msra.mxu0 0
        %1933 = vmatpush.bf16.msra.mxu0 %v1924
        %1934 = vmatmul.bf16.gmra.mxu0 %v1921
        %v1935 = vpop.f32.mrf.mxu0
        %v1936 = vadd.f32 0.0, %v1935
        %v1937 = vpop.f32.mrf.mxu0
        %1938 = vdwg.mxu0
        %1939 = vrot.lane.b32.xlu0 %v1881, 120
        %v1940 = vpop.permute.xlu0 %1939
        %1941 = vrot.lane.b32.xlu0 %v1881, 88
        %v1942 = vpop.permute.xlu0 %1941
        %v1944 = vsel %vm1419, %v1940, 0
        %v1947 = vsel %vm1419, %v1942, 0
        %1949 = vmatpush.bf16.xpose.msra.mxu0 0
        %1950 = vmatpush.bf16.xpose.msra.mxu0 0
        %1951 = vmatpush.bf16.xpose.msra.mxu0 0
        %1952 = vmatpush.bf16.xpose.msra.mxu0 0
        %1953 = vmatpush.bf16.xpose.msra.mxu0 0
        %1954 = vmatpush.bf16.xpose.msra.mxu0 0
        %1955 = vmatpush.bf16.xpose.msra.mxu0 0
        %1956 = vmatpush.bf16.xpose.msra.mxu0 %v1947
        %1957 = vmatmul.bf16.gmra.mxu0 %v1944
        %v1958 = vpop.f32.mrf.mxu0
        %v1959 = vadd.f32 0.0, %v1958
        %v1960 = vpop.f32.mrf.mxu0
        %1961 = vdwg.mxu0
        %v1962 = vmul.f32 %v1959, 0.35355338
        %v1963 = vadd.f32 %v1962, %v1377
        %v1964 = vsel %vm1419, %v1963, -inf
        %1965 = vmax.xlane.f32.xlu0 %v1964
        %v1966 = vpop.xlane.xlu0 %1965
        %v1967 = vsub.f32 %v1963, %v1966
        %v1968 = vmul.f32 %v1967, 1.442695
        %v1969 = vpow.pop %v1968
        %v1970 = vsel %vm1419, %v1969, 0.0
        %1971 = vadd.xlane.f32.xlu0 %v1970
        %v1972 = vpop.xlane.xlu0 %1971
        %v1973 = vrcp.pop %v1972
        %v1974 = vmul.f32 %v1969, %v1973
        %v1975 = vpack.c.bf16 %v1974, %v1974
        %1976 = vrot.lane.b32.xlu0 %v1881, 56
        %v1977 = vpop.permute.xlu0 %1976
        %v1979 = vsel %vm1419, %v1975, 0
        %v1982 = vsel %vm1458, %v1977, 0
        %1984 = vmatpush.bf16.msra.mxu0 0
        %1985 = vmatpush.bf16.msra.mxu0 0
        %1986 = vmatpush.bf16.msra.mxu0 0
        %1987 = vmatpush.bf16.msra.mxu0 0
        %1988 = vmatpush.bf16.msra.mxu0 0
        %1989 = vmatpush.bf16.msra.mxu0 0
        %1990 = vmatpush.bf16.msra.mxu0 0
        %1991 = vmatpush.bf16.msra.mxu0 %v1982
        %1992 = vmatmul.bf16.gmra.mxu0 %v1979
        %v1993 = vpop.f32.mrf.mxu0
        %v1994 = vadd.f32 0.0, %v1993
        %v1995 = vpop.f32.mrf.mxu0
        %1996 = vdwg.mxu0
        %1997 = vrot.lane.b32.xlu0 %v1881, 112
        %v1998 = vpop.permute.xlu0 %1997
        %1999 = vrot.lane.b32.xlu0 %v1881, 80
        %v2000 = vpop.permute.xlu0 %1999
        %v2002 = vsel %vm1419, %v1998, 0
        %v2005 = vsel %vm1419, %v2000, 0
        %2007 = vmatpush.bf16.xpose.msra.mxu0 0
        %2008 = vmatpush.bf16.xpose.msra.mxu0 0
        %2009 = vmatpush.bf16.xpose.msra.mxu0 0
        %2010 = vmatpush.bf16.xpose.msra.mxu0 0
        %2011 = vmatpush.bf16.xpose.msra.mxu0 0
        %2012 = vmatpush.bf16.xpose.msra.mxu0 0
        %2013 = vmatpush.bf16.xpose.msra.mxu0 0
        %2014 = vmatpush.bf16.xpose.msra.mxu0 %v2005
        %2015 = vmatmul.bf16.gmra.mxu0 %v2002
        %v2016 = vpop.f32.mrf.mxu0
        %v2017 = vadd.f32 0.0, %v2016
        %v2018 = vpop.f32.mrf.mxu0
        %2019 = vdwg.mxu0
        %v2020 = vmul.f32 %v2017, 0.35355338
        %v2021 = vadd.f32 %v2020, %v1377
        %v2022 = vsel %vm1419, %v2021, -inf
        %2023 = vmax.xlane.f32.xlu0 %v2022
        %v2024 = vpop.xlane.xlu0 %2023
        %v2025 = vsub.f32 %v2021, %v2024
        %v2026 = vmul.f32 %v2025, 1.442695
        %v2027 = vpow.pop %v2026
        %v2028 = vsel %vm1419, %v2027, 0.0
        %2029 = vadd.xlane.f32.xlu0 %v2028
        %v2030 = vpop.xlane.xlu0 %2029
        %v2031 = vrcp.pop %v2030
        %v2032 = vmul.f32 %v2027, %v2031
        %v2033 = vpack.c.bf16 %v2032, %v2032
        %2034 = vrot.lane.b32.xlu0 %v1881, 48
        %v2035 = vpop.permute.xlu0 %2034
        %v2037 = vsel %vm1419, %v2033, 0
        %v2040 = vsel %vm1458, %v2035, 0
        %2042 = vmatpush.bf16.msra.mxu0 0
        %2043 = vmatpush.bf16.msra.mxu0 0
        %2044 = vmatpush.bf16.msra.mxu0 0
        %2045 = vmatpush.bf16.msra.mxu0 0
        %2046 = vmatpush.bf16.msra.mxu0 0
        %2047 = vmatpush.bf16.msra.mxu0 0
        %2048 = vmatpush.bf16.msra.mxu0 0
        %2049 = vmatpush.bf16.msra.mxu0 %v2040
        %2050 = vmatmul.bf16.gmra.mxu0 %v2037
        %v2051 = vpop.f32.mrf.mxu0
        %v2052 = vadd.f32 0.0, %v2051
        %v2053 = vpop.f32.mrf.mxu0
        %2054 = vdwg.mxu0
        %2055 = vrot.lane.b32.xlu0 %v1881, 104
        %v2056 = vpop.permute.xlu0 %2055
        %2057 = vrot.lane.b32.xlu0 %v1881, 72
        %v2058 = vpop.permute.xlu0 %2057
        %v2060 = vsel %vm1419, %v2056, 0
        %v2063 = vsel %vm1419, %v2058, 0
        %2065 = vmatpush.bf16.xpose.msra.mxu0 0
        %2066 = vmatpush.bf16.xpose.msra.mxu0 0
        %2067 = vmatpush.bf16.xpose.msra.mxu0 0
        %2068 = vmatpush.bf16.xpose.msra.mxu0 0
        %2069 = vmatpush.bf16.xpose.msra.mxu0 0
        %2070 = vmatpush.bf16.xpose.msra.mxu0 0
        %2071 = vmatpush.bf16.xpose.msra.mxu0 0
        %2072 = vmatpush.bf16.xpose.msra.mxu0 %v2063
        %2073 = vmatmul.bf16.gmra.mxu0 %v2060
        %v2074 = vpop.f32.mrf.mxu0
        %v2075 = vadd.f32 0.0, %v2074
        %v2076 = vpop.f32.mrf.mxu0
        %2077 = vdwg.mxu0
        %v2078 = vmul.f32 %v2075, 0.35355338
        %v2079 = vadd.f32 %v2078, %v1377
        %v2080 = vsel %vm1419, %v2079, -inf
        %2081 = vmax.xlane.f32.xlu0 %v2080
        %v2082 = vpop.xlane.xlu0 %2081
        %v2083 = vsub.f32 %v2079, %v2082
        %v2084 = vmul.f32 %v2083, 1.442695
        %v2085 = vpow.pop %v2084
        %v2086 = vsel %vm1419, %v2085, 0.0
        %2087 = vadd.xlane.f32.xlu0 %v2086
        %v2088 = vpop.xlane.xlu0 %2087
        %v2089 = vrcp.pop %v2088
        %v2090 = vmul.f32 %v2085, %v2089
        %v2091 = vpack.c.bf16 %v2090, %v2090
        %2092 = vrot.lane.b32.xlu0 %v1881, 40
        %v2093 = vpop.permute.xlu0 %2092
        %v2095 = vsel %vm1419, %v2091, 0
        %v2098 = vsel %vm1458, %v2093, 0
        %2100 = vmatpush.bf16.msra.mxu0 0
        %2101 = vmatpush.bf16.msra.mxu0 0
        %2102 = vmatpush.bf16.msra.mxu0 0
        %2103 = vmatpush.bf16.msra.mxu0 0
        %2104 = vmatpush.bf16.msra.mxu0 0
        %2105 = vmatpush.bf16.msra.mxu0 0
        %2106 = vmatpush.bf16.msra.mxu0 0
        %2107 = vmatpush.bf16.msra.mxu0 %v2098
        %2108 = vmatmul.bf16.gmra.mxu0 %v2095
        %v2109 = vpop.f32.mrf.mxu0
        %v2110 = vadd.f32 0.0, %v2109
        %v2111 = vpop.f32.mrf.mxu0
        %2112 = vdwg.mxu0
        %2114 = vrot.lane.b32.xlu0 %v1994, 8
        %v2115 = vpop.permute.xlu0 %2114
        %2118 = vrot.lane.b32.xlu0 %v2052, 16
        %v2119 = vpop.permute.xlu0 %2118
        %2122 = vrot.lane.b32.xlu0 %v2110, 24
        %v2123 = vpop.permute.xlu0 %2122
        %v2125 = vsel %vm1419, %v1936, %v2115
        %v2126 = vsel %vm1662, %v2125, %v2119
        %v2127 = vsel %vm1664, %v2126, %v2123
        %v2128 = vld [vmem:[#allocation28] sm:$0xf]
        %v2129 = vld [vmem:[#allocation28 + $0x4] sm:$0xf]
        %v2130 = vld [vmem:[#allocation28 + $0x8] sm:$0xf]
        %v2131 = vld [vmem:[#allocation28 + $0xc] sm:$0xf]
        %v2132 = vpack.c.bf16 %v2127, %v2127
        %v2133 = vld [vmem:[#allocation29] sm:$0x1]
        %v2134 = vunpack.c.l.bf16 %v2133
        %v2135 = vperm.slane %v2134, 0
        %v2140 = vunpack.c.l.b16 %v2128
        %v2141 = vunpack.c.l.b16 %v2129
        %v2142 = vunpack.c.l.b16 %v2130
        %v2143 = vunpack.c.l.b16 %v2131
        %v2144 = vpack.c.b16 %v2141, %v2140
        %v2145 = vpack.c.b16 %v2143, %v2142
        %v2149 = vsel %vm1398, %v2132, 0
        %2151 = vmatpush.bf16.msra.mxu0 0
        %2152 = vmatpush.bf16.msra.mxu0 0
        %2153 = vmatpush.bf16.msra.mxu0 0
        %2154 = vmatpush.bf16.msra.mxu0 0
        %2155 = vmatpush.bf16.msra.mxu0 0
        %2156 = vmatpush.bf16.msra.mxu0 0
        %2157 = vmatpush.bf16.msra.mxu0 %v2145
        %2158 = vmatpush.bf16.msra.mxu0 %v2144
        %2159 = vmatmul.bf16.gmra.mxu0 %v2149
        %v2160 = vpop.f32.mrf.mxu0
        %v2161 = vadd.f32 %v2135, %v2160
        %v2162 = vpop.f32.mrf.mxu0
        %2163 = vdwg.mxu0
        %v2164 = vadd.f32 %v1844, %v2161
        %v2165 = vld [vmem:[#allocation31] sm:$0x1]
        %v2166 = vld [vmem:[#allocation32] sm:$0x1]
        %v2167 = vsel %vm1398, %v2164, 0.0
        %2168 = vadd.xlane.f32.xlu0 %v2167
        %v2169 = vpop.xlane.xlu0 %2168
        %v2170 = vmul.f32 %v2169, %v1714
        %v2171 = vsub.f32 %v2164, %v2170
        %v2172 = vmul.f32 %v2171, %v2171
        %v2173 = vsel %vm1398, %v2172, 0.0
        %2174 = vadd.xlane.f32.xlu0 %v2173
        %v2175 = vpop.xlane.xlu0 %2174
        %v2176 = vmul.f32 %v2175, %v1714
        %v2177 = vadd.f32 %v2176, 1e-05
        %v2178 = vrsqrt.pop %v2177
        %v2179 = vmul.f32 %v2178, %v2177
        %v2180 = vmul.f32 %v2179, %v2178
        %v2181 = vmul.f32 0.5, %v2180
        %v2182 = vsub.f32 1.5, %v2181
        %v2183 = vmul.f32 %v2178, %v2182
        %vm2184 = vweird.f32 %v2177
        %vm2185 = vweird.f32 %v2178
        %vm2186 = vmor %vm2184, %vm2185
        %v2187 = vsel %vm2186, %v2178, %v2183
        %v2188 = vmul.f32 %v2171, %v2187
        %v2189 = vunpack.c.l.bf16 %v2165
        %v2190 = vperm.slane %v2189, 0
        %v2191 = vmul.f32 %v2188, %v2190
        %v2192 = vunpack.c.l.bf16 %v2166
        %v2193 = vperm.slane %v2192, 0
        %v2194 = vadd.f32 %v2191, %v2193
        %v2195 = vld [vmem:[#allocation34] sm:$0xf]
        %v2196 = vld [vmem:[#allocation34 + $0x4] sm:$0xf]
        %v2197 = vld [vmem:[#allocation34 + $0x8] sm:$0xf]
        %v2198 = vld [vmem:[#allocation34 + $0xc] sm:$0xf]
        %v2199 = vpack.c.bf16 %v2194, %v2194
        %v2200 = vld [vmem:[#allocation35] sm:$0x1]
        %v2201 = vunpack.c.l.bf16 %v2200
        %v2202 = vperm.slane %v2201, 0
        %v2207 = vunpack.c.l.b16 %v2195
        %v2208 = vunpack.c.l.b16 %v2196
        %v2209 = vunpack.c.l.b16 %v2197
        %v2210 = vunpack.c.l.b16 %v2198
        %v2211 = vpack.c.b16 %v2208, %v2207
        %v2212 = vpack.c.b16 %v2210, %v2209
        %v2216 = vsel %vm1398, %v2199, 0
        %2218 = vmatpush.bf16.msra.mxu0 0
        %2219 = vmatpush.bf16.msra.mxu0 0
        %2220 = vmatpush.bf16.msra.mxu0 0
        %2221 = vmatpush.bf16.msra.mxu0 0
        %2222 = vmatpush.bf16.msra.mxu0 0
        %2223 = vmatpush.bf16.msra.mxu0 0
        %2224 = vmatpush.bf16.msra.mxu0 %v2212
        %2225 = vmatpush.bf16.msra.mxu0 %v2211
        %2226 = vmatmul.bf16.gmra.mxu0 %v2216
        %v2227 = vpop.f32.mrf.mxu0
        %v2228 = vadd.f32 %v2202, %v2227
        %v2229 = vpop.f32.mrf.mxu0
        %2230 = vdwg.mxu0
        %v2231 = vmax.f32 %v2228, 0.0
        %v2232 = vld [vmem:[%s51] sm:$0xf]
        %v2233 = vld [vmem:[%s51 + $0x4] sm:$0xf]
        %v2234 = vld [vmem:[%s51 + $0x8] sm:$0xf]
        %v2235 = vld [vmem:[%s51 + $0xc] sm:$0xf]
        %v2236 = vpack.c.bf16 %v2231, %v2231
        %v2241 = vunpack.c.l.b16 %v2232
        %v2242 = vunpack.c.l.b16 %v2233
        %v2243 = vunpack.c.l.b16 %v2234
        %v2244 = vunpack.c.l.b16 %v2235
        %v2245 = vpack.c.b16 %v2242, %v2241
        %v2246 = vpack.c.b16 %v2244, %v2243
        %v2250 = vsel %vm1398, %v2236, 0
        %2252 = vmatpush.bf16.msra.mxu0 0
        %2253 = vmatpush.bf16.msra.mxu0 0
        %2254 = vmatpush.bf16.msra.mxu0 0
        %2255 = vmatpush.bf16.msra.mxu0 0
        %2256 = vmatpush.bf16.msra.mxu0 0
        %2257 = vmatpush.bf16.msra.mxu0 0
        %2258 = vmatpush.bf16.msra.mxu0 %v2246
        %2259 = vmatpush.bf16.msra.mxu0 %v2245
        %2260 = vmatmul.bf16.gmra.mxu0 %v2250
        %v2261 = vpop.f32.mrf.mxu0
        %v2262 = vadd.f32 0.0, %v2261
        %v2263 = vpop.f32.mrf.mxu0
        %2264 = vdwg.mxu0
        %v2265 = vadd.f32 %v2194, %v2262
        %v2266 = vld [vmem:[#allocation37] sm:$0x1]
        %v2267 = vunpack.c.l.bf16 %v2266
        %v2268 = vperm.slane %v2267, 0
        %v2269 = vadd.f32 %v2265, %v2268
        %v2270 = vld [vmem:[%s55] sm:$0x1]
        %v2271 = vld [vmem:[%s57] sm:$0x1]
        %v2272 = vsel %vm1398, %v2269, 0.0
        %2273 = vadd.xlane.f32.xlu0 %v2272
        %v2274 = vpop.xlane.xlu0 %2273
        %v2275 = vmul.f32 %v2274, %v1714
        %v2276 = vsub.f32 %v2269, %v2275
        %v2277 = vmul.f32 %v2276, %v2276
        %v2278 = vsel %vm1398, %v2277, 0.0
        %2279 = vadd.xlane.f32.xlu0 %v2278
        %v2280 = vpop.xlane.xlu0 %2279
        %v2281 = vmul.f32 %v2280, %v1714
        %v2282 = vadd.f32 %v2281, 1e-05
        %v2283 = vrsqrt.pop %v2282
        %v2284 = vmul.f32 %v2283, %v2282
        %v2285 = vmul.f32 %v2284, %v2283
        %v2286 = vmul.f32 0.5, %v2285
        %v2287 = vsub.f32 1.5, %v2286
        %v2288 = vmul.f32 %v2283, %v2287
        %vm2289 = vweird.f32 %v2282
        %vm2290 = vweird.f32 %v2283
        %vm2291 = vmor %vm2289, %vm2290
        %v2292 = vsel %vm2291, %v2283, %v2288
        %v2293 = vmul.f32 %v2276, %v2292
        %v2294 = vunpack.c.l.bf16 %v2270
        %v2295 = vperm.slane %v2294, 0
        %v2296 = vmul.f32 %v2293, %v2295
        %v2297 = vunpack.c.l.bf16 %v2271
        %v2298 = vperm.slane %v2297, 0
        %v2299 = vadd.f32 %v2296, %v2298
        %v2300 = vld [vmem:[#allocation38] sm:$0xf]
        %v2301 = vld [vmem:[#allocation38 + $0x4] sm:$0xf]
        %v2302 = vld [vmem:[#allocation38 + $0x8] sm:$0xf]
        %v2303 = vld [vmem:[#allocation38 + $0xc] sm:$0xf]
        %v2304 = vpack.c.bf16 %v2299, %v2299
        %v2305 = vld [vmem:[%s61] sm:$0x1]
        %v2306 = vunpack.c.l.bf16 %v2305
        %v2307 = vperm.slane %v2306, 0
        %v2312 = vunpack.c.l.b16 %v2300
        %v2313 = vunpack.c.l.b16 %v2301
        %v2314 = vunpack.c.l.b16 %v2302
        %v2315 = vunpack.c.l.b16 %v2303
        %v2316 = vpack.c.b16 %v2313, %v2312
        %v2317 = vpack.c.b16 %v2315, %v2314
        %v2321 = vsel %vm1398, %v2304, 0
        %2323 = vmatpush.bf16.msra.mxu0 0
        %2324 = vmatpush.bf16.msra.mxu0 0
        %2325 = vmatpush.bf16.msra.mxu0 0
        %2326 = vmatpush.bf16.msra.mxu0 0
        %2327 = vmatpush.bf16.msra.mxu0 0
        %2328 = vmatpush.bf16.msra.mxu0 0
        %2329 = vmatpush.bf16.msra.mxu0 %v2317
        %2330 = vmatpush.bf16.msra.mxu0 %v2316
        %2331 = vmatmul.bf16.gmra.mxu0 %v2321
        %v2332 = vpop.f32.mrf.mxu0
        %v2333 = vadd.f32 %v2307, %v2332
        %v2334 = vpop.f32.mrf.mxu0
        %2335 = vdwg.mxu0
        %v2336 = vsub.f32 0.0, %v2333
        %v2337 = vmul.f32 %v2336, 1.442695
        %v2338 = vpow.pop %v2337
        %v2339 = vadd.f32 %v2338, 1.0
        %v2340 = vrcp.pop %v2339
        %2341 = vst [vmem:[%s1330] sm:$0xff] %v2340
        %s2342 = sand.u32 %s761, 1
        %s2343 = scalar_lea.sflag [#allocation4], %s2342
        %s2344 = sand.u32 %s761, 1
        %s2345 = smul.addr %s2344, 8
        %s2346 = scalar_lea.vmem [#allocation40], %s2345
        // Predicated region
        $region241: #{tpu_custom_call.1} parent=143 // pred_check
          %p2347 = pneg %p771
        $region242: #{tpu_custom_call.1} parent=143 // pred_check_branch
          %2349 = sbr.rel (%p2347) target = $region244
        $region243: #{tpu_custom_call.1} parent=143 // pred_region
          %2351 = vsyncadd %s2343, 0
          %s2352 = smul.addr %s92, 8
          %s2353 = scalar_lea.hbm %s63, %s2352
          %s2355 = sshll.u32 %s2346, 4
          %s2356 = int_to_ptr.vmem [resolvable:$true] %s2355
          %s2357 = sshll.u32 %s2353, 4
          %s2358 = int_to_ptr.hbm [resolvable:$true] %s2357
          %2360 = dma.vmem_to_hbm [thread:$0]  %s2356, 128, %s2358, %s2343
        $region244: #{tpu_custom_call.1} parent=143 // pred_fallthru
          _
      $region144: #{tpu_custom_call.1} parent=5 // pred_fallthru
        _
      %p2361 = scmp.le.s32.totalorder 2, %s87
      // Predicated region
      $region245: #{tpu_custom_call.1} parent=5 // pred_check
        %p2362 = pneg %p2361
      $region246: #{tpu_custom_call.1} parent=5 // pred_check_branch
        %2364 = sbr.rel (%p2362) target = $region248
      $region247: #{tpu_custom_call.1} parent=5 // pred_region
        %s2365 = ssub.s32 %s87, 2
        // Predicated region
        $region249: #{tpu_custom_call.1} parent=247 // pred_check
          %p2366 = pneg %p777
        $region250: #{tpu_custom_call.1} parent=247 // pred_check_branch
          %2368 = sbr.rel (%p2366) target = $region252
        $region251: #{tpu_custom_call.1} parent=247 // pred_region
          %s2369 = sand.u32 %s762, 1
          %s2370 = scalar_lea.sflag [#allocation4], %s2369
          %s2371 = sand.u32 %s762, 1
          %s2372 = smul.addr %s2371, 8
          %s2373 = scalar_lea.vmem [#allocation40], %s2372
          %2375 = dma.done %s2370, 128
        $region252: #{tpu_custom_call.1} parent=247 // pred_fallthru
          _
      $region248: #{tpu_custom_call.1} parent=5 // pred_fallthru
        _
    $region6: #{tpu_custom_call.1} parent=1 // loop_footer
      %s91 = sadd.s32 1, %s87
    $region7: #{tpu_custom_call.1} parent=1 // loop_footer_branch
      %86 = sbr.rel target = $region3
    $region8: #{tpu_custom_call.1} parent=1 // loop_exit
      _
    %2376 = vsyncpa [#allocation3], 1
    %s2377 = scalar_lea.sflag [#allocation3], 1
    %2378 = vsyncpa %s2377, 1
    %2379 = vsyncpa [#allocation6], 1
    %2380 = vsyncpa [#allocation9], 1
    %2381 = vsyncpa [#allocation12], 1
    %2382 = vsyncpa [#allocation15], 1
    %2383 = vsyncpa [#allocation18], 1
    %2384 = vsyncpa [#allocation21], 1
    %2385 = vsyncpa [#allocation24], 1
    %2386 = vsyncpa [#allocation27], 1
    %2387 = vsyncpa [#allocation30], 1
    %2388 = vsyncpa [#allocation33], 1
    %2389 = vsyncpa [#allocation36], 1
    %2390 = vsyncpa [#allocation39], 1
    %2391 = vsyncpa [#allocation4], 1
    %s2392 = scalar_lea.sflag [#allocation4], 1
    %2393 = vsyncpa %s2392, 1

</llo_original>
